<compile_context>
chip_gen: v6e
topology: v6e:2x2x1
jax: 0.10.0
libtpu: 0.0.40
codegen_flags: <defaults>
</compile_context>

<pallas_src>
import functools

import jax
import jax.numpy as jnp
from jax.experimental import pallas as pl
from jax.experimental.pallas import tpu as pltpu


def decoder_block_kernel(x_ref, enc_ref, attn_mask_ref, pad_ref,
                         wqkv_s_ref, bqkv_s_ref, wo_s_ref, bo_s_ref,
                         wq_c_ref, bq_c_ref, wkv_c_ref, bkv_c_ref,
                         wo_c_ref, bo_c_ref,
                         g1_ref, be1_ref, g2_ref, be2_ref, g3_ref, be3_ref,
                         w1_ref, bf1_ref, w2_ref, bf2_ref,
                         o_ref, *, nhead):
    E = x_ref.shape[2]
    dh = E // nhead
    eps = 1e-5
    scale = 1.0 / float(dh) ** 0.5
    bf16 = jnp.bfloat16

    x = x_ref[0].astype(jnp.float32)                 # (S, E) residual stream, f32
    # Additive mask shared by self- and cross-attention (S == Sk by construction),
    # built from (S,Sk) + per-batch (1,Sk) -- no (B,S,Sk) tensor in HBM.
    mask = attn_mask_ref[...] + pad_ref[0]           # (S, Sk) f32

    def layer_norm(z, g, b):
        mu = jnp.mean(z, axis=-1, keepdims=True)
        var = jnp.mean((z - mu) ** 2, axis=-1, keepdims=True)
        return (z - mu) * jax.lax.rsqrt(var + eps) * g + b

    def linear(t_bf16, w_ref, b_ref):
        # bf16 MXU operands, f32 accumulation, f32 bias add.
        return jnp.dot(t_bf16, w_ref[...],
                       preferred_element_type=jnp.float32) + b_ref[...]

    def attention(q, k, v):
        # q: (S, E) f32; k, v: (Skv, E) f32; heads live in contiguous dh-column groups.
        # Scores / context are per-head 2-D matmuls (contraction depth dh is inherent
        # to attention); softmax stays f32 with exact normalization.
        qb, kb, vb = q.astype(bf16), k.astype(bf16), v.astype(bf16)
        ctx = []
        for h in range(nhead):
            sl = slice(h * dh, (h + 1) * dh)
            # contract on dh directly (no k transpose on the MXU path)
            s = jnp.einsum("qd,kd->qk", qb[:, sl], kb[:, sl],
                           preferred_element_type=jnp.float32) * scale
            s = s + mask
            m = jnp.max(s, axis=-1, keepdims=True)
            p = jnp.exp(s - m)
            p = p / jnp.sum(p, axis=-1, keepdims=True)        # exact normalization
            ctx.append(jnp.dot(p.astype(bf16), vb[:, sl],
                               preferred_element_type=jnp.float32).astype(bf16))
        # Concatenate heads along lanes -> one full-depth (K=E) output projection.
        # TODO(synk): on v5e, if ld/st slots saturate, pack two heads per 128-lane
        # group for the per-head tensors instead of dh-wide slices.
        return jnp.concatenate(ctx, axis=-1)                   # (S, E) bf16

    # ---- self attention + residual + norm1 (post-norm) -------------------------
    qkv = linear(x.astype(bf16), wqkv_s_ref, bqkv_s_ref)       # (S, 3E) f32
    ctx = attention(qkv[:, :E], qkv[:, E:2 * E], qkv[:, 2 * E:])
    sa = linear(ctx, wo_s_ref, bo_s_ref)                       # (S, E) f32
    x = layer_norm(x + sa, g1_ref[...], be1_ref[...])

    # ---- cross attention + residual + norm2 -------------------------------------
    q_c = linear(x.astype(bf16), wq_c_ref, bq_c_ref)           # (S, E)
    kv_c = linear(enc_ref[0].astype(bf16), wkv_c_ref, bkv_c_ref)   # (Sk, 2E)
    ctx = attention(q_c, kv_c[:, :E], kv_c[:, E:])
    ca = linear(ctx, wo_c_ref, bo_c_ref)
    x = layer_norm(x + ca, g2_ref[...], be2_ref[...])

    # ---- feed forward + residual + norm3 (dropouts are identity in eval) --------
    h1 = jnp.maximum(linear(x.astype(bf16), w1_ref, bf1_ref), 0.0)   # ReLU in f32
    h2 = linear(h1.astype(bf16), w2_ref, bf2_ref)
    x = layer_norm(x + h2, g3_ref[...], be3_ref[...])

    o_ref[0] = x.astype(o_ref.dtype)


def decoder_block(x, encoder_out, attn_mask, padding_mask, params, *, nhead):
    """x, encoder_out: (B, S, E) f32; attn_mask: (S, S) additive f32;
    padding_mask: (B, S) bool (True = ignore key)."""
    B, S, E = x.shape
    Sk = encoder_out.shape[1]
    F = params["w1"].shape[1]
    dh = E // nhead
    assert E % nhead == 0
    assert Sk == S, "module applies the same attn_mask/padding_mask to both attentions"

    bf16 = jnp.bfloat16
    # Fused, column-grouped projection weights: full-depth (E,3E)/(E,2E) matmuls in
    # the kernel; head h occupies columns [h*dh, (h+1)*dh) within each E block.
    wqkv_s = jnp.concatenate([params["wq_s"], params["wk_s"], params["wv_s"]],
                             axis=1).astype(bf16)                       # (E, 3E)
    bqkv_s = jnp.concatenate([params["bq_s"], params["bk_s"], params["bv_s"]],
                             axis=1)                                    # (1, 3E) f32
    wkv_c = jnp.concatenate([params["wk_c"], params["wv_c"]], axis=1).astype(bf16)
    bkv_c = jnp.concatenate([params["bk_c"], params["bv_c"]], axis=1)

    # Key padding as a tiny per-batch additive row; combined with attn_mask in-kernel.
    pad_add = jnp.where(padding_mask, jnp.float32(-1e30),
                        jnp.float32(0.0))[:, None, :]                   # (B, 1, Sk)
    attn_mask_f = attn_mask.astype(jnp.float32)                         # (S, Sk)

    def const(shape):
        # Grid-invariant operands (weights/biases/LN params/mask): single-buffer them
        # so they are not double-buffered in VMEM (matters at production E/F on v7x).
        idx = lambda b, _n=len(shape): (0,) * _n
        try:
            return pl.BlockSpec(shape, idx, pipeline_mode=pl.Buffered(1))
        except (TypeError, AttributeError):      # older jax: default buffering
            return pl.BlockSpec(shape, idx)

    # Advisory cost hint so XLA schedules neighbors around the custom call sensibly.
    flops = 2 * B * (S * E * 3 * E            # self qkv projection
                     + 2 * nhead * S * S * dh  # self scores + context
                     + S * E * E               # self out projection
                     + S * E * E               # cross q projection
                     + Sk * E * 2 * E          # cross kv projection
                     + 2 * nhead * S * Sk * dh  # cross scores + context
                     + S * E * E               # cross out projection
                     + 2 * S * E * F)          # FFN
    transcendentals = B * nhead * S * (S + Sk)
    act_bytes = 4 * (2 * x.size + encoder_out.size + attn_mask_f.size + pad_add.size)
    wgt_bytes = 2 * (wqkv_s.size + wkv_c.size + 3 * E * E + 2 * E * F)   # bf16 weights
    bias_bytes = 4 * (15 * E + F)                                        # f32 biases/LN
    cost = pl.CostEstimate(flops=flops, transcendentals=transcendentals,
                           bytes_accessed=act_bytes + wgt_bytes + bias_bytes)

    kernel = functools.partial(decoder_block_kernel, nhead=nhead)
    # TODO(synk): for production S/Sk (>= ~512) tile queries flash-style over an extra
    # grid axis (TQ~128-256) with running max/denominator scratch, stream K/V blocks,
    # and tile the FFN hidden dim; the monolithic per-batch body here targets short
    # sequences.  Also size vmem_limit_bytes from the buffer budget per generation
    # (v7x has only 64 MiB physical VMEM) instead of pinning it.
    return pl.pallas_call(
        kernel,
        out_shape=jax.ShapeDtypeStruct((B, S, E), x.dtype),
        grid=(B,),
        in_specs=[
            pl.BlockSpec((1, S, E), lambda b: (b, 0, 0)),     # x (per-batch tile)
            pl.BlockSpec((1, Sk, E), lambda b: (b, 0, 0)),    # encoder_out
            const((S, Sk)),                                   # shared additive mask
            pl.BlockSpec((1, 1, Sk), lambda b: (b, 0, 0)),    # per-batch key padding
            const((E, 3 * E)), const((1, 3 * E)),             # self qkv proj (bf16/f32)
            const((E, E)), const((1, E)),                     # self out proj
            const((E, E)), const((1, E)),                     # cross q proj
            const((E, 2 * E)), const((1, 2 * E)),             # cross kv proj
            const((E, E)), const((1, E)),                     # cross out proj
            const((1, E)), const((1, E)),                     # norm1
            const((1, E)), const((1, E)),                     # norm2
            const((1, E)), const((1, E)),                     # norm3
            const((E, F)), const((1, F)),                     # ff1
            const((F, E)), const((1, E)),                     # ff2
        ],
        out_specs=pl.BlockSpec((1, S, E), lambda b: (b, 0, 0)),
        compiler_params=pltpu.CompilerParams(
            dimension_semantics=("parallel",)),               # batch axis across TCs
        cost_estimate=cost,
    )(x, encoder_out, attn_mask_f, pad_add,
      wqkv_s, bqkv_s,
      params["wo_s"].astype(bf16), params["bo_s"],
      params["wq_c"].astype(bf16), params["bq_c"],
      wkv_c, bkv_c,
      params["wo_c"].astype(bf16), params["bo_c"],
      params["g1"], params["be1"], params["g2"], params["be2"],
      params["g3"], params["be3"],
      params["w1"].astype(bf16), params["bf1"],
      params["w2"].astype(bf16), params["bf2"])


def reference_decoder_block(x, enc, attn_mask, padding_mask, p, *, nhead,
                            mxu_dtype=jnp.float32):
    """Pure-JAX reference for the PyTorch forward (eval mode, post-norm).

    mxu_dtype=float32 reproduces the full-f32 PyTorch math; mxu_dtype=bfloat16 applies
    exactly the kernel's precision policy (bf16 matmul operands, f32 accumulation and
    f32 softmax / LayerNorm) so the kernel can be verified to tight tolerance.
    """
    B, S, E = x.shape
    dh = E // nhead
    pad = jnp.where(padding_mask, -1e30, 0.0)                         # (B, Sk)

    def mm(a, b):
        return jnp.dot(a.astype(mxu_dtype), b.astype(mxu_dtype),
                       preferred_element_type=jnp.float32)

    def mha(q_in, kv_in, wq, bq, wk, bk, wv, bv, wo, bo):
        Sq, Skv = q_in.shape[1], kv_in.shape[1]
        q = (mm(q_in, wq) + bq).reshape(B, Sq, nhead, dh)
        k = (mm(kv_in, wk) + bk).reshape(B, Skv, nhead, dh)
        v = (mm(kv_in, wv) + bv).reshape(B, Skv, nhead, dh)
        s = jnp.einsum("bqhd,bkhd->bhqk", q.astype(mxu_dtype), k.astype(mxu_dtype),
                       preferred_element_type=jnp.float32) / jnp.sqrt(float(dh))
        s = s + attn_mask[None, None] + pad[:, None, None, :]
        a = jax.nn.softmax(s, axis=-1)
        o = jnp.einsum("bhqk,bkhd->bqhd", a.astype(mxu_dtype), v.astype(mxu_dtype),
                       preferred_element_type=jnp.float32).reshape(B, Sq, E)
        return mm(o, wo) + bo

    def ln(z, g, b):
        mu = z.mean(-1, keepdims=True)
        var = ((z - mu) ** 2).mean(-1, keepdims=True)
        return (z - mu) * jax.lax.rsqrt(var + 1e-5) * g + b

    x = ln(x + mha(x, x, p["wq_s"], p["bq_s"], p["wk_s"], p["bk_s"],
                   p["wv_s"], p["bv_s"], p["wo_s"], p["bo_s"]), p["g1"], p["be1"])
    x = ln(x + mha(x, enc, p["wq_c"], p["bq_c"], p["wk_c"], p["bk_c"],
                   p["wv_c"], p["bv_c"], p["wo_c"], p["bo_c"]), p["g2"], p["be2"])
    h = jnp.maximum(mm(x, p["w1"]) + p["bf1"], 0.0)
    h = mm(h, p["w2"]) + p["bf2"]
    return ln(x + h, p["g3"], p["be3"])


def make_params(key, E, F):
    ks = iter(jax.random.split(key, 26))

    def rnd(shape, scale=0.1):
        return scale * jax.random.normal(next(ks), shape, jnp.float32)

    p = {}
    for tag in ("s", "c"):                      # self-attn / cross-attn
        for name in ("q", "k", "v", "o"):
            p[f"w{name}_{tag}"] = rnd((E, E))
            p[f"b{name}_{tag}"] = rnd((1, E))
    for i in (1, 2, 3):                         # LayerNorms
        p[f"g{i}"] = 1.0 + rnd((1, E))
        p[f"be{i}"] = rnd((1, E))
    p["w1"], p["bf1"] = rnd((E, F)), rnd((1, F))
    p["w2"], p["bf2"] = rnd((F, E)), rnd((1, E))
    return p


if __name__ == "__main__":
    # Scaled-down shapes consistent with the module (nhead=12/ndim=768/ff=2048).
    # E is a multiple of 128 so activation loads, FFN matmuls and output stores are
    # lane-dense (as they are at the real ndim=768).
    B, S, E, F, NHEAD = 2, 8, 128, 256, 4

    key = jax.random.PRNGKey(0)
    kx, ke, km, kp = jax.random.split(key, 4)

    x = jax.random.normal(kx, (B, S, E), jnp.float32)
    encoder_out = jax.random.normal(ke, (B, S, E), jnp.float32)
    attn_mask = 0.05 * jax.random.normal(km, (S, S), jnp.float32)   # additive float mask
    padding_mask = jnp.zeros((B, S), jnp.bool_).at[1, -2:].set(True)  # pad 2 keys, batch 1

    params = make_params(kp, E, F)

    out = decoder_block(x, encoder_out, attn_mask, padding_mask, params, nhead=NHEAD)
    out = jax.block_until_ready(out)

    # Tight check against a reference running the kernel's exact precision policy
    # (bf16 MXU operands, f32 accumulation / softmax / LayerNorm).
    ref_matched = reference_decoder_block(x, encoder_out, attn_mask, padding_mask,
                                          params, nhead=NHEAD, mxu_dtype=jnp.bfloat16)
    err_matched = float(jnp.max(jnp.abs(out - ref_matched)))
    assert err_matched < 2e-3, f"mismatch vs precision-matched reference: {err_matched}"

    # Loose sanity check against full-f32 PyTorch-equivalent math: the remaining gap
    # is the intended bf16-MXU precision policy, not an implementation error.
    ref_f32 = reference_decoder_block(x, encoder_out, attn_mask, padding_mask,
                                      params, nhead=NHEAD, mxu_dtype=jnp.float32)
    err_f32 = float(jnp.max(jnp.abs(out - ref_f32)))
    assert err_f32 < 1e-1, f"kernel deviates too far from f32 reference: {err_f32}"

    # TODO(synk): pre_norm=True ordering and training-mode dropout (pltpu.prng_*) are
    # not implemented; this kernel matches the module defaults (post-norm, eval).
    print("KERNEL_OK")
</pallas_src>

<mosaic_0001>
module attributes {stable_mosaic.version = 11 : i64} {
  func.func @decoder_block_kernel(%arg0: i32, %arg1: memref<1x8x128xf32, #tpu.memory_space<vmem>>, %arg2: memref<1x8x128xf32, #tpu.memory_space<vmem>>, %arg3: memref<8x8xf32, #tpu.memory_space<vmem>>, %arg4: memref<1x1x8xf32, #tpu.memory_space<vmem>>, %arg5: memref<128x384xbf16, #tpu.memory_space<vmem>>, %arg6: memref<1x384xf32, #tpu.memory_space<vmem>>, %arg7: memref<128x128xbf16, #tpu.memory_space<vmem>>, %arg8: memref<1x128xf32, #tpu.memory_space<vmem>>, %arg9: memref<128x128xbf16, #tpu.memory_space<vmem>>, %arg10: memref<1x128xf32, #tpu.memory_space<vmem>>, %arg11: memref<128x256xbf16, #tpu.memory_space<vmem>>, %arg12: memref<1x256xf32, #tpu.memory_space<vmem>>, %arg13: memref<128x128xbf16, #tpu.memory_space<vmem>>, %arg14: memref<1x128xf32, #tpu.memory_space<vmem>>, %arg15: memref<1x128xf32, #tpu.memory_space<vmem>>, %arg16: memref<1x128xf32, #tpu.memory_space<vmem>>, %arg17: memref<1x128xf32, #tpu.memory_space<vmem>>, %arg18: memref<1x128xf32, #tpu.memory_space<vmem>>, %arg19: memref<1x128xf32, #tpu.memory_space<vmem>>, %arg20: memref<1x128xf32, #tpu.memory_space<vmem>>, %arg21: memref<128x256xbf16, #tpu.memory_space<vmem>>, %arg22: memref<1x256xf32, #tpu.memory_space<vmem>>, %arg23: memref<256x128xbf16, #tpu.memory_space<vmem>>, %arg24: memref<1x128xf32, #tpu.memory_space<vmem>>, %arg25: memref<1x8x128xf32, #tpu.memory_space<vmem>>) attributes {dimension_semantics = [#tpu.dimension_semantics<parallel>], iteration_bounds = array<i64: 2>, scalar_prefetch = 0 : i64, scratch_operands = 0 : i64, tpu.core_type = #tpu.core_type<tc>, window_params = [{transform_indices = @transform_0, window_bounds = array<i64: 1, 8, 128>}, {transform_indices = @transform_1, window_bounds = array<i64: 1, 8, 128>}, {pipeline_mode = #tpu.pipeline_mode<synchronous>, transform_indices = @transform_2, window_bounds = array<i64: 8, 8>}, {transform_indices = @transform_3, window_bounds = array<i64: 1, 1, 8>}, {pipeline_mode = #tpu.pipeline_mode<synchronous>, transform_indices = @transform_4, window_bounds = array<i64: 128, 384>}, {pipeline_mode = #tpu.pipeline_mode<synchronous>, transform_indices = @transform_5, window_bounds = array<i64: 1, 384>}, {pipeline_mode = #tpu.pipeline_mode<synchronous>, transform_indices = @transform_6, window_bounds = array<i64: 128, 128>}, {pipeline_mode = #tpu.pipeline_mode<synchronous>, transform_indices = @transform_7, window_bounds = array<i64: 1, 128>}, {pipeline_mode = #tpu.pipeline_mode<synchronous>, transform_indices = @transform_8, window_bounds = array<i64: 128, 128>}, {pipeline_mode = #tpu.pipeline_mode<synchronous>, transform_indices = @transform_9, window_bounds = array<i64: 1, 128>}, {pipeline_mode = #tpu.pipeline_mode<synchronous>, transform_indices = @transform_10, window_bounds = array<i64: 128, 256>}, {pipeline_mode = #tpu.pipeline_mode<synchronous>, transform_indices = @transform_11, window_bounds = array<i64: 1, 256>}, {pipeline_mode = #tpu.pipeline_mode<synchronous>, transform_indices = @transform_12, window_bounds = array<i64: 128, 128>}, {pipeline_mode = #tpu.pipeline_mode<synchronous>, transform_indices = @transform_13, window_bounds = array<i64: 1, 128>}, {pipeline_mode = #tpu.pipeline_mode<synchronous>, transform_indices = @transform_14, window_bounds = array<i64: 1, 128>}, {pipeline_mode = #tpu.pipeline_mode<synchronous>, transform_indices = @transform_15, window_bounds = array<i64: 1, 128>}, {pipeline_mode = #tpu.pipeline_mode<synchronous>, transform_indices = @transform_16, window_bounds = array<i64: 1, 128>}, {pipeline_mode = #tpu.pipeline_mode<synchronous>, transform_indices = @transform_17, window_bounds = array<i64: 1, 128>}, {pipeline_mode = #tpu.pipeline_mode<synchronous>, transform_indices = @transform_18, window_bounds = array<i64: 1, 128>}, {pipeline_mode = #tpu.pipeline_mode<synchronous>, transform_indices = @transform_19, window_bounds = array<i64: 1, 128>}, {pipeline_mode = #tpu.pipeline_mode<synchronous>, transform_indices = @transform_20, window_bounds = array<i64: 128, 256>}, {pipeline_mode = #tpu.pipeline_mode<synchronous>, transform_indices = @transform_21, window_bounds = array<i64: 1, 256>}, {pipeline_mode = #tpu.pipeline_mode<synchronous>, transform_indices = @transform_22, window_bounds = array<i64: 256, 128>}, {pipeline_mode = #tpu.pipeline_mode<synchronous>, transform_indices = @transform_23, window_bounds = array<i64: 1, 128>}, {transform_indices = @transform_24, window_bounds = array<i64: 1, 8, 128>}]} {
    %c0 = arith.constant 0 : index
    %c0_0 = arith.constant 0 : index
    %c0_1 = arith.constant 0 : index
    %0 = vector.load %arg1[%c0, %c0_0, %c0_1] : memref<1x8x128xf32, #tpu.memory_space<vmem>>, vector<1x8x128xf32>
    %1 = vector.shape_cast %0 : vector<1x8x128xf32> to vector<8x128xf32>
    %c0_2 = arith.constant 0 : index
    %c0_3 = arith.constant 0 : index
    %2 = vector.load %arg3[%c0_2, %c0_3] : memref<8x8xf32, #tpu.memory_space<vmem>>, vector<8x8xf32>
    %c0_4 = arith.constant 0 : index
    %c0_5 = arith.constant 0 : index
    %c0_6 = arith.constant 0 : index
    %3 = vector.load %arg4[%c0_4, %c0_5, %c0_6] : memref<1x1x8xf32, #tpu.memory_space<vmem>>, vector<1x1x8xf32>
    %4 = vector.shape_cast %3 : vector<1x1x8xf32> to vector<1x8xf32>
    %5 = vector.broadcast %4 : vector<1x8xf32> to vector<8x8xf32>
    %6 = arith.addf %2, %5 : vector<8x8xf32>
    %7 = arith.truncf %1 : vector<8x128xf32> to vector<8x128xbf16>
    %c0_7 = arith.constant 0 : index
    %c0_8 = arith.constant 0 : index
    %8 = vector.load %arg5[%c0_7, %c0_8] : memref<128x384xbf16, #tpu.memory_space<vmem>>, vector<128x384xbf16>
    %cst = arith.constant dense<0.000000e+00> : vector<8x384xf32>
    %9 = tpu.matmul %7, %8, %cst {dimension_numbers = #tpu.dot_dimension_numbers<[1], [0], [0], [1], [0, 0, 1, 1], [], []>} : vector<8x128xbf16>, vector<128x384xbf16>, vector<8x384xf32> -> vector<8x384xf32>
    %c0_9 = arith.constant 0 : index
    %c0_10 = arith.constant 0 : index
    %10 = vector.load %arg6[%c0_9, %c0_10] : memref<1x384xf32, #tpu.memory_space<vmem>>, vector<1x384xf32>
    %11 = vector.broadcast %10 : vector<1x384xf32> to vector<8x384xf32>
    %12 = arith.addf %9, %11 : vector<8x384xf32>
    %13 = vector.extract_strided_slice %12 {offsets = [0, 0], sizes = [8, 128], strides = [1, 1]} : vector<8x384xf32> to vector<8x128xf32>
    %14 = vector.extract_strided_slice %12 {offsets = [0, 128], sizes = [8, 128], strides = [1, 1]} : vector<8x384xf32> to vector<8x128xf32>
    %15 = vector.extract_strided_slice %12 {offsets = [0, 256], sizes = [8, 128], strides = [1, 1]} : vector<8x384xf32> to vector<8x128xf32>
    %16 = arith.truncf %13 : vector<8x128xf32> to vector<8x128xbf16>
    %17 = arith.truncf %14 : vector<8x128xf32> to vector<8x128xbf16>
    %18 = arith.truncf %15 : vector<8x128xf32> to vector<8x128xbf16>
    %19 = vector.extract_strided_slice %16 {offsets = [0, 0], sizes = [8, 32], strides = [1, 1]} : vector<8x128xbf16> to vector<8x32xbf16>
    %20 = vector.extract_strided_slice %17 {offsets = [0, 0], sizes = [8, 32], strides = [1, 1]} : vector<8x128xbf16> to vector<8x32xbf16>
    "tpu.trace_start"() <{level = 10 : i32, message = "qd,kd->qk"}> : () -> ()
    %cst_11 = arith.constant dense<0.000000e+00> : vector<8x8xf32>
    %21 = tpu.matmul %19, %20, %cst_11 {dimension_numbers = #tpu.dot_dimension_numbers<[1], [1], [0], [0], [0, 0, 1, 0], [], []>} : vector<8x32xbf16>, vector<8x32xbf16>, vector<8x8xf32> -> vector<8x8xf32>
    "tpu.trace_stop"() : () -> ()
    %cst_12 = arith.constant 0.176776692 : f32
    %22 = vector.broadcast %cst_12 : f32 to vector<8x8xf32>
    %23 = arith.mulf %21, %22 : vector<8x8xf32>
    %24 = arith.addf %23, %6 : vector<8x8xf32>
    %cst_13 = arith.constant dense<0xFF800000> : vector<8xf32>
    %25 = vector.multi_reduction <maximumf>, %24, %cst_13 [1] : vector<8x8xf32> to vector<8xf32>
    %26 = vector.shape_cast %25 : vector<8xf32> to vector<8x1xf32>
    %27 = vector.broadcast %26 : vector<8x1xf32> to vector<8x8xf32>
    %28 = arith.subf %24, %27 : vector<8x8xf32>
    %29 = math.exp %28 : vector<8x8xf32>
    %cst_14 = arith.constant dense<0.000000e+00> : vector<8xf32>
    %30 = vector.multi_reduction <add>, %29, %cst_14 [1] : vector<8x8xf32> to vector<8xf32>
    %31 = vector.shape_cast %30 : vector<8xf32> to vector<8x1xf32>
    %32 = vector.broadcast %31 : vector<8x1xf32> to vector<8x8xf32>
    %33 = arith.divf %29, %32 : vector<8x8xf32>
    %34 = arith.truncf %33 : vector<8x8xf32> to vector<8x8xbf16>
    %35 = vector.extract_strided_slice %18 {offsets = [0, 0], sizes = [8, 32], strides = [1, 1]} : vector<8x128xbf16> to vector<8x32xbf16>
    %cst_15 = arith.constant dense<0.000000e+00> : vector<8x32xf32>
    %36 = tpu.matmul %34, %35, %cst_15 {dimension_numbers = #tpu.dot_dimension_numbers<[1], [0], [0], [1], [0, 0, 1, 1], [], []>} : vector<8x8xbf16>, vector<8x32xbf16>, vector<8x32xf32> -> vector<8x32xf32>
    %37 = arith.truncf %36 : vector<8x32xf32> to vector<8x32xbf16>
    %38 = vector.extract_strided_slice %16 {offsets = [0, 32], sizes = [8, 32], strides = [1, 1]} : vector<8x128xbf16> to vector<8x32xbf16>
    %39 = vector.extract_strided_slice %17 {offsets = [0, 32], sizes = [8, 32], strides = [1, 1]} : vector<8x128xbf16> to vector<8x32xbf16>
    "tpu.trace_start"() <{level = 10 : i32, message = "qd,kd->qk"}> : () -> ()
    %cst_16 = arith.constant dense<0.000000e+00> : vector<8x8xf32>
    %40 = tpu.matmul %38, %39, %cst_16 {dimension_numbers = #tpu.dot_dimension_numbers<[1], [1], [0], [0], [0, 0, 1, 0], [], []>} : vector<8x32xbf16>, vector<8x32xbf16>, vector<8x8xf32> -> vector<8x8xf32>
    "tpu.trace_stop"() : () -> ()
    %cst_17 = arith.constant 0.176776692 : f32
    %41 = vector.broadcast %cst_17 : f32 to vector<8x8xf32>
    %42 = arith.mulf %40, %41 : vector<8x8xf32>
    %43 = arith.addf %42, %6 : vector<8x8xf32>
    %cst_18 = arith.constant dense<0xFF800000> : vector<8xf32>
    %44 = vector.multi_reduction <maximumf>, %43, %cst_18 [1] : vector<8x8xf32> to vector<8xf32>
    %45 = vector.shape_cast %44 : vector<8xf32> to vector<8x1xf32>
    %46 = vector.broadcast %45 : vector<8x1xf32> to vector<8x8xf32>
    %47 = arith.subf %43, %46 : vector<8x8xf32>
    %48 = math.exp %47 : vector<8x8xf32>
    %cst_19 = arith.constant dense<0.000000e+00> : vector<8xf32>
    %49 = vector.multi_reduction <add>, %48, %cst_19 [1] : vector<8x8xf32> to vector<8xf32>
    %50 = vector.shape_cast %49 : vector<8xf32> to vector<8x1xf32>
    %51 = vector.broadcast %50 : vector<8x1xf32> to vector<8x8xf32>
    %52 = arith.divf %48, %51 : vector<8x8xf32>
    %53 = arith.truncf %52 : vector<8x8xf32> to vector<8x8xbf16>
    %54 = vector.extract_strided_slice %18 {offsets = [0, 32], sizes = [8, 32], strides = [1, 1]} : vector<8x128xbf16> to vector<8x32xbf16>
    %cst_20 = arith.constant dense<0.000000e+00> : vector<8x32xf32>
    %55 = tpu.matmul %53, %54, %cst_20 {dimension_numbers = #tpu.dot_dimension_numbers<[1], [0], [0], [1], [0, 0, 1, 1], [], []>} : vector<8x8xbf16>, vector<8x32xbf16>, vector<8x32xf32> -> vector<8x32xf32>
    %56 = arith.truncf %55 : vector<8x32xf32> to vector<8x32xbf16>
    %57 = vector.extract_strided_slice %16 {offsets = [0, 64], sizes = [8, 32], strides = [1, 1]} : vector<8x128xbf16> to vector<8x32xbf16>
    %58 = vector.extract_strided_slice %17 {offsets = [0, 64], sizes = [8, 32], strides = [1, 1]} : vector<8x128xbf16> to vector<8x32xbf16>
    "tpu.trace_start"() <{level = 10 : i32, message = "qd,kd->qk"}> : () -> ()
    %cst_21 = arith.constant dense<0.000000e+00> : vector<8x8xf32>
    %59 = tpu.matmul %57, %58, %cst_21 {dimension_numbers = #tpu.dot_dimension_numbers<[1], [1], [0], [0], [0, 0, 1, 0], [], []>} : vector<8x32xbf16>, vector<8x32xbf16>, vector<8x8xf32> -> vector<8x8xf32>
    "tpu.trace_stop"() : () -> ()
    %cst_22 = arith.constant 0.176776692 : f32
    %60 = vector.broadcast %cst_22 : f32 to vector<8x8xf32>
    %61 = arith.mulf %59, %60 : vector<8x8xf32>
    %62 = arith.addf %61, %6 : vector<8x8xf32>
    %cst_23 = arith.constant dense<0xFF800000> : vector<8xf32>
    %63 = vector.multi_reduction <maximumf>, %62, %cst_23 [1] : vector<8x8xf32> to vector<8xf32>
    %64 = vector.shape_cast %63 : vector<8xf32> to vector<8x1xf32>
    %65 = vector.broadcast %64 : vector<8x1xf32> to vector<8x8xf32>
    %66 = arith.subf %62, %65 : vector<8x8xf32>
    %67 = math.exp %66 : vector<8x8xf32>
    %cst_24 = arith.constant dense<0.000000e+00> : vector<8xf32>
    %68 = vector.multi_reduction <add>, %67, %cst_24 [1] : vector<8x8xf32> to vector<8xf32>
    %69 = vector.shape_cast %68 : vector<8xf32> to vector<8x1xf32>
    %70 = vector.broadcast %69 : vector<8x1xf32> to vector<8x8xf32>
    %71 = arith.divf %67, %70 : vector<8x8xf32>
    %72 = arith.truncf %71 : vector<8x8xf32> to vector<8x8xbf16>
    %73 = vector.extract_strided_slice %18 {offsets = [0, 64], sizes = [8, 32], strides = [1, 1]} : vector<8x128xbf16> to vector<8x32xbf16>
    %cst_25 = arith.constant dense<0.000000e+00> : vector<8x32xf32>
    %74 = tpu.matmul %72, %73, %cst_25 {dimension_numbers = #tpu.dot_dimension_numbers<[1], [0], [0], [1], [0, 0, 1, 1], [], []>} : vector<8x8xbf16>, vector<8x32xbf16>, vector<8x32xf32> -> vector<8x32xf32>
    %75 = arith.truncf %74 : vector<8x32xf32> to vector<8x32xbf16>
    %76 = vector.extract_strided_slice %16 {offsets = [0, 96], sizes = [8, 32], strides = [1, 1]} : vector<8x128xbf16> to vector<8x32xbf16>
    %77 = vector.extract_strided_slice %17 {offsets = [0, 96], sizes = [8, 32], strides = [1, 1]} : vector<8x128xbf16> to vector<8x32xbf16>
    "tpu.trace_start"() <{level = 10 : i32, message = "qd,kd->qk"}> : () -> ()
    %cst_26 = arith.constant dense<0.000000e+00> : vector<8x8xf32>
    %78 = tpu.matmul %76, %77, %cst_26 {dimension_numbers = #tpu.dot_dimension_numbers<[1], [1], [0], [0], [0, 0, 1, 0], [], []>} : vector<8x32xbf16>, vector<8x32xbf16>, vector<8x8xf32> -> vector<8x8xf32>
    "tpu.trace_stop"() : () -> ()
    %cst_27 = arith.constant 0.176776692 : f32
    %79 = vector.broadcast %cst_27 : f32 to vector<8x8xf32>
    %80 = arith.mulf %78, %79 : vector<8x8xf32>
    %81 = arith.addf %80, %6 : vector<8x8xf32>
    %cst_28 = arith.constant dense<0xFF800000> : vector<8xf32>
    %82 = vector.multi_reduction <maximumf>, %81, %cst_28 [1] : vector<8x8xf32> to vector<8xf32>
    %83 = vector.shape_cast %82 : vector<8xf32> to vector<8x1xf32>
    %84 = vector.broadcast %83 : vector<8x1xf32> to vector<8x8xf32>
    %85 = arith.subf %81, %84 : vector<8x8xf32>
    %86 = math.exp %85 : vector<8x8xf32>
    %cst_29 = arith.constant dense<0.000000e+00> : vector<8xf32>
    %87 = vector.multi_reduction <add>, %86, %cst_29 [1] : vector<8x8xf32> to vector<8xf32>
    %88 = vector.shape_cast %87 : vector<8xf32> to vector<8x1xf32>
    %89 = vector.broadcast %88 : vector<8x1xf32> to vector<8x8xf32>
    %90 = arith.divf %86, %89 : vector<8x8xf32>
    %91 = arith.truncf %90 : vector<8x8xf32> to vector<8x8xbf16>
    %92 = vector.extract_strided_slice %18 {offsets = [0, 96], sizes = [8, 32], strides = [1, 1]} : vector<8x128xbf16> to vector<8x32xbf16>
    %cst_30 = arith.constant dense<0.000000e+00> : vector<8x32xf32>
    %93 = tpu.matmul %91, %92, %cst_30 {dimension_numbers = #tpu.dot_dimension_numbers<[1], [0], [0], [1], [0, 0, 1, 1], [], []>} : vector<8x8xbf16>, vector<8x32xbf16>, vector<8x32xf32> -> vector<8x32xf32>
    %94 = arith.truncf %93 : vector<8x32xf32> to vector<8x32xbf16>
    %95 = tpu.concatenate %37, %56, %75, %94 in 1 : vector<8x32xbf16>, vector<8x32xbf16>, vector<8x32xbf16>, vector<8x32xbf16> -> vector<8x128xbf16>
    %c0_31 = arith.constant 0 : index
    %c0_32 = arith.constant 0 : index
    %96 = vector.load %arg7[%c0_31, %c0_32] : memref<128x128xbf16, #tpu.memory_space<vmem>>, vector<128x128xbf16>
    %cst_33 = arith.constant dense<0.000000e+00> : vector<8x128xf32>
    %97 = tpu.matmul %95, %96, %cst_33 {dimension_numbers = #tpu.dot_dimension_numbers<[1], [0], [0], [1], [0, 0, 1, 1], [], []>} : vector<8x128xbf16>, vector<128x128xbf16>, vector<8x128xf32> -> vector<8x128xf32>
    %c0_34 = arith.constant 0 : index
    %c0_35 = arith.constant 0 : index
    %98 = vector.load %arg8[%c0_34, %c0_35] : memref<1x128xf32, #tpu.memory_space<vmem>>, vector<1x128xf32>
    %99 = vector.broadcast %98 : vector<1x128xf32> to vector<8x128xf32>
    %100 = arith.addf %97, %99 : vector<8x128xf32>
    %101 = arith.addf %1, %100 : vector<8x128xf32>
    %c0_36 = arith.constant 0 : index
    %c0_37 = arith.constant 0 : index
    %102 = vector.load %arg15[%c0_36, %c0_37] : memref<1x128xf32, #tpu.memory_space<vmem>>, vector<1x128xf32>
    %c0_38 = arith.constant 0 : index
    %c0_39 = arith.constant 0 : index
    %103 = vector.load %arg16[%c0_38, %c0_39] : memref<1x128xf32, #tpu.memory_space<vmem>>, vector<1x128xf32>
    %cst_40 = arith.constant dense<0.000000e+00> : vector<8xf32>
    %104 = vector.multi_reduction <add>, %101, %cst_40 [1] : vector<8x128xf32> to vector<8xf32>
    %105 = vector.shape_cast %104 : vector<8xf32> to vector<8x1xf32>
    %cst_41 = arith.constant 1.280000e+02 : f32
    %106 = vector.broadcast %cst_41 : f32 to vector<8x1xf32>
    %107 = arith.divf %105, %106 : vector<8x1xf32>
    %108 = vector.broadcast %107 : vector<8x1xf32> to vector<8x128xf32>
    %109 = arith.subf %101, %108 : vector<8x128xf32>
    %110 = arith.mulf %109, %109 : vector<8x128xf32>
    %cst_42 = arith.constant dense<0.000000e+00> : vector<8xf32>
    %111 = vector.multi_reduction <add>, %110, %cst_42 [1] : vector<8x128xf32> to vector<8xf32>
    %112 = vector.shape_cast %111 : vector<8xf32> to vector<8x1xf32>
    %cst_43 = arith.constant 1.280000e+02 : f32
    %113 = vector.broadcast %cst_43 : f32 to vector<8x1xf32>
    %114 = arith.divf %112, %113 : vector<8x1xf32>
    %115 = vector.broadcast %107 : vector<8x1xf32> to vector<8x128xf32>
    %116 = arith.subf %101, %115 : vector<8x128xf32>
    %cst_44 = arith.constant 9.99999974E-6 : f32
    %117 = vector.broadcast %cst_44 : f32 to vector<8x1xf32>
    %118 = arith.addf %114, %117 : vector<8x1xf32>
    %119 = math.rsqrt %118 : vector<8x1xf32>
    %120 = vector.broadcast %119 : vector<8x1xf32> to vector<8x128xf32>
    %121 = arith.mulf %116, %120 : vector<8x128xf32>
    %122 = vector.broadcast %102 : vector<1x128xf32> to vector<8x128xf32>
    %123 = arith.mulf %121, %122 : vector<8x128xf32>
    %124 = vector.broadcast %103 : vector<1x128xf32> to vector<8x128xf32>
    %125 = arith.addf %123, %124 : vector<8x128xf32>
    %126 = arith.truncf %125 : vector<8x128xf32> to vector<8x128xbf16>
    %c0_45 = arith.constant 0 : index
    %c0_46 = arith.constant 0 : index
    %127 = vector.load %arg9[%c0_45, %c0_46] : memref<128x128xbf16, #tpu.memory_space<vmem>>, vector<128x128xbf16>
    %cst_47 = arith.constant dense<0.000000e+00> : vector<8x128xf32>
    %128 = tpu.matmul %126, %127, %cst_47 {dimension_numbers = #tpu.dot_dimension_numbers<[1], [0], [0], [1], [0, 0, 1, 1], [], []>} : vector<8x128xbf16>, vector<128x128xbf16>, vector<8x128xf32> -> vector<8x128xf32>
    %c0_48 = arith.constant 0 : index
    %c0_49 = arith.constant 0 : index
    %129 = vector.load %arg10[%c0_48, %c0_49] : memref<1x128xf32, #tpu.memory_space<vmem>>, vector<1x128xf32>
    %130 = vector.broadcast %129 : vector<1x128xf32> to vector<8x128xf32>
    %131 = arith.addf %128, %130 : vector<8x128xf32>
    %c0_50 = arith.constant 0 : index
    %c0_51 = arith.constant 0 : index
    %c0_52 = arith.constant 0 : index
    %132 = vector.load %arg2[%c0_50, %c0_51, %c0_52] : memref<1x8x128xf32, #tpu.memory_space<vmem>>, vector<1x8x128xf32>
    %133 = vector.shape_cast %132 : vector<1x8x128xf32> to vector<8x128xf32>
    %134 = arith.truncf %133 : vector<8x128xf32> to vector<8x128xbf16>
    %c0_53 = arith.constant 0 : index
    %c0_54 = arith.constant 0 : index
    %135 = vector.load %arg11[%c0_53, %c0_54] : memref<128x256xbf16, #tpu.memory_space<vmem>>, vector<128x256xbf16>
    %cst_55 = arith.constant dense<0.000000e+00> : vector<8x256xf32>
    %136 = tpu.matmul %134, %135, %cst_55 {dimension_numbers = #tpu.dot_dimension_numbers<[1], [0], [0], [1], [0, 0, 1, 1], [], []>} : vector<8x128xbf16>, vector<128x256xbf16>, vector<8x256xf32> -> vector<8x256xf32>
    %c0_56 = arith.constant 0 : index
    %c0_57 = arith.constant 0 : index
    %137 = vector.load %arg12[%c0_56, %c0_57] : memref<1x256xf32, #tpu.memory_space<vmem>>, vector<1x256xf32>
    %138 = vector.broadcast %137 : vector<1x256xf32> to vector<8x256xf32>
    %139 = arith.addf %136, %138 : vector<8x256xf32>
    %140 = vector.extract_strided_slice %139 {offsets = [0, 0], sizes = [8, 128], strides = [1, 1]} : vector<8x256xf32> to vector<8x128xf32>
    %141 = vector.extract_strided_slice %139 {offsets = [0, 128], sizes = [8, 128], strides = [1, 1]} : vector<8x256xf32> to vector<8x128xf32>
    %142 = arith.truncf %131 : vector<8x128xf32> to vector<8x128xbf16>
    %143 = arith.truncf %140 : vector<8x128xf32> to vector<8x128xbf16>
    %144 = arith.truncf %141 : vector<8x128xf32> to vector<8x128xbf16>
    %145 = vector.extract_strided_slice %142 {offsets = [0, 0], sizes = [8, 32], strides = [1, 1]} : vector<8x128xbf16> to vector<8x32xbf16>
    %146 = vector.extract_strided_slice %143 {offsets = [0, 0], sizes = [8, 32], strides = [1, 1]} : vector<8x128xbf16> to vector<8x32xbf16>
    "tpu.trace_start"() <{level = 10 : i32, message = "qd,kd->qk"}> : () -> ()
    %cst_58 = arith.constant dense<0.000000e+00> : vector<8x8xf32>
    %147 = tpu.matmul %145, %146, %cst_58 {dimension_numbers = #tpu.dot_dimension_numbers<[1], [1], [0], [0], [0, 0, 1, 0], [], []>} : vector<8x32xbf16>, vector<8x32xbf16>, vector<8x8xf32> -> vector<8x8xf32>
    "tpu.trace_stop"() : () -> ()
    %cst_59 = arith.constant 0.176776692 : f32
    %148 = vector.broadcast %cst_59 : f32 to vector<8x8xf32>
    %149 = arith.mulf %147, %148 : vector<8x8xf32>
    %150 = arith.addf %149, %6 : vector<8x8xf32>
    %cst_60 = arith.constant dense<0xFF800000> : vector<8xf32>
    %151 = vector.multi_reduction <maximumf>, %150, %cst_60 [1] : vector<8x8xf32> to vector<8xf32>
    %152 = vector.shape_cast %151 : vector<8xf32> to vector<8x1xf32>
    %153 = vector.broadcast %152 : vector<8x1xf32> to vector<8x8xf32>
    %154 = arith.subf %150, %153 : vector<8x8xf32>
    %155 = math.exp %154 : vector<8x8xf32>
    %cst_61 = arith.constant dense<0.000000e+00> : vector<8xf32>
    %156 = vector.multi_reduction <add>, %155, %cst_61 [1] : vector<8x8xf32> to vector<8xf32>
    %157 = vector.shape_cast %156 : vector<8xf32> to vector<8x1xf32>
    %158 = vector.broadcast %157 : vector<8x1xf32> to vector<8x8xf32>
    %159 = arith.divf %155, %158 : vector<8x8xf32>
    %160 = arith.truncf %159 : vector<8x8xf32> to vector<8x8xbf16>
    %161 = vector.extract_strided_slice %144 {offsets = [0, 0], sizes = [8, 32], strides = [1, 1]} : vector<8x128xbf16> to vector<8x32xbf16>
    %cst_62 = arith.constant dense<0.000000e+00> : vector<8x32xf32>
    %162 = tpu.matmul %160, %161, %cst_62 {dimension_numbers = #tpu.dot_dimension_numbers<[1], [0], [0], [1], [0, 0, 1, 1], [], []>} : vector<8x8xbf16>, vector<8x32xbf16>, vector<8x32xf32> -> vector<8x32xf32>
    %163 = arith.truncf %162 : vector<8x32xf32> to vector<8x32xbf16>
    %164 = vector.extract_strided_slice %142 {offsets = [0, 32], sizes = [8, 32], strides = [1, 1]} : vector<8x128xbf16> to vector<8x32xbf16>
    %165 = vector.extract_strided_slice %143 {offsets = [0, 32], sizes = [8, 32], strides = [1, 1]} : vector<8x128xbf16> to vector<8x32xbf16>
    "tpu.trace_start"() <{level = 10 : i32, message = "qd,kd->qk"}> : () -> ()
    %cst_63 = arith.constant dense<0.000000e+00> : vector<8x8xf32>
    %166 = tpu.matmul %164, %165, %cst_63 {dimension_numbers = #tpu.dot_dimension_numbers<[1], [1], [0], [0], [0, 0, 1, 0], [], []>} : vector<8x32xbf16>, vector<8x32xbf16>, vector<8x8xf32> -> vector<8x8xf32>
    "tpu.trace_stop"() : () -> ()
    %cst_64 = arith.constant 0.176776692 : f32
    %167 = vector.broadcast %cst_64 : f32 to vector<8x8xf32>
    %168 = arith.mulf %166, %167 : vector<8x8xf32>
    %169 = arith.addf %168, %6 : vector<8x8xf32>
    %cst_65 = arith.constant dense<0xFF800000> : vector<8xf32>
    %170 = vector.multi_reduction <maximumf>, %169, %cst_65 [1] : vector<8x8xf32> to vector<8xf32>
    %171 = vector.shape_cast %170 : vector<8xf32> to vector<8x1xf32>
    %172 = vector.broadcast %171 : vector<8x1xf32> to vector<8x8xf32>
    %173 = arith.subf %169, %172 : vector<8x8xf32>
    %174 = math.exp %173 : vector<8x8xf32>
    %cst_66 = arith.constant dense<0.000000e+00> : vector<8xf32>
    %175 = vector.multi_reduction <add>, %174, %cst_66 [1] : vector<8x8xf32> to vector<8xf32>
    %176 = vector.shape_cast %175 : vector<8xf32> to vector<8x1xf32>
    %177 = vector.broadcast %176 : vector<8x1xf32> to vector<8x8xf32>
    %178 = arith.divf %174, %177 : vector<8x8xf32>
    %179 = arith.truncf %178 : vector<8x8xf32> to vector<8x8xbf16>
    %180 = vector.extract_strided_slice %144 {offsets = [0, 32], sizes = [8, 32], strides = [1, 1]} : vector<8x128xbf16> to vector<8x32xbf16>
    %cst_67 = arith.constant dense<0.000000e+00> : vector<8x32xf32>
    %181 = tpu.matmul %179, %180, %cst_67 {dimension_numbers = #tpu.dot_dimension_numbers<[1], [0], [0], [1], [0, 0, 1, 1], [], []>} : vector<8x8xbf16>, vector<8x32xbf16>, vector<8x32xf32> -> vector<8x32xf32>
    %182 = arith.truncf %181 : vector<8x32xf32> to vector<8x32xbf16>
    %183 = vector.extract_strided_slice %142 {offsets = [0, 64], sizes = [8, 32], strides = [1, 1]} : vector<8x128xbf16> to vector<8x32xbf16>
    %184 = vector.extract_strided_slice %143 {offsets = [0, 64], sizes = [8, 32], strides = [1, 1]} : vector<8x128xbf16> to vector<8x32xbf16>
    "tpu.trace_start"() <{level = 10 : i32, message = "qd,kd->qk"}> : () -> ()
    %cst_68 = arith.constant dense<0.000000e+00> : vector<8x8xf32>
    %185 = tpu.matmul %183, %184, %cst_68 {dimension_numbers = #tpu.dot_dimension_numbers<[1], [1], [0], [0], [0, 0, 1, 0], [], []>} : vector<8x32xbf16>, vector<8x32xbf16>, vector<8x8xf32> -> vector<8x8xf32>
    "tpu.trace_stop"() : () -> ()
    %cst_69 = arith.constant 0.176776692 : f32
    %186 = vector.broadcast %cst_69 : f32 to vector<8x8xf32>
    %187 = arith.mulf %185, %186 : vector<8x8xf32>
    %188 = arith.addf %187, %6 : vector<8x8xf32>
    %cst_70 = arith.constant dense<0xFF800000> : vector<8xf32>
    %189 = vector.multi_reduction <maximumf>, %188, %cst_70 [1] : vector<8x8xf32> to vector<8xf32>
    %190 = vector.shape_cast %189 : vector<8xf32> to vector<8x1xf32>
    %191 = vector.broadcast %190 : vector<8x1xf32> to vector<8x8xf32>
    %192 = arith.subf %188, %191 : vector<8x8xf32>
    %193 = math.exp %192 : vector<8x8xf32>
    %cst_71 = arith.constant dense<0.000000e+00> : vector<8xf32>
    %194 = vector.multi_reduction <add>, %193, %cst_71 [1] : vector<8x8xf32> to vector<8xf32>
    %195 = vector.shape_cast %194 : vector<8xf32> to vector<8x1xf32>
    %196 = vector.broadcast %195 : vector<8x1xf32> to vector<8x8xf32>
    %197 = arith.divf %193, %196 : vector<8x8xf32>
    %198 = arith.truncf %197 : vector<8x8xf32> to vector<8x8xbf16>
    %199 = vector.extract_strided_slice %144 {offsets = [0, 64], sizes = [8, 32], strides = [1, 1]} : vector<8x128xbf16> to vector<8x32xbf16>
    %cst_72 = arith.constant dense<0.000000e+00> : vector<8x32xf32>
    %200 = tpu.matmul %198, %199, %cst_72 {dimension_numbers = #tpu.dot_dimension_numbers<[1], [0], [0], [1], [0, 0, 1, 1], [], []>} : vector<8x8xbf16>, vector<8x32xbf16>, vector<8x32xf32> -> vector<8x32xf32>
    %201 = arith.truncf %200 : vector<8x32xf32> to vector<8x32xbf16>
    %202 = vector.extract_strided_slice %142 {offsets = [0, 96], sizes = [8, 32], strides = [1, 1]} : vector<8x128xbf16> to vector<8x32xbf16>
    %203 = vector.extract_strided_slice %143 {offsets = [0, 96], sizes = [8, 32], strides = [1, 1]} : vector<8x128xbf16> to vector<8x32xbf16>
    "tpu.trace_start"() <{level = 10 : i32, message = "qd,kd->qk"}> : () -> ()
    %cst_73 = arith.constant dense<0.000000e+00> : vector<8x8xf32>
    %204 = tpu.matmul %202, %203, %cst_73 {dimension_numbers = #tpu.dot_dimension_numbers<[1], [1], [0], [0], [0, 0, 1, 0], [], []>} : vector<8x32xbf16>, vector<8x32xbf16>, vector<8x8xf32> -> vector<8x8xf32>
    "tpu.trace_stop"() : () -> ()
    %cst_74 = arith.constant 0.176776692 : f32
    %205 = vector.broadcast %cst_74 : f32 to vector<8x8xf32>
    %206 = arith.mulf %204, %205 : vector<8x8xf32>
    %207 = arith.addf %206, %6 : vector<8x8xf32>
    %cst_75 = arith.constant dense<0xFF800000> : vector<8xf32>
    %208 = vector.multi_reduction <maximumf>, %207, %cst_75 [1] : vector<8x8xf32> to vector<8xf32>
    %209 = vector.shape_cast %208 : vector<8xf32> to vector<8x1xf32>
    %210 = vector.broadcast %209 : vector<8x1xf32> to vector<8x8xf32>
    %211 = arith.subf %207, %210 : vector<8x8xf32>
    %212 = math.exp %211 : vector<8x8xf32>
    %cst_76 = arith.constant dense<0.000000e+00> : vector<8xf32>
    %213 = vector.multi_reduction <add>, %212, %cst_76 [1] : vector<8x8xf32> to vector<8xf32>
    %214 = vector.shape_cast %213 : vector<8xf32> to vector<8x1xf32>
    %215 = vector.broadcast %214 : vector<8x1xf32> to vector<8x8xf32>
    %216 = arith.divf %212, %215 : vector<8x8xf32>
    %217 = arith.truncf %216 : vector<8x8xf32> to vector<8x8xbf16>
    %218 = vector.extract_strided_slice %144 {offsets = [0, 96], sizes = [8, 32], strides = [1, 1]} : vector<8x128xbf16> to vector<8x32xbf16>
    %cst_77 = arith.constant dense<0.000000e+00> : vector<8x32xf32>
    %219 = tpu.matmul %217, %218, %cst_77 {dimension_numbers = #tpu.dot_dimension_numbers<[1], [0], [0], [1], [0, 0, 1, 1], [], []>} : vector<8x8xbf16>, vector<8x32xbf16>, vector<8x32xf32> -> vector<8x32xf32>
    %220 = arith.truncf %219 : vector<8x32xf32> to vector<8x32xbf16>
    %221 = tpu.concatenate %163, %182, %201, %220 in 1 : vector<8x32xbf16>, vector<8x32xbf16>, vector<8x32xbf16>, vector<8x32xbf16> -> vector<8x128xbf16>
    %c0_78 = arith.constant 0 : index
    %c0_79 = arith.constant 0 : index
    %222 = vector.load %arg13[%c0_78, %c0_79] : memref<128x128xbf16, #tpu.memory_space<vmem>>, vector<128x128xbf16>
    %cst_80 = arith.constant dense<0.000000e+00> : vector<8x128xf32>
    %223 = tpu.matmul %221, %222, %cst_80 {dimension_numbers = #tpu.dot_dimension_numbers<[1], [0], [0], [1], [0, 0, 1, 1], [], []>} : vector<8x128xbf16>, vector<128x128xbf16>, vector<8x128xf32> -> vector<8x128xf32>
    %c0_81 = arith.constant 0 : index
    %c0_82 = arith.constant 0 : index
    %224 = vector.load %arg14[%c0_81, %c0_82] : memref<1x128xf32, #tpu.memory_space<vmem>>, vector<1x128xf32>
    %225 = vector.broadcast %224 : vector<1x128xf32> to vector<8x128xf32>
    %226 = arith.addf %223, %225 : vector<8x128xf32>
    %227 = arith.addf %125, %226 : vector<8x128xf32>
    %c0_83 = arith.constant 0 : index
    %c0_84 = arith.constant 0 : index
    %228 = vector.load %arg17[%c0_83, %c0_84] : memref<1x128xf32, #tpu.memory_space<vmem>>, vector<1x128xf32>
    %c0_85 = arith.constant 0 : index
    %c0_86 = arith.constant 0 : index
    %229 = vector.load %arg18[%c0_85, %c0_86] : memref<1x128xf32, #tpu.memory_space<vmem>>, vector<1x128xf32>
    %cst_87 = arith.constant dense<0.000000e+00> : vector<8xf32>
    %230 = vector.multi_reduction <add>, %227, %cst_87 [1] : vector<8x128xf32> to vector<8xf32>
    %231 = vector.shape_cast %230 : vector<8xf32> to vector<8x1xf32>
    %cst_88 = arith.constant 1.280000e+02 : f32
    %232 = vector.broadcast %cst_88 : f32 to vector<8x1xf32>
    %233 = arith.divf %231, %232 : vector<8x1xf32>
    %234 = vector.broadcast %233 : vector<8x1xf32> to vector<8x128xf32>
    %235 = arith.subf %227, %234 : vector<8x128xf32>
    %236 = arith.mulf %235, %235 : vector<8x128xf32>
    %cst_89 = arith.constant dense<0.000000e+00> : vector<8xf32>
    %237 = vector.multi_reduction <add>, %236, %cst_89 [1] : vector<8x128xf32> to vector<8xf32>
    %238 = vector.shape_cast %237 : vector<8xf32> to vector<8x1xf32>
    %cst_90 = arith.constant 1.280000e+02 : f32
    %239 = vector.broadcast %cst_90 : f32 to vector<8x1xf32>
    %240 = arith.divf %238, %239 : vector<8x1xf32>
    %241 = vector.broadcast %233 : vector<8x1xf32> to vector<8x128xf32>
    %242 = arith.subf %227, %241 : vector<8x128xf32>
    %cst_91 = arith.constant 9.99999974E-6 : f32
    %243 = vector.broadcast %cst_91 : f32 to vector<8x1xf32>
    %244 = arith.addf %240, %243 : vector<8x1xf32>
    %245 = math.rsqrt %244 : vector<8x1xf32>
    %246 = vector.broadcast %245 : vector<8x1xf32> to vector<8x128xf32>
    %247 = arith.mulf %242, %246 : vector<8x128xf32>
    %248 = vector.broadcast %228 : vector<1x128xf32> to vector<8x128xf32>
    %249 = arith.mulf %247, %248 : vector<8x128xf32>
    %250 = vector.broadcast %229 : vector<1x128xf32> to vector<8x128xf32>
    %251 = arith.addf %249, %250 : vector<8x128xf32>
    %252 = arith.truncf %251 : vector<8x128xf32> to vector<8x128xbf16>
    %c0_92 = arith.constant 0 : index
    %c0_93 = arith.constant 0 : index
    %253 = vector.load %arg21[%c0_92, %c0_93] : memref<128x256xbf16, #tpu.memory_space<vmem>>, vector<128x256xbf16>
    %cst_94 = arith.constant dense<0.000000e+00> : vector<8x256xf32>
    %254 = tpu.matmul %252, %253, %cst_94 {dimension_numbers = #tpu.dot_dimension_numbers<[1], [0], [0], [1], [0, 0, 1, 1], [], []>} : vector<8x128xbf16>, vector<128x256xbf16>, vector<8x256xf32> -> vector<8x256xf32>
    %c0_95 = arith.constant 0 : index
    %c0_96 = arith.constant 0 : index
    %255 = vector.load %arg22[%c0_95, %c0_96] : memref<1x256xf32, #tpu.memory_space<vmem>>, vector<1x256xf32>
    %256 = vector.broadcast %255 : vector<1x256xf32> to vector<8x256xf32>
    %257 = arith.addf %254, %256 : vector<8x256xf32>
    %cst_97 = arith.constant 0.000000e+00 : f32
    %258 = vector.broadcast %cst_97 : f32 to vector<8x256xf32>
    %259 = arith.maximumf %257, %258 : vector<8x256xf32>
    %260 = arith.truncf %259 : vector<8x256xf32> to vector<8x256xbf16>
    %c0_98 = arith.constant 0 : index
    %c0_99 = arith.constant 0 : index
    %261 = vector.load %arg23[%c0_98, %c0_99] : memref<256x128xbf16, #tpu.memory_space<vmem>>, vector<256x128xbf16>
    %cst_100 = arith.constant dense<0.000000e+00> : vector<8x128xf32>
    %262 = tpu.matmul %260, %261, %cst_100 {dimension_numbers = #tpu.dot_dimension_numbers<[1], [0], [0], [1], [0, 0, 1, 1], [], []>} : vector<8x256xbf16>, vector<256x128xbf16>, vector<8x128xf32> -> vector<8x128xf32>
    %c0_101 = arith.constant 0 : index
    %c0_102 = arith.constant 0 : index
    %263 = vector.load %arg24[%c0_101, %c0_102] : memref<1x128xf32, #tpu.memory_space<vmem>>, vector<1x128xf32>
    %264 = vector.broadcast %263 : vector<1x128xf32> to vector<8x128xf32>
    %265 = arith.addf %262, %264 : vector<8x128xf32>
    %266 = arith.addf %251, %265 : vector<8x128xf32>
    %c0_103 = arith.constant 0 : index
    %c0_104 = arith.constant 0 : index
    %267 = vector.load %arg19[%c0_103, %c0_104] : memref<1x128xf32, #tpu.memory_space<vmem>>, vector<1x128xf32>
    %c0_105 = arith.constant 0 : index
    %c0_106 = arith.constant 0 : index
    %268 = vector.load %arg20[%c0_105, %c0_106] : memref<1x128xf32, #tpu.memory_space<vmem>>, vector<1x128xf32>
    %cst_107 = arith.constant dense<0.000000e+00> : vector<8xf32>
    %269 = vector.multi_reduction <add>, %266, %cst_107 [1] : vector<8x128xf32> to vector<8xf32>
    %270 = vector.shape_cast %269 : vector<8xf32> to vector<8x1xf32>
    %cst_108 = arith.constant 1.280000e+02 : f32
    %271 = vector.broadcast %cst_108 : f32 to vector<8x1xf32>
    %272 = arith.divf %270, %271 : vector<8x1xf32>
    %273 = vector.broadcast %272 : vector<8x1xf32> to vector<8x128xf32>
    %274 = arith.subf %266, %273 : vector<8x128xf32>
    %275 = arith.mulf %274, %274 : vector<8x128xf32>
    %cst_109 = arith.constant dense<0.000000e+00> : vector<8xf32>
    %276 = vector.multi_reduction <add>, %275, %cst_109 [1] : vector<8x128xf32> to vector<8xf32>
    %277 = vector.shape_cast %276 : vector<8xf32> to vector<8x1xf32>
    %cst_110 = arith.constant 1.280000e+02 : f32
    %278 = vector.broadcast %cst_110 : f32 to vector<8x1xf32>
    %279 = arith.divf %277, %278 : vector<8x1xf32>
    %280 = vector.broadcast %272 : vector<8x1xf32> to vector<8x128xf32>
    %281 = arith.subf %266, %280 : vector<8x128xf32>
    %cst_111 = arith.constant 9.99999974E-6 : f32
    %282 = vector.broadcast %cst_111 : f32 to vector<8x1xf32>
    %283 = arith.addf %279, %282 : vector<8x1xf32>
    %284 = math.rsqrt %283 : vector<8x1xf32>
    %285 = vector.broadcast %284 : vector<8x1xf32> to vector<8x128xf32>
    %286 = arith.mulf %281, %285 : vector<8x128xf32>
    %287 = vector.broadcast %267 : vector<1x128xf32> to vector<8x128xf32>
    %288 = arith.mulf %286, %287 : vector<8x128xf32>
    %289 = vector.broadcast %268 : vector<1x128xf32> to vector<8x128xf32>
    %290 = arith.addf %288, %289 : vector<8x128xf32>
    %c0_112 = arith.constant 0 : index
    %c0_113 = arith.constant 0 : index
    %c0_114 = arith.constant 0 : index
    %291 = vector.load %arg25[%c0_112, %c0_113, %c0_114] : memref<1x8x128xf32, #tpu.memory_space<vmem>>, vector<1x8x128xf32>
    %292 = vector.shape_cast %291 : vector<1x8x128xf32> to vector<8x128xf32>
    %293 = vector.shape_cast %290 : vector<8x128xf32> to vector<1x8x128xf32>
    tpu.vector_store %arg25[%c0_112, %c0_113, %c0_114], %293 {strides = array<i32>} : memref<1x8x128xf32, #tpu.memory_space<vmem>>, vector<1x8x128xf32>,
    return
  }
  func.func @transform_0(%arg0: i32) -> (i32, i32, i32) {
    %c0_i32 = arith.constant 0 : i32
    %c0_i32_0 = arith.constant 0 : i32
    %c0_i32_1 = arith.constant 0 : i32
    return %arg0, %c0_i32, %c0_i32_0 : i32, i32, i32
  }
  func.func @transform_1(%arg0: i32) -> (i32, i32, i32) {
    %c0_i32 = arith.constant 0 : i32
    %c0_i32_0 = arith.constant 0 : i32
    %c0_i32_1 = arith.constant 0 : i32
    return %arg0, %c0_i32, %c0_i32_0 : i32, i32, i32
  }
  func.func @transform_2(%arg0: i32) -> (i32, i32) {
    %c0_i32 = arith.constant 0 : i32
    %c0_i32_0 = arith.constant 0 : i32
    %c0_i32_1 = arith.constant 0 : i32
    return %c0_i32, %c0_i32_0 : i32, i32
  }
  func.func @transform_3(%arg0: i32) -> (i32, i32, i32) {
    %c0_i32 = arith.constant 0 : i32
    %c0_i32_0 = arith.constant 0 : i32
    %c0_i32_1 = arith.constant 0 : i32
    return %arg0, %c0_i32, %c0_i32_0 : i32, i32, i32
  }
  func.func @transform_4(%arg0: i32) -> (i32, i32) {
    %c0_i32 = arith.constant 0 : i32
    %c0_i32_0 = arith.constant 0 : i32
    %c0_i32_1 = arith.constant 0 : i32
    return %c0_i32, %c0_i32_0 : i32, i32
  }
  func.func @transform_5(%arg0: i32) -> (i32, i32) {
    %c0_i32 = arith.constant 0 : i32
    %c0_i32_0 = arith.constant 0 : i32
    %c0_i32_1 = arith.constant 0 : i32
    return %c0_i32, %c0_i32_0 : i32, i32
  }
  func.func @transform_6(%arg0: i32) -> (i32, i32) {
    %c0_i32 = arith.constant 0 : i32
    %c0_i32_0 = arith.constant 0 : i32
    %c0_i32_1 = arith.constant 0 : i32
    return %c0_i32, %c0_i32_0 : i32, i32
  }
  func.func @transform_7(%arg0: i32) -> (i32, i32) {
    %c0_i32 = arith.constant 0 : i32
    %c0_i32_0 = arith.constant 0 : i32
    %c0_i32_1 = arith.constant 0 : i32
    return %c0_i32, %c0_i32_0 : i32, i32
  }
  func.func @transform_8(%arg0: i32) -> (i32, i32) {
    %c0_i32 = arith.constant 0 : i32
    %c0_i32_0 = arith.constant 0 : i32
    %c0_i32_1 = arith.constant 0 : i32
    return %c0_i32, %c0_i32_0 : i32, i32
  }
  func.func @transform_9(%arg0: i32) -> (i32, i32) {
    %c0_i32 = arith.constant 0 : i32
    %c0_i32_0 = arith.constant 0 : i32
    %c0_i32_1 = arith.constant 0 : i32
    return %c0_i32, %c0_i32_0 : i32, i32
  }
  func.func @transform_10(%arg0: i32) -> (i32, i32) {
    %c0_i32 = arith.constant 0 : i32
    %c0_i32_0 = arith.constant 0 : i32
    %c0_i32_1 = arith.constant 0 : i32
    return %c0_i32, %c0_i32_0 : i32, i32
  }
  func.func @transform_11(%arg0: i32) -> (i32, i32) {
    %c0_i32 = arith.constant 0 : i32
    %c0_i32_0 = arith.constant 0 : i32
    %c0_i32_1 = arith.constant 0 : i32
    return %c0_i32, %c0_i32_0 : i32, i32
  }
  func.func @transform_12(%arg0: i32) -> (i32, i32) {
    %c0_i32 = arith.constant 0 : i32
    %c0_i32_0 = arith.constant 0 : i32
    %c0_i32_1 = arith.constant 0 : i32
    return %c0_i32, %c0_i32_0 : i32, i32
  }
  func.func @transform_13(%arg0: i32) -> (i32, i32) {
    %c0_i32 = arith.constant 0 : i32
    %c0_i32_0 = arith.constant 0 : i32
    %c0_i32_1 = arith.constant 0 : i32
    return %c0_i32, %c0_i32_0 : i32, i32
  }
  func.func @transform_14(%arg0: i32) -> (i32, i32) {
    %c0_i32 = arith.constant 0 : i32
    %c0_i32_0 = arith.constant 0 : i32
    %c0_i32_1 = arith.constant 0 : i32
    return %c0_i32, %c0_i32_0 : i32, i32
  }
  func.func @transform_15(%arg0: i32) -> (i32, i32) {
    %c0_i32 = arith.constant 0 : i32
    %c0_i32_0 = arith.constant 0 : i32
    %c0_i32_1 = arith.constant 0 : i32
    return %c0_i32, %c0_i32_0 : i32, i32
  }
  func.func @transform_16(%arg0: i32) -> (i32, i32) {
    %c0_i32 = arith.constant 0 : i32
    %c0_i32_0 = arith.constant 0 : i32
    %c0_i32_1 = arith.constant 0 : i32
    return %c0_i32, %c0_i32_0 : i32, i32
  }
  func.func @transform_17(%arg0: i32) -> (i32, i32) {
    %c0_i32 = arith.constant 0 : i32
    %c0_i32_0 = arith.constant 0 : i32
    %c0_i32_1 = arith.constant 0 : i32
    return %c0_i32, %c0_i32_0 : i32, i32
  }
  func.func @transform_18(%arg0: i32) -> (i32, i32) {
    %c0_i32 = arith.constant 0 : i32
    %c0_i32_0 = arith.constant 0 : i32
    %c0_i32_1 = arith.constant 0 : i32
    return %c0_i32, %c0_i32_0 : i32, i32
  }
  func.func @transform_19(%arg0: i32) -> (i32, i32) {
    %c0_i32 = arith.constant 0 : i32
    %c0_i32_0 = arith.constant 0 : i32
    %c0_i32_1 = arith.constant 0 : i32
    return %c0_i32, %c0_i32_0 : i32, i32
  }
  func.func @transform_20(%arg0: i32) -> (i32, i32) {
    %c0_i32 = arith.constant 0 : i32
    %c0_i32_0 = arith.constant 0 : i32
    %c0_i32_1 = arith.constant 0 : i32
    return %c0_i32, %c0_i32_0 : i32, i32
  }
  func.func @transform_21(%arg0: i32) -> (i32, i32) {
    %c0_i32 = arith.constant 0 : i32
    %c0_i32_0 = arith.constant 0 : i32
    %c0_i32_1 = arith.constant 0 : i32
    return %c0_i32, %c0_i32_0 : i32, i32
  }
  func.func @transform_22(%arg0: i32) -> (i32, i32) {
    %c0_i32 = arith.constant 0 : i32
    %c0_i32_0 = arith.constant 0 : i32
    %c0_i32_1 = arith.constant 0 : i32
    return %c0_i32, %c0_i32_0 : i32, i32
  }
  func.func @transform_23(%arg0: i32) -> (i32, i32) {
    %c0_i32 = arith.constant 0 : i32
    %c0_i32_0 = arith.constant 0 : i32
    %c0_i32_1 = arith.constant 0 : i32
    return %c0_i32, %c0_i32_0 : i32, i32
  }
  func.func @transform_24(%arg0: i32) -> (i32, i32, i32) {
    %c0_i32 = arith.constant 0 : i32
    %c0_i32_0 = arith.constant 0 : i32
    %c0_i32_1 = arith.constant 0 : i32
    return %arg0, %c0_i32, %c0_i32_0 : i32, i32, i32
  }
}

</mosaic_0001>

<llo_original>
// kernel: tpu_custom_call.1
$region0: #{tpu_custom_call.1}
  #allocation0 [shape = 'u32[]', space=smem, size = 0x4, offset = 0x4, fixed_abs, tag = 'smem constant byte address 0x4 - core index']
  #allocation1 [shape = 'u32[144,128]{1,0:T(1,128)}', space=vmem, size = 0x12000, scoped, tag = 'internal scratch']
  %s0 = inlined_call_operand.hbm [shape: f32[2,8,128], index: 0, kind: input, shape index: {}]
  %s1 = inlined_call_operand.hbm [shape: f32[2,8,128], index: 1, kind: input, shape index: {}]
  %s2 = inlined_call_operand.hbm [shape: f32[8,8], index: 2, kind: input, shape index: {}]
  %s3 = inlined_call_operand.vmem [shape: f32[2,1,8], index: 3, kind: input, shape index: {}]
  %s4 = inlined_call_operand.hbm [shape: bf16[128,384], index: 4, kind: input, shape index: {}]
  %s5 = inlined_call_operand.vmem [shape: f32[1,384], index: 5, kind: input, shape index: {}]
  %s6 = inlined_call_operand.hbm [shape: bf16[128,128], index: 6, kind: input, shape index: {}]
  %s7 = inlined_call_operand.vmem [shape: f32[1,128], index: 7, kind: input, shape index: {}]
  %s8 = inlined_call_operand.hbm [shape: bf16[128,128], index: 8, kind: input, shape index: {}]
  %s9 = inlined_call_operand.vmem [shape: f32[1,128], index: 9, kind: input, shape index: {}]
  %s10 = inlined_call_operand.hbm [shape: bf16[128,256], index: 10, kind: input, shape index: {}]
  %s11 = inlined_call_operand.vmem [shape: f32[1,256], index: 11, kind: input, shape index: {}]
  %s12 = inlined_call_operand.hbm [shape: bf16[128,128], index: 12, kind: input, shape index: {}]
  %s13 = inlined_call_operand.vmem [shape: f32[1,128], index: 13, kind: input, shape index: {}]
  %s14 = inlined_call_operand.vmem [shape: f32[1,128], index: 14, kind: input, shape index: {}]
  %s15 = inlined_call_operand.vmem [shape: f32[1,128], index: 15, kind: input, shape index: {}]
  %s16 = inlined_call_operand.vmem [shape: f32[1,128], index: 16, kind: input, shape index: {}]
  %s17 = inlined_call_operand.vmem [shape: f32[1,128], index: 17, kind: input, shape index: {}]
  %s18 = inlined_call_operand.vmem [shape: f32[1,128], index: 18, kind: input, shape index: {}]
  %s19 = inlined_call_operand.vmem [shape: f32[1,128], index: 19, kind: input, shape index: {}]
  %s20 = inlined_call_operand.hbm [shape: bf16[128,256], index: 20, kind: input, shape index: {}]
  %s21 = inlined_call_operand.vmem [shape: f32[1,256], index: 21, kind: input, shape index: {}]
  %s22 = inlined_call_operand.hbm [shape: bf16[256,128], index: 22, kind: input, shape index: {}]
  %s23 = inlined_call_operand.vmem [shape: f32[1,128], index: 23, kind: input, shape index: {}]
  %s24 = inlined_call_operand.hbm [shape: f32[2,8,128], index: 24, kind: output, shape index: {}]
  %s25 = sld [smem:[#allocation0]]
  $region169: #{tpu_custom_call.1} parent=0
    _
  %s27 = ssub.s32 1, %s25
  %s28 = scalar_select 0, %s27, %s25
  $region1: #{tpu_custom_call.1} parent=0
    #allocation2 [shape = 'u8[8192]{0}', space=vmem, size = 0x2000, scoped, tag = 'input window, operand 0']
    #allocation3 [shape = 's32[2]{0}', space=sflag, size = 0x8, scoped, tag = 'scoped memory for tpu_custom_call.1']
    #allocation4 [shape = 's32[2]{0}', space=sflag, size = 0x8, scoped, tag = 'scoped memory for tpu_custom_call.1']
    #allocation5 [shape = 'u8[8192]{0}', space=vmem, size = 0x2000, scoped, tag = 'input window, operand 1']
    #allocation6 [shape = 's32[2]{0}', space=sflag, size = 0x8, scoped, tag = 'scoped memory for tpu_custom_call.1']
    #allocation7 [shape = 'u8[4096]{0}', space=vmem, size = 0x1000, scoped, tag = 'input window, operand 2, single buffered']
    #allocation8 [shape = 'u8[98304]{0}', space=vmem, size = 0x18000, scoped, tag = 'input window, operand 4, single buffered']
    #allocation9 [shape = 's32[1]{0}', space=sflag, size = 0x4, scoped, tag = 'scoped memory for tpu_custom_call.1']
    #allocation10 [shape = 'u8[32768]{0}', space=vmem, size = 0x8000, scoped, tag = 'input window, operand 6, single buffered']
    #allocation11 [shape = 'u8[32768]{0}', space=vmem, size = 0x8000, scoped, tag = 'input window, operand 8, single buffered']
    #allocation12 [shape = 's32[1]{0}', space=sflag, size = 0x4, scoped, tag = 'scoped memory for tpu_custom_call.1']
    #allocation13 [shape = 'u8[65536]{0}', space=vmem, size = 0x10000, scoped, tag = 'input window, operand 10, single buffered']
    #allocation14 [shape = 'u8[32768]{0}', space=vmem, size = 0x8000, scoped, tag = 'input window, operand 12, single buffered']
    #allocation15 [shape = 's32[1]{0}', space=sflag, size = 0x4, scoped, tag = 'scoped memory for tpu_custom_call.1']
    #allocation16 [shape = 'u8[65536]{0}', space=vmem, size = 0x10000, scoped, tag = 'input window, operand 20, single buffered']
    #allocation17 [shape = 'u8[65536]{0}', space=vmem, size = 0x10000, scoped, tag = 'input window, operand 22, single buffered']
    #allocation18 [shape = 's32[1]{0}', space=sflag, size = 0x4, scoped, tag = 'scoped memory for tpu_custom_call.1']
    #allocation19 [shape = 'u8[8192]{0}', space=vmem, size = 0x2000, scoped, tag = 'output window, operand 0']
    %29 = vsyncpa [#allocation3], 0
    %s30 = scalar_lea.sflag [#allocation3], 1
    %31 = vsyncpa %s30, 0
    %32 = vsyncpa [#allocation6], 0
    %s33 = scalar_lea.sflag [#allocation6], 1
    %34 = vsyncpa %s33, 0
    %35 = vsyncpa [#allocation9], 0
    %36 = vsyncpa [#allocation12], 0
    %37 = vsyncpa [#allocation15], 0
    %38 = vsyncpa [#allocation18], 0
    %39 = vsyncpa [#allocation4], 0
    %s40 = scalar_lea.sflag [#allocation4], 1
    %41 = vsyncpa %s40, 0
    loop: start=0, step=1, limit=4
    $region2: #{tpu_custom_call.1} parent=1 // loop_pre_header
      _
    $region3: #{tpu_custom_call.1} parent=1 // loop_header
      %s43 = sphi 0, %s47
      %p44 = scmp.ge.s32.totalorder %s43, 4
      %s53 = sphi 0, %s55
      %s56 = sphi 0, %s53
      %s57 = sphi 0, %s56
      %s73 = sphi 0, %s57
      %s79 = sphi 0, %s81
      %s82 = sphi 0, %s79
      %s83 = sphi 0, %s82
      %s99 = sphi 0, %s83
      %s103 = sphi 0, %s103
      %s105 = sphi 0, %s103
      %s106 = sphi 0, %s105
      %s120 = sphi 0, %s106
      %s126 = sphi 0, %s128
      %s129 = sphi 0, %s126
      %s130 = sphi 0, %s129
      %s146 = sphi 0, %s130
      %s150 = sphi 0, %s150
      %s152 = sphi 0, %s150
      %s153 = sphi 0, %s152
      %s167 = sphi 0, %s153
      %s171 = sphi 0, %s171
      %s173 = sphi 0, %s171
      %s174 = sphi 0, %s173
      %s188 = sphi 0, %s174
      %s192 = sphi 0, %s192
      %s194 = sphi 0, %s192
      %s195 = sphi 0, %s194
      %s209 = sphi 0, %s195
      %s213 = sphi 0, %s213
      %s215 = sphi 0, %s213
      %s216 = sphi 0, %s215
      %s230 = sphi 0, %s216
      %s234 = sphi 0, %s234
      %s236 = sphi 0, %s234
      %s237 = sphi 0, %s236
      %s251 = sphi 0, %s237
      %s255 = sphi 0, %s255
      %s257 = sphi 0, %s255
      %s258 = sphi 0, %s257
      %s272 = sphi 0, %s258
      %s276 = sphi 0, %s276
      %s278 = sphi 0, %s276
      %s279 = sphi 0, %s278
      %s293 = sphi 0, %s279
      %s297 = sphi 0, %s297
      %s299 = sphi 0, %s297
      %s300 = sphi 0, %s299
      %s314 = sphi 0, %s300
      %s318 = sphi 0, %s318
      %s320 = sphi 0, %s318
      %s321 = sphi 0, %s320
      %s335 = sphi 0, %s321
      %s339 = sphi 0, %s339
      %s341 = sphi 0, %s339
      %s342 = sphi 0, %s341
      %s356 = sphi 0, %s342
      %s360 = sphi 0, %s360
      %s362 = sphi 0, %s360
      %s363 = sphi 0, %s362
      %s377 = sphi 0, %s363
      %s381 = sphi 0, %s381
      %s383 = sphi 0, %s381
      %s384 = sphi 0, %s383
      %s398 = sphi 0, %s384
      %s402 = sphi 0, %s402
      %s404 = sphi 0, %s402
      %s405 = sphi 0, %s404
      %s419 = sphi 0, %s405
      %s423 = sphi 0, %s423
      %s425 = sphi 0, %s423
      %s426 = sphi 0, %s425
      %s440 = sphi 0, %s426
      %s444 = sphi 0, %s444
      %s446 = sphi 0, %s444
      %s447 = sphi 0, %s446
      %s461 = sphi 0, %s447
      %s465 = sphi 0, %s465
      %s467 = sphi 0, %s465
      %s468 = sphi 0, %s467
      %s482 = sphi 0, %s468
      %s486 = sphi 0, %s486
      %s488 = sphi 0, %s486
      %s489 = sphi 0, %s488
      %s503 = sphi 0, %s489
      %s507 = sphi 0, %s507
      %s509 = sphi 0, %s507
      %s510 = sphi 0, %s509
      %s524 = sphi 0, %s510
      %s528 = sphi 0, %s528
      %s530 = sphi 0, %s528
      %s531 = sphi 0, %s530
      %s545 = sphi 0, %s531
      %s549 = sphi 0, %s549
      %s551 = sphi 0, %s549
      %s552 = sphi 0, %s551
      %s566 = sphi 0, %s552
      %s572 = sphi 0, %s574
      %s575 = sphi 0, %s572
      %s576 = sphi 0, %s575
      %s592 = sphi 0, %s576
    $region4: #{tpu_custom_call.1} parent=1 // loop_header_branch
      %46 = sbr.rel (%p44) target = $region8
    $region5: #{tpu_custom_call.1} parent=1 // loop_body
      %s48 = ssub.s32 %s43, 1
      %s49 = ssub.s32 %s43, 2
      %s50 = sadd.s32 %s43, 1
      %s51 = ssub.s32 %s43, %s50
      %p52 = scmp.eq.s32.totalorder %s51, 0
      %s54 = sadd.s32 %s53, 1
      %s55 = scalar_select %p52, %s53, %s54
      %p58 = pneg %p52
      %p59 = scmp.eq.s32.totalorder %s43, 1
      %p60 = por %p58, %p59
      %p61 = scmp.ne.s32.totalorder %s53, %s56
      %p62 = scmp.eq.s32.totalorder %s43, 0
      %p63 = por %p61, %p62
      %p64 = scmp.ne.s32.totalorder %s53, %s56
      %p65 = scmp.eq.s32.totalorder %s48, 1
      %p66 = por %p64, %p65
      %p67 = scmp.ne.s32.totalorder %s56, %s57
      %p68 = scmp.eq.s32.totalorder %s48, 0
      %p69 = por %p67, %p68
      %p70 = scmp.ne.s32.totalorder %s56, %s57
      %p71 = scmp.eq.s32.totalorder %s49, 1
      %p72 = por %p70, %p71
      %p74 = scmp.ne.s32.totalorder %s57, %s73
      %p75 = scmp.eq.s32.totalorder %s49, 0
      %p76 = por %p74, %p75
      %s77 = ssub.s32 %s43, %s50
      %p78 = scmp.eq.s32.totalorder %s77, 0
      %s80 = sadd.s32 %s79, 1
      %s81 = scalar_select %p78, %s79, %s80
      %p84 = pneg %p78
      %p85 = scmp.eq.s32.totalorder %s43, 1
      %p86 = por %p84, %p85
      %p87 = scmp.ne.s32.totalorder %s79, %s82
      %p88 = scmp.eq.s32.totalorder %s43, 0
      %p89 = por %p87, %p88
      %p90 = scmp.ne.s32.totalorder %s79, %s82
      %p91 = scmp.eq.s32.totalorder %s48, 1
      %p92 = por %p90, %p91
      %p93 = scmp.ne.s32.totalorder %s82, %s83
      %p94 = scmp.eq.s32.totalorder %s48, 0
      %p95 = por %p93, %p94
      %p96 = scmp.ne.s32.totalorder %s82, %s83
      %p97 = scmp.eq.s32.totalorder %s49, 1
      %p98 = por %p96, %p97
      %p100 = scmp.ne.s32.totalorder %s83, %s99
      %p101 = scmp.eq.s32.totalorder %s49, 0
      %p102 = por %p100, %p101
      %s104 = sadd.s32 %s103, 1
      %p107 = scmp.eq.s32.totalorder %s43, 1
      %p108 = scmp.ne.s32.totalorder %s103, %s105
      %p109 = scmp.eq.s32.totalorder %s43, 0
      %p110 = por %p108, %p109
      %p111 = scmp.ne.s32.totalorder %s103, %s105
      %p112 = scmp.eq.s32.totalorder %s48, 1
      %p113 = por %p111, %p112
      %p114 = scmp.ne.s32.totalorder %s105, %s106
      %p115 = scmp.eq.s32.totalorder %s48, 0
      %p116 = por %p114, %p115
      %p117 = scmp.ne.s32.totalorder %s105, %s106
      %p118 = scmp.eq.s32.totalorder %s49, 1
      %p119 = por %p117, %p118
      %p121 = scmp.ne.s32.totalorder %s106, %s120
      %p122 = scmp.eq.s32.totalorder %s49, 0
      %p123 = por %p121, %p122
      %s124 = ssub.s32 %s43, %s50
      %p125 = scmp.eq.s32.totalorder %s124, 0
      %s127 = sadd.s32 %s126, 1
      %s128 = scalar_select %p125, %s126, %s127
      %p131 = pneg %p125
      %p132 = scmp.eq.s32.totalorder %s43, 1
      %p133 = por %p131, %p132
      %p134 = scmp.ne.s32.totalorder %s126, %s129
      %p135 = scmp.eq.s32.totalorder %s43, 0
      %p136 = por %p134, %p135
      %p137 = scmp.ne.s32.totalorder %s126, %s129
      %p138 = scmp.eq.s32.totalorder %s48, 1
      %p139 = por %p137, %p138
      %p140 = scmp.ne.s32.totalorder %s129, %s130
      %p141 = scmp.eq.s32.totalorder %s48, 0
      %p142 = por %p140, %p141
      %p143 = scmp.ne.s32.totalorder %s129, %s130
      %p144 = scmp.eq.s32.totalorder %s49, 1
      %p145 = por %p143, %p144
      %p147 = scmp.ne.s32.totalorder %s130, %s146
      %p148 = scmp.eq.s32.totalorder %s49, 0
      %p149 = por %p147, %p148
      %s151 = sadd.s32 %s150, 1
      %p154 = scmp.eq.s32.totalorder %s43, 1
      %p155 = scmp.ne.s32.totalorder %s150, %s152
      %p156 = scmp.eq.s32.totalorder %s43, 0
      %p157 = por %p155, %p156
      %p158 = scmp.ne.s32.totalorder %s150, %s152
      %p159 = scmp.eq.s32.totalorder %s48, 1
      %p160 = por %p158, %p159
      %p161 = scmp.ne.s32.totalorder %s152, %s153
      %p162 = scmp.eq.s32.totalorder %s48, 0
      %p163 = por %p161, %p162
      %p164 = scmp.ne.s32.totalorder %s152, %s153
      %p165 = scmp.eq.s32.totalorder %s49, 1
      %p166 = por %p164, %p165
      %p168 = scmp.ne.s32.totalorder %s153, %s167
      %p169 = scmp.eq.s32.totalorder %s49, 0
      %p170 = por %p168, %p169
      %s172 = sadd.s32 %s171, 1
      %p175 = scmp.eq.s32.totalorder %s43, 1
      %p176 = scmp.ne.s32.totalorder %s171, %s173
      %p177 = scmp.eq.s32.totalorder %s43, 0
      %p178 = por %p176, %p177
      %p179 = scmp.ne.s32.totalorder %s171, %s173
      %p180 = scmp.eq.s32.totalorder %s48, 1
      %p181 = por %p179, %p180
      %p182 = scmp.ne.s32.totalorder %s173, %s174
      %p183 = scmp.eq.s32.totalorder %s48, 0
      %p184 = por %p182, %p183
      %p185 = scmp.ne.s32.totalorder %s173, %s174
      %p186 = scmp.eq.s32.totalorder %s49, 1
      %p187 = por %p185, %p186
      %p189 = scmp.ne.s32.totalorder %s174, %s188
      %p190 = scmp.eq.s32.totalorder %s49, 0
      %p191 = por %p189, %p190
      %s193 = sadd.s32 %s192, 1
      %p196 = scmp.eq.s32.totalorder %s43, 1
      %p197 = scmp.ne.s32.totalorder %s192, %s194
      %p198 = scmp.eq.s32.totalorder %s43, 0
      %p199 = por %p197, %p198
      %p200 = scmp.ne.s32.totalorder %s192, %s194
      %p201 = scmp.eq.s32.totalorder %s48, 1
      %p202 = por %p200, %p201
      %p203 = scmp.ne.s32.totalorder %s194, %s195
      %p204 = scmp.eq.s32.totalorder %s48, 0
      %p205 = por %p203, %p204
      %p206 = scmp.ne.s32.totalorder %s194, %s195
      %p207 = scmp.eq.s32.totalorder %s49, 1
      %p208 = por %p206, %p207
      %p210 = scmp.ne.s32.totalorder %s195, %s209
      %p211 = scmp.eq.s32.totalorder %s49, 0
      %p212 = por %p210, %p211
      %s214 = sadd.s32 %s213, 1
      %p217 = scmp.eq.s32.totalorder %s43, 1
      %p218 = scmp.ne.s32.totalorder %s213, %s215
      %p219 = scmp.eq.s32.totalorder %s43, 0
      %p220 = por %p218, %p219
      %p221 = scmp.ne.s32.totalorder %s213, %s215
      %p222 = scmp.eq.s32.totalorder %s48, 1
      %p223 = por %p221, %p222
      %p224 = scmp.ne.s32.totalorder %s215, %s216
      %p225 = scmp.eq.s32.totalorder %s48, 0
      %p226 = por %p224, %p225
      %p227 = scmp.ne.s32.totalorder %s215, %s216
      %p228 = scmp.eq.s32.totalorder %s49, 1
      %p229 = por %p227, %p228
      %p231 = scmp.ne.s32.totalorder %s216, %s230
      %p232 = scmp.eq.s32.totalorder %s49, 0
      %p233 = por %p231, %p232
      %s235 = sadd.s32 %s234, 1
      %p238 = scmp.eq.s32.totalorder %s43, 1
      %p239 = scmp.ne.s32.totalorder %s234, %s236
      %p240 = scmp.eq.s32.totalorder %s43, 0
      %p241 = por %p239, %p240
      %p242 = scmp.ne.s32.totalorder %s234, %s236
      %p243 = scmp.eq.s32.totalorder %s48, 1
      %p244 = por %p242, %p243
      %p245 = scmp.ne.s32.totalorder %s236, %s237
      %p246 = scmp.eq.s32.totalorder %s48, 0
      %p247 = por %p245, %p246
      %p248 = scmp.ne.s32.totalorder %s236, %s237
      %p249 = scmp.eq.s32.totalorder %s49, 1
      %p250 = por %p248, %p249
      %p252 = scmp.ne.s32.totalorder %s237, %s251
      %p253 = scmp.eq.s32.totalorder %s49, 0
      %p254 = por %p252, %p253
      %s256 = sadd.s32 %s255, 1
      %p259 = scmp.eq.s32.totalorder %s43, 1
      %p260 = scmp.ne.s32.totalorder %s255, %s257
      %p261 = scmp.eq.s32.totalorder %s43, 0
      %p262 = por %p260, %p261
      %p263 = scmp.ne.s32.totalorder %s255, %s257
      %p264 = scmp.eq.s32.totalorder %s48, 1
      %p265 = por %p263, %p264
      %p266 = scmp.ne.s32.totalorder %s257, %s258
      %p267 = scmp.eq.s32.totalorder %s48, 0
      %p268 = por %p266, %p267
      %p269 = scmp.ne.s32.totalorder %s257, %s258
      %p270 = scmp.eq.s32.totalorder %s49, 1
      %p271 = por %p269, %p270
      %p273 = scmp.ne.s32.totalorder %s258, %s272
      %p274 = scmp.eq.s32.totalorder %s49, 0
      %p275 = por %p273, %p274
      %s277 = sadd.s32 %s276, 1
      %p280 = scmp.eq.s32.totalorder %s43, 1
      %p281 = scmp.ne.s32.totalorder %s276, %s278
      %p282 = scmp.eq.s32.totalorder %s43, 0
      %p283 = por %p281, %p282
      %p284 = scmp.ne.s32.totalorder %s276, %s278
      %p285 = scmp.eq.s32.totalorder %s48, 1
      %p286 = por %p284, %p285
      %p287 = scmp.ne.s32.totalorder %s278, %s279
      %p288 = scmp.eq.s32.totalorder %s48, 0
      %p289 = por %p287, %p288
      %p290 = scmp.ne.s32.totalorder %s278, %s279
      %p291 = scmp.eq.s32.totalorder %s49, 1
      %p292 = por %p290, %p291
      %p294 = scmp.ne.s32.totalorder %s279, %s293
      %p295 = scmp.eq.s32.totalorder %s49, 0
      %p296 = por %p294, %p295
      %s298 = sadd.s32 %s297, 1
      %p301 = scmp.eq.s32.totalorder %s43, 1
      %p302 = scmp.ne.s32.totalorder %s297, %s299
      %p303 = scmp.eq.s32.totalorder %s43, 0
      %p304 = por %p302, %p303
      %p305 = scmp.ne.s32.totalorder %s297, %s299
      %p306 = scmp.eq.s32.totalorder %s48, 1
      %p307 = por %p305, %p306
      %p308 = scmp.ne.s32.totalorder %s299, %s300
      %p309 = scmp.eq.s32.totalorder %s48, 0
      %p310 = por %p308, %p309
      %p311 = scmp.ne.s32.totalorder %s299, %s300
      %p312 = scmp.eq.s32.totalorder %s49, 1
      %p313 = por %p311, %p312
      %p315 = scmp.ne.s32.totalorder %s300, %s314
      %p316 = scmp.eq.s32.totalorder %s49, 0
      %p317 = por %p315, %p316
      %s319 = sadd.s32 %s318, 1
      %p322 = scmp.eq.s32.totalorder %s43, 1
      %p323 = scmp.ne.s32.totalorder %s318, %s320
      %p324 = scmp.eq.s32.totalorder %s43, 0
      %p325 = por %p323, %p324
      %p326 = scmp.ne.s32.totalorder %s318, %s320
      %p327 = scmp.eq.s32.totalorder %s48, 1
      %p328 = por %p326, %p327
      %p329 = scmp.ne.s32.totalorder %s320, %s321
      %p330 = scmp.eq.s32.totalorder %s48, 0
      %p331 = por %p329, %p330
      %p332 = scmp.ne.s32.totalorder %s320, %s321
      %p333 = scmp.eq.s32.totalorder %s49, 1
      %p334 = por %p332, %p333
      %p336 = scmp.ne.s32.totalorder %s321, %s335
      %p337 = scmp.eq.s32.totalorder %s49, 0
      %p338 = por %p336, %p337
      %s340 = sadd.s32 %s339, 1
      %p343 = scmp.eq.s32.totalorder %s43, 1
      %p344 = scmp.ne.s32.totalorder %s339, %s341
      %p345 = scmp.eq.s32.totalorder %s43, 0
      %p346 = por %p344, %p345
      %p347 = scmp.ne.s32.totalorder %s339, %s341
      %p348 = scmp.eq.s32.totalorder %s48, 1
      %p349 = por %p347, %p348
      %p350 = scmp.ne.s32.totalorder %s341, %s342
      %p351 = scmp.eq.s32.totalorder %s48, 0
      %p352 = por %p350, %p351
      %p353 = scmp.ne.s32.totalorder %s341, %s342
      %p354 = scmp.eq.s32.totalorder %s49, 1
      %p355 = por %p353, %p354
      %p357 = scmp.ne.s32.totalorder %s342, %s356
      %p358 = scmp.eq.s32.totalorder %s49, 0
      %p359 = por %p357, %p358
      %s361 = sadd.s32 %s360, 1
      %p364 = scmp.eq.s32.totalorder %s43, 1
      %p365 = scmp.ne.s32.totalorder %s360, %s362
      %p366 = scmp.eq.s32.totalorder %s43, 0
      %p367 = por %p365, %p366
      %p368 = scmp.ne.s32.totalorder %s360, %s362
      %p369 = scmp.eq.s32.totalorder %s48, 1
      %p370 = por %p368, %p369
      %p371 = scmp.ne.s32.totalorder %s362, %s363
      %p372 = scmp.eq.s32.totalorder %s48, 0
      %p373 = por %p371, %p372
      %p374 = scmp.ne.s32.totalorder %s362, %s363
      %p375 = scmp.eq.s32.totalorder %s49, 1
      %p376 = por %p374, %p375
      %p378 = scmp.ne.s32.totalorder %s363, %s377
      %p379 = scmp.eq.s32.totalorder %s49, 0
      %p380 = por %p378, %p379
      %s382 = sadd.s32 %s381, 1
      %p385 = scmp.eq.s32.totalorder %s43, 1
      %p386 = scmp.ne.s32.totalorder %s381, %s383
      %p387 = scmp.eq.s32.totalorder %s43, 0
      %p388 = por %p386, %p387
      %p389 = scmp.ne.s32.totalorder %s381, %s383
      %p390 = scmp.eq.s32.totalorder %s48, 1
      %p391 = por %p389, %p390
      %p392 = scmp.ne.s32.totalorder %s383, %s384
      %p393 = scmp.eq.s32.totalorder %s48, 0
      %p394 = por %p392, %p393
      %p395 = scmp.ne.s32.totalorder %s383, %s384
      %p396 = scmp.eq.s32.totalorder %s49, 1
      %p397 = por %p395, %p396
      %p399 = scmp.ne.s32.totalorder %s384, %s398
      %p400 = scmp.eq.s32.totalorder %s49, 0
      %p401 = por %p399, %p400
      %s403 = sadd.s32 %s402, 1
      %p406 = scmp.eq.s32.totalorder %s43, 1
      %p407 = scmp.ne.s32.totalorder %s402, %s404
      %p408 = scmp.eq.s32.totalorder %s43, 0
      %p409 = por %p407, %p408
      %p410 = scmp.ne.s32.totalorder %s402, %s404
      %p411 = scmp.eq.s32.totalorder %s48, 1
      %p412 = por %p410, %p411
      %p413 = scmp.ne.s32.totalorder %s404, %s405
      %p414 = scmp.eq.s32.totalorder %s48, 0
      %p415 = por %p413, %p414
      %p416 = scmp.ne.s32.totalorder %s404, %s405
      %p417 = scmp.eq.s32.totalorder %s49, 1
      %p418 = por %p416, %p417
      %p420 = scmp.ne.s32.totalorder %s405, %s419
      %p421 = scmp.eq.s32.totalorder %s49, 0
      %p422 = por %p420, %p421
      %s424 = sadd.s32 %s423, 1
      %p427 = scmp.eq.s32.totalorder %s43, 1
      %p428 = scmp.ne.s32.totalorder %s423, %s425
      %p429 = scmp.eq.s32.totalorder %s43, 0
      %p430 = por %p428, %p429
      %p431 = scmp.ne.s32.totalorder %s423, %s425
      %p432 = scmp.eq.s32.totalorder %s48, 1
      %p433 = por %p431, %p432
      %p434 = scmp.ne.s32.totalorder %s425, %s426
      %p435 = scmp.eq.s32.totalorder %s48, 0
      %p436 = por %p434, %p435
      %p437 = scmp.ne.s32.totalorder %s425, %s426
      %p438 = scmp.eq.s32.totalorder %s49, 1
      %p439 = por %p437, %p438
      %p441 = scmp.ne.s32.totalorder %s426, %s440
      %p442 = scmp.eq.s32.totalorder %s49, 0
      %p443 = por %p441, %p442
      %s445 = sadd.s32 %s444, 1
      %p448 = scmp.eq.s32.totalorder %s43, 1
      %p449 = scmp.ne.s32.totalorder %s444, %s446
      %p450 = scmp.eq.s32.totalorder %s43, 0
      %p451 = por %p449, %p450
      %p452 = scmp.ne.s32.totalorder %s444, %s446
      %p453 = scmp.eq.s32.totalorder %s48, 1
      %p454 = por %p452, %p453
      %p455 = scmp.ne.s32.totalorder %s446, %s447
      %p456 = scmp.eq.s32.totalorder %s48, 0
      %p457 = por %p455, %p456
      %p458 = scmp.ne.s32.totalorder %s446, %s447
      %p459 = scmp.eq.s32.totalorder %s49, 1
      %p460 = por %p458, %p459
      %p462 = scmp.ne.s32.totalorder %s447, %s461
      %p463 = scmp.eq.s32.totalorder %s49, 0
      %p464 = por %p462, %p463
      %s466 = sadd.s32 %s465, 1
      %p469 = scmp.eq.s32.totalorder %s43, 1
      %p470 = scmp.ne.s32.totalorder %s465, %s467
      %p471 = scmp.eq.s32.totalorder %s43, 0
      %p472 = por %p470, %p471
      %p473 = scmp.ne.s32.totalorder %s465, %s467
      %p474 = scmp.eq.s32.totalorder %s48, 1
      %p475 = por %p473, %p474
      %p476 = scmp.ne.s32.totalorder %s467, %s468
      %p477 = scmp.eq.s32.totalorder %s48, 0
      %p478 = por %p476, %p477
      %p479 = scmp.ne.s32.totalorder %s467, %s468
      %p480 = scmp.eq.s32.totalorder %s49, 1
      %p481 = por %p479, %p480
      %p483 = scmp.ne.s32.totalorder %s468, %s482
      %p484 = scmp.eq.s32.totalorder %s49, 0
      %p485 = por %p483, %p484
      %s487 = sadd.s32 %s486, 1
      %p490 = scmp.eq.s32.totalorder %s43, 1
      %p491 = scmp.ne.s32.totalorder %s486, %s488
      %p492 = scmp.eq.s32.totalorder %s43, 0
      %p493 = por %p491, %p492
      %p494 = scmp.ne.s32.totalorder %s486, %s488
      %p495 = scmp.eq.s32.totalorder %s48, 1
      %p496 = por %p494, %p495
      %p497 = scmp.ne.s32.totalorder %s488, %s489
      %p498 = scmp.eq.s32.totalorder %s48, 0
      %p499 = por %p497, %p498
      %p500 = scmp.ne.s32.totalorder %s488, %s489
      %p501 = scmp.eq.s32.totalorder %s49, 1
      %p502 = por %p500, %p501
      %p504 = scmp.ne.s32.totalorder %s489, %s503
      %p505 = scmp.eq.s32.totalorder %s49, 0
      %p506 = por %p504, %p505
      %s508 = sadd.s32 %s507, 1
      %p511 = scmp.eq.s32.totalorder %s43, 1
      %p512 = scmp.ne.s32.totalorder %s507, %s509
      %p513 = scmp.eq.s32.totalorder %s43, 0
      %p514 = por %p512, %p513
      %p515 = scmp.ne.s32.totalorder %s507, %s509
      %p516 = scmp.eq.s32.totalorder %s48, 1
      %p517 = por %p515, %p516
      %p518 = scmp.ne.s32.totalorder %s509, %s510
      %p519 = scmp.eq.s32.totalorder %s48, 0
      %p520 = por %p518, %p519
      %p521 = scmp.ne.s32.totalorder %s509, %s510
      %p522 = scmp.eq.s32.totalorder %s49, 1
      %p523 = por %p521, %p522
      %p525 = scmp.ne.s32.totalorder %s510, %s524
      %p526 = scmp.eq.s32.totalorder %s49, 0
      %p527 = por %p525, %p526
      %s529 = sadd.s32 %s528, 1
      %p532 = scmp.eq.s32.totalorder %s43, 1
      %p533 = scmp.ne.s32.totalorder %s528, %s530
      %p534 = scmp.eq.s32.totalorder %s43, 0
      %p535 = por %p533, %p534
      %p536 = scmp.ne.s32.totalorder %s528, %s530
      %p537 = scmp.eq.s32.totalorder %s48, 1
      %p538 = por %p536, %p537
      %p539 = scmp.ne.s32.totalorder %s530, %s531
      %p540 = scmp.eq.s32.totalorder %s48, 0
      %p541 = por %p539, %p540
      %p542 = scmp.ne.s32.totalorder %s530, %s531
      %p543 = scmp.eq.s32.totalorder %s49, 1
      %p544 = por %p542, %p543
      %p546 = scmp.ne.s32.totalorder %s531, %s545
      %p547 = scmp.eq.s32.totalorder %s49, 0
      %p548 = por %p546, %p547
      %s550 = sadd.s32 %s549, 1
      %p553 = scmp.eq.s32.totalorder %s43, 1
      %p554 = scmp.ne.s32.totalorder %s549, %s551
      %p555 = scmp.eq.s32.totalorder %s43, 0
      %p556 = por %p554, %p555
      %p557 = scmp.ne.s32.totalorder %s549, %s551
      %p558 = scmp.eq.s32.totalorder %s48, 1
      %p559 = por %p557, %p558
      %p560 = scmp.ne.s32.totalorder %s551, %s552
      %p561 = scmp.eq.s32.totalorder %s48, 0
      %p562 = por %p560, %p561
      %p563 = scmp.ne.s32.totalorder %s551, %s552
      %p564 = scmp.eq.s32.totalorder %s49, 1
      %p565 = por %p563, %p564
      %p567 = scmp.ne.s32.totalorder %s552, %s566
      %p568 = scmp.eq.s32.totalorder %s49, 0
      %p569 = por %p567, %p568
      %s570 = ssub.s32 %s43, %s50
      %p571 = scmp.eq.s32.totalorder %s570, 0
      %s573 = sadd.s32 %s572, 1
      %s574 = scalar_select %p571, %s572, %s573
      %p577 = pneg %p571
      %p578 = scmp.eq.s32.totalorder %s43, 1
      %p579 = por %p577, %p578
      %p580 = scmp.ne.s32.totalorder %s572, %s575
      %p581 = scmp.eq.s32.totalorder %s43, 0
      %p582 = por %p580, %p581
      %p583 = scmp.ne.s32.totalorder %s572, %s575
      %p584 = scmp.eq.s32.totalorder %s48, 1
      %p585 = por %p583, %p584
      %p586 = scmp.ne.s32.totalorder %s575, %s576
      %p587 = scmp.eq.s32.totalorder %s48, 0
      %p588 = por %p586, %p587
      %p589 = scmp.ne.s32.totalorder %s575, %s576
      %p590 = scmp.eq.s32.totalorder %s49, 1
      %p591 = por %p589, %p590
      %p593 = scmp.ne.s32.totalorder %s576, %s592
      %p594 = scmp.eq.s32.totalorder %s49, 0
      %p595 = por %p593, %p594
      %p596 = scmp.le.s32.totalorder 1, %s43
      %p597 = scmp.lt.s32.totalorder %s43, 3
      %p598 = pnand %p596, %p597
      %p599 = pneg %p598
      // Predicated region
      $region9: #{tpu_custom_call.1} parent=5 // pred_check
        _
      $region10: #{tpu_custom_call.1} parent=5 // pred_check_branch
        %601 = sbr.rel (%p598) target = $region12
      $region11: #{tpu_custom_call.1} parent=5 // pred_region
        %s602 = ssub.s32 %s43, 1
        // Predicated region
        $region13: #{tpu_custom_call.1} parent=11 // pred_check
          %p603 = pneg %p116
        $region14: #{tpu_custom_call.1} parent=11 // pred_check_branch
          %605 = sbr.rel (%p603) target = $region16
        $region15: #{tpu_custom_call.1} parent=11 // pred_region
          %s607 = ssub.s32 128, 128
          %608 = vsyncadd [#allocation6], %s607
          %s610 = sshll.u32 [#allocation7], 4
          %s611 = int_to_ptr.vmem [resolvable:$true] %s610
          %613 = dma.hbm_to_vmem [thread:$0]  %s2, 128, %s611, [#allocation6]
        $region16: #{tpu_custom_call.1} parent=11 // pred_fallthru
          _
        // Predicated region
        $region17: #{tpu_custom_call.1} parent=11 // pred_check
          %p614 = pneg %p163
        $region18: #{tpu_custom_call.1} parent=11 // pred_check_branch
          %616 = sbr.rel (%p614) target = $region20
        $region19: #{tpu_custom_call.1} parent=11 // pred_region
          %s618 = ssub.s32 3072, 3072
          %619 = vsyncadd [#allocation9], %s618
          %s620 = sshll.u32 [#allocation8], 4
          %s621 = int_to_ptr.vmem [resolvable:$true] %s620
          %626 = dma.hbm_to_vmem [thread:$0]  %s4, 3072, %s621, [#allocation9], 192, 192, 12
        $region20: #{tpu_custom_call.1} parent=11 // pred_fallthru
          _
        // Predicated region
        $region21: #{tpu_custom_call.1} parent=11 // pred_check
          %p627 = pneg %p184
        $region22: #{tpu_custom_call.1} parent=11 // pred_check_branch
          %629 = sbr.rel (%p627) target = $region24
        $region23: #{tpu_custom_call.1} parent=11 // pred_region
          _
        $region24: #{tpu_custom_call.1} parent=11 // pred_fallthru
          _
        // Predicated region
        $region25: #{tpu_custom_call.1} parent=11 // pred_check
          %p630 = pneg %p205
        $region26: #{tpu_custom_call.1} parent=11 // pred_check_branch
          %632 = sbr.rel (%p630) target = $region28
        $region27: #{tpu_custom_call.1} parent=11 // pred_region
          %s634 = ssub.s32 1024, 1024
          %635 = vsyncadd [#allocation9], %s634
          %s636 = sshll.u32 [#allocation10], 4
          %s637 = int_to_ptr.vmem [resolvable:$true] %s636
          %642 = dma.hbm_to_vmem [thread:$0]  %s6, 1024, %s637, [#allocation9], 64, 64, 4
        $region28: #{tpu_custom_call.1} parent=11 // pred_fallthru
          _
        // Predicated region
        $region29: #{tpu_custom_call.1} parent=11 // pred_check
          %p643 = pneg %p226
        $region30: #{tpu_custom_call.1} parent=11 // pred_check_branch
          %645 = sbr.rel (%p643) target = $region32
        $region31: #{tpu_custom_call.1} parent=11 // pred_region
          _
        $region32: #{tpu_custom_call.1} parent=11 // pred_fallthru
          _
        // Predicated region
        $region33: #{tpu_custom_call.1} parent=11 // pred_check
          %p646 = pneg %p247
        $region34: #{tpu_custom_call.1} parent=11 // pred_check_branch
          %648 = sbr.rel (%p646) target = $region36
        $region35: #{tpu_custom_call.1} parent=11 // pred_region
          %s650 = ssub.s32 1024, 1024
          %651 = vsyncadd [#allocation12], %s650
          %s652 = sshll.u32 [#allocation11], 4
          %s653 = int_to_ptr.vmem [resolvable:$true] %s652
          %658 = dma.hbm_to_vmem [thread:$0]  %s8, 1024, %s653, [#allocation12], 64, 64, 4
        $region36: #{tpu_custom_call.1} parent=11 // pred_fallthru
          _
        // Predicated region
        $region37: #{tpu_custom_call.1} parent=11 // pred_check
          %p659 = pneg %p268
        $region38: #{tpu_custom_call.1} parent=11 // pred_check_branch
          %661 = sbr.rel (%p659) target = $region40
        $region39: #{tpu_custom_call.1} parent=11 // pred_region
          _
        $region40: #{tpu_custom_call.1} parent=11 // pred_fallthru
          _
        // Predicated region
        $region41: #{tpu_custom_call.1} parent=11 // pred_check
          %p662 = pneg %p289
        $region42: #{tpu_custom_call.1} parent=11 // pred_check_branch
          %664 = sbr.rel (%p662) target = $region44
        $region43: #{tpu_custom_call.1} parent=11 // pred_region
          %s666 = ssub.s32 2048, 2048
          %667 = vsyncadd [#allocation12], %s666
          %s668 = sshll.u32 [#allocation13], 4
          %s669 = int_to_ptr.vmem [resolvable:$true] %s668
          %674 = dma.hbm_to_vmem [thread:$0]  %s10, 2048, %s669, [#allocation12], 128, 128, 8
        $region44: #{tpu_custom_call.1} parent=11 // pred_fallthru
          _
        // Predicated region
        $region45: #{tpu_custom_call.1} parent=11 // pred_check
          %p675 = pneg %p310
        $region46: #{tpu_custom_call.1} parent=11 // pred_check_branch
          %677 = sbr.rel (%p675) target = $region48
        $region47: #{tpu_custom_call.1} parent=11 // pred_region
          _
        $region48: #{tpu_custom_call.1} parent=11 // pred_fallthru
          _
        // Predicated region
        $region49: #{tpu_custom_call.1} parent=11 // pred_check
          %p678 = pneg %p331
        $region50: #{tpu_custom_call.1} parent=11 // pred_check_branch
          %680 = sbr.rel (%p678) target = $region52
        $region51: #{tpu_custom_call.1} parent=11 // pred_region
          %s682 = ssub.s32 1024, 1024
          %683 = vsyncadd [#allocation15], %s682
          %s684 = sshll.u32 [#allocation14], 4
          %s685 = int_to_ptr.vmem [resolvable:$true] %s684
          %690 = dma.hbm_to_vmem [thread:$0]  %s12, 1024, %s685, [#allocation15], 64, 64, 4
        $region52: #{tpu_custom_call.1} parent=11 // pred_fallthru
          _
        // Predicated region
        $region53: #{tpu_custom_call.1} parent=11 // pred_check
          %p691 = pneg %p352
        $region54: #{tpu_custom_call.1} parent=11 // pred_check_branch
          %693 = sbr.rel (%p691) target = $region56
        $region55: #{tpu_custom_call.1} parent=11 // pred_region
          _
        $region56: #{tpu_custom_call.1} parent=11 // pred_fallthru
          _
        // Predicated region
        $region57: #{tpu_custom_call.1} parent=11 // pred_check
          %p694 = pneg %p373
        $region58: #{tpu_custom_call.1} parent=11 // pred_check_branch
          %696 = sbr.rel (%p694) target = $region60
        $region59: #{tpu_custom_call.1} parent=11 // pred_region
          _
        $region60: #{tpu_custom_call.1} parent=11 // pred_fallthru
          _
        // Predicated region
        $region61: #{tpu_custom_call.1} parent=11 // pred_check
          %p697 = pneg %p394
        $region62: #{tpu_custom_call.1} parent=11 // pred_check_branch
          %699 = sbr.rel (%p697) target = $region64
        $region63: #{tpu_custom_call.1} parent=11 // pred_region
          _
        $region64: #{tpu_custom_call.1} parent=11 // pred_fallthru
          _
        // Predicated region
        $region65: #{tpu_custom_call.1} parent=11 // pred_check
          %p700 = pneg %p415
        $region66: #{tpu_custom_call.1} parent=11 // pred_check_branch
          %702 = sbr.rel (%p700) target = $region68
        $region67: #{tpu_custom_call.1} parent=11 // pred_region
          _
        $region68: #{tpu_custom_call.1} parent=11 // pred_fallthru
          _
        // Predicated region
        $region69: #{tpu_custom_call.1} parent=11 // pred_check
          %p703 = pneg %p436
        $region70: #{tpu_custom_call.1} parent=11 // pred_check_branch
          %705 = sbr.rel (%p703) target = $region72
        $region71: #{tpu_custom_call.1} parent=11 // pred_region
          _
        $region72: #{tpu_custom_call.1} parent=11 // pred_fallthru
          _
        // Predicated region
        $region73: #{tpu_custom_call.1} parent=11 // pred_check
          %p706 = pneg %p457
        $region74: #{tpu_custom_call.1} parent=11 // pred_check_branch
          %708 = sbr.rel (%p706) target = $region76
        $region75: #{tpu_custom_call.1} parent=11 // pred_region
          _
        $region76: #{tpu_custom_call.1} parent=11 // pred_fallthru
          _
        // Predicated region
        $region77: #{tpu_custom_call.1} parent=11 // pred_check
          %p709 = pneg %p478
        $region78: #{tpu_custom_call.1} parent=11 // pred_check_branch
          %711 = sbr.rel (%p709) target = $region80
        $region79: #{tpu_custom_call.1} parent=11 // pred_region
          _
        $region80: #{tpu_custom_call.1} parent=11 // pred_fallthru
          _
        // Predicated region
        $region81: #{tpu_custom_call.1} parent=11 // pred_check
          %p712 = pneg %p499
        $region82: #{tpu_custom_call.1} parent=11 // pred_check_branch
          %714 = sbr.rel (%p712) target = $region84
        $region83: #{tpu_custom_call.1} parent=11 // pred_region
          %s716 = ssub.s32 2048, 2048
          %717 = vsyncadd [#allocation15], %s716
          %s718 = sshll.u32 [#allocation16], 4
          %s719 = int_to_ptr.vmem [resolvable:$true] %s718
          %724 = dma.hbm_to_vmem [thread:$0]  %s20, 2048, %s719, [#allocation15], 128, 128, 8
        $region84: #{tpu_custom_call.1} parent=11 // pred_fallthru
          _
        // Predicated region
        $region85: #{tpu_custom_call.1} parent=11 // pred_check
          %p725 = pneg %p520
        $region86: #{tpu_custom_call.1} parent=11 // pred_check_branch
          %727 = sbr.rel (%p725) target = $region88
        $region87: #{tpu_custom_call.1} parent=11 // pred_region
          _
        $region88: #{tpu_custom_call.1} parent=11 // pred_fallthru
          _
        // Predicated region
        $region89: #{tpu_custom_call.1} parent=11 // pred_check
          %p728 = pneg %p541
        $region90: #{tpu_custom_call.1} parent=11 // pred_check_branch
          %730 = sbr.rel (%p728) target = $region92
        $region91: #{tpu_custom_call.1} parent=11 // pred_region
          %s732 = ssub.s32 2048, 2048
          %733 = vsyncadd [#allocation18], %s732
          %s734 = sshll.u32 [#allocation17], 4
          %s735 = int_to_ptr.vmem [resolvable:$true] %s734
          %740 = dma.hbm_to_vmem [thread:$0]  %s22, 2048, %s735, [#allocation18], 64, 64, 4
        $region92: #{tpu_custom_call.1} parent=11 // pred_fallthru
          _
        // Predicated region
        $region93: #{tpu_custom_call.1} parent=11 // pred_check
          %p741 = pneg %p562
        $region94: #{tpu_custom_call.1} parent=11 // pred_check_branch
          %743 = sbr.rel (%p741) target = $region96
        $region95: #{tpu_custom_call.1} parent=11 // pred_region
          _
        $region96: #{tpu_custom_call.1} parent=11 // pred_fallthru
          _
      $region12: #{tpu_custom_call.1} parent=5 // pred_fallthru
        _
      %p744 = scmp.lt.s32.totalorder %s43, 2
      // Predicated region
      $region97: #{tpu_custom_call.1} parent=5 // pred_check
        %p745 = pneg %p744
      $region98: #{tpu_custom_call.1} parent=5 // pred_check_branch
        %747 = sbr.rel (%p745) target = $region100
      $region99: #{tpu_custom_call.1} parent=5 // pred_region
        // Predicated region
        $region101: #{tpu_custom_call.1} parent=99 // pred_check
          %p748 = pneg %p63
        $region102: #{tpu_custom_call.1} parent=99 // pred_check_branch
          %750 = sbr.rel (%p748) target = $region104
        $region103: #{tpu_custom_call.1} parent=99 // pred_region
          %s751 = sand.u32 %s53, 1
          %s752 = scalar_lea.sflag [#allocation3], %s751
          %s753 = sand.u32 %s53, 1
          %s754 = smul.addr %s753, 8
          %s755 = scalar_lea.vmem [#allocation2], %s754
          %s757 = ssub.s32 128, 128
          %758 = vsyncadd %s752, %s757
          %s759 = smul.addr %s43, 128
          %s760 = scalar_lea.hbm %s0, %s759
          %s762 = sshll.u32 %s755, 4
          %s763 = int_to_ptr.vmem [resolvable:$true] %s762
          %765 = dma.hbm_to_vmem [thread:$0]  %s760, 128, %s763, %s752
        $region104: #{tpu_custom_call.1} parent=99 // pred_fallthru
          _
        // Predicated region
        $region105: #{tpu_custom_call.1} parent=99 // pred_check
          %p766 = pneg %p89
        $region106: #{tpu_custom_call.1} parent=99 // pred_check_branch
          %768 = sbr.rel (%p766) target = $region108
        $region107: #{tpu_custom_call.1} parent=99 // pred_region
          %s769 = sand.u32 %s43, 1
          %s770 = scalar_lea.sflag [#allocation6], %s769
          %s771 = sand.u32 %s79, 1
          %s772 = smul.addr %s771, 8
          %s773 = scalar_lea.vmem [#allocation5], %s772
          %s775 = ssub.s32 128, 128
          %776 = vsyncadd %s770, %s775
          %s777 = smul.addr %s43, 128
          %s778 = scalar_lea.hbm %s1, %s777
          %s780 = sshll.u32 %s773, 4
          %s781 = int_to_ptr.vmem [resolvable:$true] %s780
          %783 = dma.hbm_to_vmem [thread:$0]  %s778, 128, %s781, %s770
        $region108: #{tpu_custom_call.1} parent=99 // pred_fallthru
          _
        // Predicated region
        $region109: #{tpu_custom_call.1} parent=99 // pred_check
          %p784 = pneg %p136
        $region110: #{tpu_custom_call.1} parent=99 // pred_check_branch
          %786 = sbr.rel (%p784) target = $region112
        $region111: #{tpu_custom_call.1} parent=99 // pred_region
          %p787 = scmp.lt.s32.totalorder %s43, 1
          %s788 = scalar_select %p787, %s43, 1
          %s789 = scalar_lea.vmem %s3, %s788
        $region112: #{tpu_custom_call.1} parent=99 // pred_fallthru
          _
      $region100: #{tpu_custom_call.1} parent=5 // pred_fallthru
        _
      %p790 = scmp.le.s32.totalorder 1, %s43
      %p791 = scmp.lt.s32.totalorder %s43, 3
      %p792 = pnand %p790, %p791
      %p793 = pneg %p792
      // Predicated region
      $region113: #{tpu_custom_call.1} parent=5 // pred_check
        _
      $region114: #{tpu_custom_call.1} parent=5 // pred_check_branch
        %795 = sbr.rel (%p792) target = $region116
      $region115: #{tpu_custom_call.1} parent=5 // pred_region
        %s796 = ssub.s32 %s43, 1
        %s797 = sand.u32 %s56, 1
        %s798 = scalar_lea.sflag [#allocation3], %s797
        %s799 = sand.u32 %s56, 1
        %s800 = smul.addr %s799, 8
        %s801 = scalar_lea.vmem [#allocation2], %s800
        // Predicated region
        $region117: #{tpu_custom_call.1} parent=115 // pred_check
          %p802 = pneg %p69
        $region118: #{tpu_custom_call.1} parent=115 // pred_check_branch
          %804 = sbr.rel (%p802) target = $region120
        $region119: #{tpu_custom_call.1} parent=115 // pred_region
          %805 = dma.done %s798, 128
        $region120: #{tpu_custom_call.1} parent=115 // pred_fallthru
          _
        %s806 = sand.u32 %s48, 1
        %s807 = scalar_lea.sflag [#allocation6], %s806
        %s808 = sand.u32 %s82, 1
        %s809 = smul.addr %s808, 8
        %s810 = scalar_lea.vmem [#allocation5], %s809
        // Predicated region
        $region121: #{tpu_custom_call.1} parent=115 // pred_check
          %p811 = pneg %p95
        $region122: #{tpu_custom_call.1} parent=115 // pred_check_branch
          %813 = sbr.rel (%p811) target = $region124
        $region123: #{tpu_custom_call.1} parent=115 // pred_region
          %814 = dma.done %s807, 128
        $region124: #{tpu_custom_call.1} parent=115 // pred_fallthru
          _
        // Predicated region
        $region125: #{tpu_custom_call.1} parent=115 // pred_check
          %p815 = pneg %p116
        $region126: #{tpu_custom_call.1} parent=115 // pred_check_branch
          %817 = sbr.rel (%p815) target = $region128
        $region127: #{tpu_custom_call.1} parent=115 // pred_region
          %818 = dma.done [#allocation6], 128
        $region128: #{tpu_custom_call.1} parent=115 // pred_fallthru
          _
        // Predicated region
        $region129: #{tpu_custom_call.1} parent=115 // pred_check
          %p819 = pneg %p163
        $region130: #{tpu_custom_call.1} parent=115 // pred_check_branch
          %821 = sbr.rel (%p819) target = $region132
        $region131: #{tpu_custom_call.1} parent=115 // pred_region
          %822 = dma.done [#allocation9], 3072
        $region132: #{tpu_custom_call.1} parent=115 // pred_fallthru
          _
        // Predicated region
        $region133: #{tpu_custom_call.1} parent=115 // pred_check
          %p823 = pneg %p205
        $region134: #{tpu_custom_call.1} parent=115 // pred_check_branch
          %825 = sbr.rel (%p823) target = $region136
        $region135: #{tpu_custom_call.1} parent=115 // pred_region
          %826 = dma.done [#allocation9], 1024
        $region136: #{tpu_custom_call.1} parent=115 // pred_fallthru
          _
        // Predicated region
        $region137: #{tpu_custom_call.1} parent=115 // pred_check
          %p827 = pneg %p247
        $region138: #{tpu_custom_call.1} parent=115 // pred_check_branch
          %829 = sbr.rel (%p827) target = $region140
        $region139: #{tpu_custom_call.1} parent=115 // pred_region
          %830 = dma.done [#allocation12], 1024
        $region140: #{tpu_custom_call.1} parent=115 // pred_fallthru
          _
        // Predicated region
        $region141: #{tpu_custom_call.1} parent=115 // pred_check
          %p831 = pneg %p289
        $region142: #{tpu_custom_call.1} parent=115 // pred_check_branch
          %833 = sbr.rel (%p831) target = $region144
        $region143: #{tpu_custom_call.1} parent=115 // pred_region
          %834 = dma.done [#allocation12], 2048
        $region144: #{tpu_custom_call.1} parent=115 // pred_fallthru
          _
        // Predicated region
        $region145: #{tpu_custom_call.1} parent=115 // pred_check
          %p835 = pneg %p331
        $region146: #{tpu_custom_call.1} parent=115 // pred_check_branch
          %837 = sbr.rel (%p835) target = $region148
        $region147: #{tpu_custom_call.1} parent=115 // pred_region
          %838 = dma.done [#allocation15], 1024
        $region148: #{tpu_custom_call.1} parent=115 // pred_fallthru
          _
        // Predicated region
        $region149: #{tpu_custom_call.1} parent=115 // pred_check
          %p839 = pneg %p499
        $region150: #{tpu_custom_call.1} parent=115 // pred_check_branch
          %841 = sbr.rel (%p839) target = $region152
        $region151: #{tpu_custom_call.1} parent=115 // pred_region
          %842 = dma.done [#allocation15], 2048
        $region152: #{tpu_custom_call.1} parent=115 // pred_fallthru
          _
        // Predicated region
        $region153: #{tpu_custom_call.1} parent=115 // pred_check
          %p843 = pneg %p541
        $region154: #{tpu_custom_call.1} parent=115 // pred_check_branch
          %845 = sbr.rel (%p843) target = $region156
        $region155: #{tpu_custom_call.1} parent=115 // pred_region
          %846 = dma.done [#allocation18], 2048
        $region156: #{tpu_custom_call.1} parent=115 // pred_fallthru
          _
        %s847 = sand.u32 %s56, 1
        %s848 = scalar_lea.sflag [#allocation3], %s847
        %s849 = sand.u32 %s56, 1
        %s850 = smul.addr %s849, 8
        %s851 = scalar_lea.vmem [#allocation2], %s850
        %p852 = pneg %p69
        %p853 = pneg %p66
        %s854 = sand.u32 %s48, 1
        %s855 = scalar_lea.sflag [#allocation6], %s854
        %s856 = sand.u32 %s82, 1
        %s857 = smul.addr %s856, 8
        %s858 = scalar_lea.vmem [#allocation5], %s857
        %p859 = pneg %p95
        %p860 = pneg %p92
        %p861 = pneg %p116
        %p862 = pneg %p113
        %p863 = scmp.lt.s32.totalorder %s48, 1
        %s864 = scalar_select %p863, %s48, 1
        %s865 = scalar_lea.vmem %s3, %s864
        %p866 = pneg %p142
        %p867 = pneg %p139
        %p868 = pneg %p163
        %p869 = pneg %p160
        %p870 = pneg %p184
        %p871 = pneg %p181
        %p872 = pneg %p205
        %p873 = pneg %p202
        %p874 = pneg %p226
        %p875 = pneg %p223
        %p876 = pneg %p247
        %p877 = pneg %p244
        %p878 = pneg %p268
        %p879 = pneg %p265
        %p880 = pneg %p289
        %p881 = pneg %p286
        %p882 = pneg %p310
        %p883 = pneg %p307
        %p884 = pneg %p331
        %p885 = pneg %p328
        %p886 = pneg %p352
        %p887 = pneg %p349
        %p888 = pneg %p373
        %p889 = pneg %p370
        %p890 = pneg %p394
        %p891 = pneg %p391
        %p892 = pneg %p415
        %p893 = pneg %p412
        %p894 = pneg %p436
        %p895 = pneg %p433
        %p896 = pneg %p457
        %p897 = pneg %p454
        %p898 = pneg %p478
        %p899 = pneg %p475
        %p900 = pneg %p499
        %p901 = pneg %p496
        %p902 = pneg %p520
        %p903 = pneg %p517
        %p904 = pneg %p541
        %p905 = pneg %p538
        %p906 = pneg %p562
        %p907 = pneg %p559
        %p908 = pneg %p588
        %p909 = pneg %p585
        %s910 = sand.u32 %s575, 1
        %s911 = scalar_lea.sflag [#allocation4], %s910
        %s912 = sand.u32 %s575, 1
        %s913 = smul.addr %s912, 8
        %s914 = scalar_lea.vmem [#allocation19], %s913
        %p915 = scmp.lt.s32.totalorder %s48, 1
        %s916 = scalar_select %p915, %s48, 1
        %s917 = scalar_lea.vmem %s3, %s916
        %v919 = vld [vmem:[%s801] sm:$0xff]
        %v920 = vld [vmem:[#allocation7] sm:$0xff]
        %v921 = vld [vmem:[%s917] sm:$0x1]
        %v923 = vlaneseq
        %v924 = vshrl.u32 %v923, 7
        %v925 = vsub.s32 0, %v924
        %v926 = vrot.slane %v921, %v925
        %v928 = vadd.f32 %v920, %v926
        %v929 = vpack.c.bf16 %v919, %v919
        %v930 = vld [vmem:[#allocation8] sm:$0xff]
        %v931 = vld [vmem:[#allocation8 + $0x8] sm:$0xf]
        %v932 = vld [vmem:[#allocation8 + $0xc] sm:$0xff]
        %v933 = vld [vmem:[#allocation8 + $0x14] sm:$0xf]
        %v934 = vld [vmem:[#allocation8 + $0x18] sm:$0xff]
        %v935 = vld [vmem:[#allocation8 + $0x20] sm:$0xf]
        %v936 = vld [vmem:[#allocation8 + $0x24] sm:$0xff]
        %v937 = vld [vmem:[#allocation8 + $0x2c] sm:$0xf]
        %v938 = vld [vmem:[#allocation8 + $0x30] sm:$0xff]
        %v939 = vld [vmem:[#allocation8 + $0x38] sm:$0xf]
        %v940 = vld [vmem:[#allocation8 + $0x3c] sm:$0xff]
        %v941 = vld [vmem:[#allocation8 + $0x44] sm:$0xf]
        %v942 = vld [vmem:[#allocation8 + $0x48] sm:$0xff]
        %v943 = vld [vmem:[#allocation8 + $0x50] sm:$0xf]
        %v944 = vld [vmem:[#allocation8 + $0x54] sm:$0xff]
        %v945 = vld [vmem:[#allocation8 + $0x5c] sm:$0xf]
        %v946 = vld [vmem:[#allocation8 + $0x60] sm:$0xff]
        %v947 = vld [vmem:[#allocation8 + $0x68] sm:$0xf]
        %v948 = vld [vmem:[#allocation8 + $0x6c] sm:$0xff]
        %v949 = vld [vmem:[#allocation8 + $0x74] sm:$0xf]
        %v950 = vld [vmem:[#allocation8 + $0x78] sm:$0xff]
        %v951 = vld [vmem:[#allocation8 + $0x80] sm:$0xf]
        %v952 = vld [vmem:[#allocation8 + $0x84] sm:$0xff]
        %v953 = vld [vmem:[#allocation8 + $0x8c] sm:$0xf]
        %v954 = vld [vmem:[#allocation8 + $0x90] sm:$0xff]
        %v955 = vld [vmem:[#allocation8 + $0x98] sm:$0xf]
        %v956 = vld [vmem:[#allocation8 + $0x9c] sm:$0xff]
        %v957 = vld [vmem:[#allocation8 + $0xa4] sm:$0xf]
        %v958 = vld [vmem:[#allocation8 + $0xa8] sm:$0xff]
        %v959 = vld [vmem:[#allocation8 + $0xb0] sm:$0xf]
        %v960 = vld [vmem:[#allocation8 + $0xb4] sm:$0xff]
        %v961 = vld [vmem:[#allocation8 + $0xbc] sm:$0xf]
        %v962 = vld [vmem:[%s5] sm:$0x7]
        %v964 = vlaneseq
        %v965 = vshrl.u32 %v964, 7
        %v966 = vsub.s32 0, %v965
        %v967 = vrot.slane %v962, %v966
        %v968 = vlaneseq
        %v969 = vshrl.u32 %v968, 7
        %v970 = vsub.s32 1, %v969
        %v971 = vrot.slane %v962, %v970
        %v972 = vlaneseq
        %v973 = vshrl.u32 %v972, 7
        %v974 = vsub.s32 2, %v973
        %v975 = vrot.slane %v962, %v974
        %v1011 = vunpack.c.l.b16 %v930
        %v1012 = vunpack.c.h.b16 %v930
        %v1013 = vunpack.c.l.b16 %v931
        %v1014 = vunpack.c.l.b16 %v932
        %v1015 = vunpack.c.h.b16 %v932
        %v1016 = vunpack.c.l.b16 %v933
        %v1017 = vunpack.c.l.b16 %v934
        %v1018 = vunpack.c.h.b16 %v934
        %v1019 = vunpack.c.l.b16 %v935
        %v1020 = vunpack.c.l.b16 %v936
        %v1021 = vunpack.c.h.b16 %v936
        %v1022 = vunpack.c.l.b16 %v937
        %v1023 = vunpack.c.l.b16 %v938
        %v1024 = vunpack.c.h.b16 %v938
        %v1025 = vunpack.c.l.b16 %v939
        %v1026 = vunpack.c.l.b16 %v940
        %v1027 = vunpack.c.h.b16 %v940
        %v1028 = vunpack.c.l.b16 %v941
        %v1029 = vunpack.c.l.b16 %v942
        %v1030 = vunpack.c.h.b16 %v942
        %v1031 = vunpack.c.l.b16 %v943
        %v1032 = vunpack.c.l.b16 %v944
        %v1033 = vunpack.c.h.b16 %v944
        %v1034 = vunpack.c.l.b16 %v945
        %v1035 = vunpack.c.l.b16 %v946
        %v1036 = vunpack.c.h.b16 %v946
        %v1037 = vunpack.c.l.b16 %v947
        %v1038 = vunpack.c.l.b16 %v948
        %v1039 = vunpack.c.h.b16 %v948
        %v1040 = vunpack.c.l.b16 %v949
        %v1041 = vunpack.c.l.b16 %v950
        %v1042 = vunpack.c.h.b16 %v950
        %v1043 = vunpack.c.l.b16 %v951
        %v1044 = vunpack.c.l.b16 %v952
        %v1045 = vunpack.c.h.b16 %v952
        %v1046 = vunpack.c.l.b16 %v953
        %v1047 = vunpack.c.l.b16 %v954
        %v1048 = vunpack.c.h.b16 %v954
        %v1049 = vunpack.c.l.b16 %v955
        %v1050 = vunpack.c.l.b16 %v956
        %v1051 = vunpack.c.h.b16 %v956
        %v1052 = vunpack.c.l.b16 %v957
        %v1053 = vunpack.c.l.b16 %v958
        %v1054 = vunpack.c.h.b16 %v958
        %v1055 = vunpack.c.l.b16 %v959
        %v1056 = vunpack.c.l.b16 %v960
        %v1057 = vunpack.c.h.b16 %v960
        %v1058 = vunpack.c.l.b16 %v961
        %v1059 = vpack.c.b16 %v1014, %v1011
        %v1060 = vpack.c.b16 %v1015, %v1012
        %v1061 = vpack.c.b16 %v1016, %v1013
        %v1062 = vpack.c.b16 %v1020, %v1017
        %v1063 = vpack.c.b16 %v1021, %v1018
        %v1064 = vpack.c.b16 %v1022, %v1019
        %v1065 = vpack.c.b16 %v1026, %v1023
        %v1066 = vpack.c.b16 %v1027, %v1024
        %v1067 = vpack.c.b16 %v1028, %v1025
        %v1068 = vpack.c.b16 %v1032, %v1029
        %v1069 = vpack.c.b16 %v1033, %v1030
        %v1070 = vpack.c.b16 %v1034, %v1031
        %v1071 = vpack.c.b16 %v1038, %v1035
        %v1072 = vpack.c.b16 %v1039, %v1036
        %v1073 = vpack.c.b16 %v1040, %v1037
        %v1074 = vpack.c.b16 %v1044, %v1041
        %v1075 = vpack.c.b16 %v1045, %v1042
        %v1076 = vpack.c.b16 %v1046, %v1043
        %v1077 = vpack.c.b16 %v1050, %v1047
        %v1078 = vpack.c.b16 %v1051, %v1048
        %v1079 = vpack.c.b16 %v1052, %v1049
        %v1080 = vpack.c.b16 %v1056, %v1053
        %v1081 = vpack.c.b16 %v1057, %v1054
        %v1082 = vpack.c.b16 %v1058, %v1055
        %1107 = vmatprep.subr.bf16.mxu0 %v1081
        %1108 = vmatpush1.bf16.msra.mxu0 %v1080
        %1109 = vmatprep.subr.bf16.mxu0 %v1078
        %1110 = vmatpush1.bf16.msra.mxu0 %v1077
        %1111 = vmatprep.subr.bf16.mxu0 %v1075
        %1112 = vmatpush1.bf16.msra.mxu0 %v1074
        %1113 = vmatprep.subr.bf16.mxu0 %v1072
        %1114 = vmatpush1.bf16.msra.mxu0 %v1071
        %1115 = vmatprep.subr.bf16.mxu0 %v1069
        %1116 = vmatpush1.bf16.msra.mxu0 %v1068
        %1117 = vmatprep.subr.bf16.mxu0 %v1066
        %1118 = vmatpush1.bf16.msra.mxu0 %v1065
        %1119 = vmatprep.subr.bf16.mxu0 %v1063
        %1120 = vmatpush1.bf16.msra.mxu0 %v1062
        %1121 = vmatprep.subr.bf16.mxu0 %v1060
        %1122 = vmatpush1.bf16.msra.mxu0 %v1059
        %1123 = vmatprep.subr.bf16.mxu0 0
        %1124 = vmatpush2.bf16.msra.mxu0 0
        %1125 = vmatprep.subr.bf16.mxu0 0
        %1126 = vmatpush2.bf16.msra.mxu0 0
        %1127 = vmatprep.subr.bf16.mxu0 0
        %1128 = vmatpush2.bf16.msra.mxu0 0
        %1129 = vmatprep.subr.bf16.mxu0 0
        %1130 = vmatpush2.bf16.msra.mxu0 0
        %1131 = vmatprep.subr.bf16.mxu0 0
        %1132 = vmatpush2.bf16.msra.mxu0 0
        %1133 = vmatprep.subr.bf16.mxu0 0
        %1134 = vmatpush2.bf16.msra.mxu0 0
        %1135 = vmatprep.subr.bf16.mxu0 0
        %1136 = vmatpush2.bf16.msra.mxu0 0
        %1137 = vmatprep.subr.bf16.mxu0 0
        %1138 = vmatpush2.bf16.msra.mxu0 0
        %1139 = vmatprep.mubr.bf16.mxu0 0
        %1140 = vmatmul.mubr.bf16.gmra.mxu0 %v929
        %v1141 = vpop.f32.mrf.mxu0
        %v1142 = vadd.f32 %v967, %v1141
        %v1143 = vpop.f32.mrf.mxu0
        %v1144 = vadd.f32 %v971, %v1143
        %v1145 = vpop.f32.mrf.mxu0
        %v1146 = vpop.f32.mrf.mxu0
        %1147 = vdwg.mxu0
        %1148 = vmatprep.subr.bf16.mxu0 0
        %1149 = vmatpush1.bf16.msra.mxu0 %v1082
        %1150 = vmatprep.subr.bf16.mxu0 0
        %1151 = vmatpush1.bf16.msra.mxu0 %v1079
        %1152 = vmatprep.subr.bf16.mxu0 0
        %1153 = vmatpush1.bf16.msra.mxu0 %v1076
        %1154 = vmatprep.subr.bf16.mxu0 0
        %1155 = vmatpush1.bf16.msra.mxu0 %v1073
        %1156 = vmatprep.subr.bf16.mxu0 0
        %1157 = vmatpush1.bf16.msra.mxu0 %v1070
        %1158 = vmatprep.subr.bf16.mxu0 0
        %1159 = vmatpush1.bf16.msra.mxu0 %v1067
        %1160 = vmatprep.subr.bf16.mxu0 0
        %1161 = vmatpush1.bf16.msra.mxu0 %v1064
        %1162 = vmatprep.subr.bf16.mxu0 0
        %1163 = vmatpush1.bf16.msra.mxu0 %v1061
        %1164 = vmatprep.subr.bf16.mxu0 0
        %1165 = vmatpush2.bf16.msra.mxu0 0
        %1166 = vmatprep.subr.bf16.mxu0 0
        %1167 = vmatpush2.bf16.msra.mxu0 0
        %1168 = vmatprep.subr.bf16.mxu0 0
        %1169 = vmatpush2.bf16.msra.mxu0 0
        %1170 = vmatprep.subr.bf16.mxu0 0
        %1171 = vmatpush2.bf16.msra.mxu0 0
        %1172 = vmatprep.subr.bf16.mxu0 0
        %1173 = vmatpush2.bf16.msra.mxu0 0
        %1174 = vmatprep.subr.bf16.mxu0 0
        %1175 = vmatpush2.bf16.msra.mxu0 0
        %1176 = vmatprep.subr.bf16.mxu0 0
        %1177 = vmatpush2.bf16.msra.mxu0 0
        %1178 = vmatprep.subr.bf16.mxu0 0
        %1179 = vmatpush2.bf16.msra.mxu0 0
        %1180 = vmatprep.mubr.bf16.mxu0 0
        %1181 = vmatmul.mubr.bf16.gmra.mxu0 %v929
        %v1182 = vpop.f32.mrf.mxu0
        %v1183 = vadd.f32 %v975, %v1182
        %v1184 = vpop.f32.mrf.mxu0
        %v1185 = vpop.f32.mrf.mxu0
        %v1186 = vpop.f32.mrf.mxu0
        %1187 = vdwg.mxu0
        %v1188 = vpack.c.bf16 %v1142, %v1142
        %v1189 = vpack.c.bf16 %v1144, %v1144
        %v1190 = vpack.c.bf16 %v1183, %v1183
        %vm1191 = vcmask 261120
        %v1193 = vsel %vm1191, %v1188, 0
        %v1196 = vsel %vm1191, %v1189, 0
        %1198 = vmatprep.subr.bf16.mxu0 0
        %1199 = vmatpush1.bf16.xpose.msra.mxu0 0
        %1200 = vmatprep.subr.bf16.mxu0 0
        %1201 = vmatpush1.bf16.xpose.msra.mxu0 0
        %1202 = vmatprep.subr.bf16.mxu0 0
        %1203 = vmatpush1.bf16.xpose.msra.mxu0 0
        %1204 = vmatprep.subr.bf16.mxu0 0
        %1205 = vmatpush1.bf16.xpose.msra.mxu0 0
        %1206 = vmatprep.subr.bf16.mxu0 0
        %1207 = vmatpush1.bf16.xpose.msra.mxu0 0
        %1208 = vmatprep.subr.bf16.mxu0 0
        %1209 = vmatpush1.bf16.xpose.msra.mxu0 0
        %1210 = vmatprep.subr.bf16.mxu0 0
        %1211 = vmatpush1.bf16.xpose.msra.mxu0 0
        %1212 = vmatprep.subr.bf16.mxu0 0
        %1213 = vmatpush1.bf16.xpose.msra.mxu0 %v1196
        %1214 = vmatprep.subr.bf16.mxu0 0
        %1215 = vmatpush2.bf16.xpose.msra.mxu0 0
        %1216 = vmatprep.subr.bf16.mxu0 0
        %1217 = vmatpush2.bf16.xpose.msra.mxu0 0
        %1218 = vmatprep.subr.bf16.mxu0 0
        %1219 = vmatpush2.bf16.xpose.msra.mxu0 0
        %1220 = vmatprep.subr.bf16.mxu0 0
        %1221 = vmatpush2.bf16.xpose.msra.mxu0 0
        %1222 = vmatprep.subr.bf16.mxu0 0
        %1223 = vmatpush2.bf16.xpose.msra.mxu0 0
        %1224 = vmatprep.subr.bf16.mxu0 0
        %1225 = vmatpush2.bf16.xpose.msra.mxu0 0
        %1226 = vmatprep.subr.bf16.mxu0 0
        %1227 = vmatpush2.bf16.xpose.msra.mxu0 0
        %1228 = vmatprep.subr.bf16.mxu0 0
        %1229 = vmatpush2.bf16.xpose.msra.mxu0 0
        %1230 = vmatprep.mubr.bf16.mxu0 0
        %1231 = vmatmul.mubr.bf16.gmra.mxu0 %v1193
        %v1232 = vpop.f32.mrf.mxu0
        %v1233 = vadd.f32 0.0, %v1232
        %v1234 = vpop.f32.mrf.mxu0
        %v1235 = vpop.f32.mrf.mxu0
        %v1236 = vpop.f32.mrf.mxu0
        %1237 = vdwg.mxu0
        %v1238 = vmul.f32 %v1233, 0.17677669
        %v1239 = vadd.f32 %v1238, %v928
        %vm1240 = vcmask 64512
        %v1241 = vsel %vm1240, %v1239, -inf
        %1242 = vmax.xlane.f32.xlu0 %v1241
        %v1243 = vpop.xlane.xlu0 %1242
        %v1244 = vsub.f32 %v1239, %v1243
        %v1245 = vmul.f32 %v1244, 1.442695
        %v1246 = vpow.pop %v1245
        %v1247 = vsel %vm1240, %v1246, 0.0
        %1248 = vadd.xlane.f32.xlu0 %v1247
        %v1249 = vpop.xlane.xlu0 %1248
        %v1250 = vrcp.pop %v1249
        %v1251 = vmul.f32 %v1246, %v1250
        %v1252 = vpack.c.bf16 %v1251, %v1251
        %v1254 = vsel %vm1240, %v1252, 0
        %vm1256 = vcmask 1043456
        %v1258 = vsel %vm1256, %v1190, 0
        %1260 = vmatprep.subr.bf16.mxu0 0
        %1261 = vmatpush1.bf16.msra.mxu0 0
        %1262 = vmatprep.subr.bf16.mxu0 0
        %1263 = vmatpush1.bf16.msra.mxu0 0
        %1264 = vmatprep.subr.bf16.mxu0 0
        %1265 = vmatpush1.bf16.msra.mxu0 0
        %1266 = vmatprep.subr.bf16.mxu0 0
        %1267 = vmatpush1.bf16.msra.mxu0 0
        %1268 = vmatprep.subr.bf16.mxu0 0
        %1269 = vmatpush1.bf16.msra.mxu0 0
        %1270 = vmatprep.subr.bf16.mxu0 0
        %1271 = vmatpush1.bf16.msra.mxu0 0
        %1272 = vmatprep.subr.bf16.mxu0 0
        %1273 = vmatpush1.bf16.msra.mxu0 0
        %1274 = vmatprep.subr.bf16.mxu0 0
        %1275 = vmatpush1.bf16.msra.mxu0 %v1258
        %1276 = vmatprep.subr.bf16.mxu0 0
        %1277 = vmatpush2.bf16.msra.mxu0 0
        %1278 = vmatprep.subr.bf16.mxu0 0
        %1279 = vmatpush2.bf16.msra.mxu0 0
        %1280 = vmatprep.subr.bf16.mxu0 0
        %1281 = vmatpush2.bf16.msra.mxu0 0
        %1282 = vmatprep.subr.bf16.mxu0 0
        %1283 = vmatpush2.bf16.msra.mxu0 0
        %1284 = vmatprep.subr.bf16.mxu0 0
        %1285 = vmatpush2.bf16.msra.mxu0 0
        %1286 = vmatprep.subr.bf16.mxu0 0
        %1287 = vmatpush2.bf16.msra.mxu0 0
        %1288 = vmatprep.subr.bf16.mxu0 0
        %1289 = vmatpush2.bf16.msra.mxu0 0
        %1290 = vmatprep.subr.bf16.mxu0 0
        %1291 = vmatpush2.bf16.msra.mxu0 0
        %1292 = vmatprep.mubr.bf16.mxu0 0
        %1293 = vmatmul.mubr.bf16.gmra.mxu0 %v1254
        %v1294 = vpop.f32.mrf.mxu0
        %v1295 = vadd.f32 0.0, %v1294
        %v1296 = vpop.f32.mrf.mxu0
        %v1297 = vpop.f32.mrf.mxu0
        %v1298 = vpop.f32.mrf.mxu0
        %1299 = vdwg.mxu0
        %v1300 = vpack.c.bf16 %v1295, %v1295
        %1302 = vrot.lane.b32.xlu0 %v1188, 96
        %v1303 = vpop.permute.xlu0 %1302
        %1305 = vrot.lane.b32.xlu0 %v1189, 96
        %v1306 = vpop.permute.xlu0 %1305
        %v1308 = vsel %vm1191, %v1303, 0
        %v1311 = vsel %vm1191, %v1306, 0
        %1313 = vmatprep.subr.bf16.mxu0 0
        %1314 = vmatpush1.bf16.xpose.msra.mxu0 0
        %1315 = vmatprep.subr.bf16.mxu0 0
        %1316 = vmatpush1.bf16.xpose.msra.mxu0 0
        %1317 = vmatprep.subr.bf16.mxu0 0
        %1318 = vmatpush1.bf16.xpose.msra.mxu0 0
        %1319 = vmatprep.subr.bf16.mxu0 0
        %1320 = vmatpush1.bf16.xpose.msra.mxu0 0
        %1321 = vmatprep.subr.bf16.mxu0 0
        %1322 = vmatpush1.bf16.xpose.msra.mxu0 0
        %1323 = vmatprep.subr.bf16.mxu0 0
        %1324 = vmatpush1.bf16.xpose.msra.mxu0 0
        %1325 = vmatprep.subr.bf16.mxu0 0
        %1326 = vmatpush1.bf16.xpose.msra.mxu0 0
        %1327 = vmatprep.subr.bf16.mxu0 0
        %1328 = vmatpush1.bf16.xpose.msra.mxu0 %v1311
        %1329 = vmatprep.subr.bf16.mxu0 0
        %1330 = vmatpush2.bf16.xpose.msra.mxu0 0
        %1331 = vmatprep.subr.bf16.mxu0 0
        %1332 = vmatpush2.bf16.xpose.msra.mxu0 0
        %1333 = vmatprep.subr.bf16.mxu0 0
        %1334 = vmatpush2.bf16.xpose.msra.mxu0 0
        %1335 = vmatprep.subr.bf16.mxu0 0
        %1336 = vmatpush2.bf16.xpose.msra.mxu0 0
        %1337 = vmatprep.subr.bf16.mxu0 0
        %1338 = vmatpush2.bf16.xpose.msra.mxu0 0
        %1339 = vmatprep.subr.bf16.mxu0 0
        %1340 = vmatpush2.bf16.xpose.msra.mxu0 0
        %1341 = vmatprep.subr.bf16.mxu0 0
        %1342 = vmatpush2.bf16.xpose.msra.mxu0 0
        %1343 = vmatprep.subr.bf16.mxu0 0
        %1344 = vmatpush2.bf16.xpose.msra.mxu0 0
        %1345 = vmatprep.mubr.bf16.mxu0 0
        %1346 = vmatmul.mubr.bf16.gmra.mxu0 %v1308
        %v1347 = vpop.f32.mrf.mxu0
        %v1348 = vadd.f32 0.0, %v1347
        %v1349 = vpop.f32.mrf.mxu0
        %v1350 = vpop.f32.mrf.mxu0
        %v1351 = vpop.f32.mrf.mxu0
        %1352 = vdwg.mxu0
        %v1353 = vmul.f32 %v1348, 0.17677669
        %v1354 = vadd.f32 %v1353, %v928
        %v1355 = vsel %vm1240, %v1354, -inf
        %1356 = vmax.xlane.f32.xlu0 %v1355
        %v1357 = vpop.xlane.xlu0 %1356
        %v1358 = vsub.f32 %v1354, %v1357
        %v1359 = vmul.f32 %v1358, 1.442695
        %v1360 = vpow.pop %v1359
        %v1361 = vsel %vm1240, %v1360, 0.0
        %1362 = vadd.xlane.f32.xlu0 %v1361
        %v1363 = vpop.xlane.xlu0 %1362
        %v1364 = vrcp.pop %v1363
        %v1365 = vmul.f32 %v1360, %v1364
        %v1366 = vpack.c.bf16 %v1365, %v1365
        %1368 = vrot.lane.b32.xlu0 %v1190, 96
        %v1369 = vpop.permute.xlu0 %1368
        %v1371 = vsel %vm1240, %v1366, 0
        %v1374 = vsel %vm1256, %v1369, 0
        %1376 = vmatprep.subr.bf16.mxu0 0
        %1377 = vmatpush1.bf16.msra.mxu0 0
        %1378 = vmatprep.subr.bf16.mxu0 0
        %1379 = vmatpush1.bf16.msra.mxu0 0
        %1380 = vmatprep.subr.bf16.mxu0 0
        %1381 = vmatpush1.bf16.msra.mxu0 0
        %1382 = vmatprep.subr.bf16.mxu0 0
        %1383 = vmatpush1.bf16.msra.mxu0 0
        %1384 = vmatprep.subr.bf16.mxu0 0
        %1385 = vmatpush1.bf16.msra.mxu0 0
        %1386 = vmatprep.subr.bf16.mxu0 0
        %1387 = vmatpush1.bf16.msra.mxu0 0
        %1388 = vmatprep.subr.bf16.mxu0 0
        %1389 = vmatpush1.bf16.msra.mxu0 0
        %1390 = vmatprep.subr.bf16.mxu0 0
        %1391 = vmatpush1.bf16.msra.mxu0 %v1374
        %1392 = vmatprep.subr.bf16.mxu0 0
        %1393 = vmatpush2.bf16.msra.mxu0 0
        %1394 = vmatprep.subr.bf16.mxu0 0
        %1395 = vmatpush2.bf16.msra.mxu0 0
        %1396 = vmatprep.subr.bf16.mxu0 0
        %1397 = vmatpush2.bf16.msra.mxu0 0
        %1398 = vmatprep.subr.bf16.mxu0 0
        %1399 = vmatpush2.bf16.msra.mxu0 0
        %1400 = vmatprep.subr.bf16.mxu0 0
        %1401 = vmatpush2.bf16.msra.mxu0 0
        %1402 = vmatprep.subr.bf16.mxu0 0
        %1403 = vmatpush2.bf16.msra.mxu0 0
        %1404 = vmatprep.subr.bf16.mxu0 0
        %1405 = vmatpush2.bf16.msra.mxu0 0
        %1406 = vmatprep.subr.bf16.mxu0 0
        %1407 = vmatpush2.bf16.msra.mxu0 0
        %1408 = vmatprep.mubr.bf16.mxu0 0
        %1409 = vmatmul.mubr.bf16.gmra.mxu0 %v1371
        %v1410 = vpop.f32.mrf.mxu0
        %v1411 = vadd.f32 0.0, %v1410
        %v1412 = vpop.f32.mrf.mxu0
        %v1413 = vpop.f32.mrf.mxu0
        %v1414 = vpop.f32.mrf.mxu0
        %1415 = vdwg.mxu0
        %v1416 = vpack.c.bf16 %v1411, %v1411
        %1417 = vrot.lane.b32.xlu0 %v1188, 64
        %v1418 = vpop.permute.xlu0 %1417
        %1419 = vrot.lane.b32.xlu0 %v1189, 64
        %v1420 = vpop.permute.xlu0 %1419
        %v1422 = vsel %vm1191, %v1418, 0
        %v1425 = vsel %vm1191, %v1420, 0
        %1427 = vmatprep.subr.bf16.mxu0 0
        %1428 = vmatpush1.bf16.xpose.msra.mxu0 0
        %1429 = vmatprep.subr.bf16.mxu0 0
        %1430 = vmatpush1.bf16.xpose.msra.mxu0 0
        %1431 = vmatprep.subr.bf16.mxu0 0
        %1432 = vmatpush1.bf16.xpose.msra.mxu0 0
        %1433 = vmatprep.subr.bf16.mxu0 0
        %1434 = vmatpush1.bf16.xpose.msra.mxu0 0
        %1435 = vmatprep.subr.bf16.mxu0 0
        %1436 = vmatpush1.bf16.xpose.msra.mxu0 0
        %1437 = vmatprep.subr.bf16.mxu0 0
        %1438 = vmatpush1.bf16.xpose.msra.mxu0 0
        %1439 = vmatprep.subr.bf16.mxu0 0
        %1440 = vmatpush1.bf16.xpose.msra.mxu0 0
        %1441 = vmatprep.subr.bf16.mxu0 0
        %1442 = vmatpush1.bf16.xpose.msra.mxu0 %v1425
        %1443 = vmatprep.subr.bf16.mxu0 0
        %1444 = vmatpush2.bf16.xpose.msra.mxu0 0
        %1445 = vmatprep.subr.bf16.mxu0 0
        %1446 = vmatpush2.bf16.xpose.msra.mxu0 0
        %1447 = vmatprep.subr.bf16.mxu0 0
        %1448 = vmatpush2.bf16.xpose.msra.mxu0 0
        %1449 = vmatprep.subr.bf16.mxu0 0
        %1450 = vmatpush2.bf16.xpose.msra.mxu0 0
        %1451 = vmatprep.subr.bf16.mxu0 0
        %1452 = vmatpush2.bf16.xpose.msra.mxu0 0
        %1453 = vmatprep.subr.bf16.mxu0 0
        %1454 = vmatpush2.bf16.xpose.msra.mxu0 0
        %1455 = vmatprep.subr.bf16.mxu0 0
        %1456 = vmatpush2.bf16.xpose.msra.mxu0 0
        %1457 = vmatprep.subr.bf16.mxu0 0
        %1458 = vmatpush2.bf16.xpose.msra.mxu0 0
        %1459 = vmatprep.mubr.bf16.mxu0 0
        %1460 = vmatmul.mubr.bf16.gmra.mxu0 %v1422
        %v1461 = vpop.f32.mrf.mxu0
        %v1462 = vadd.f32 0.0, %v1461
        %v1463 = vpop.f32.mrf.mxu0
        %v1464 = vpop.f32.mrf.mxu0
        %v1465 = vpop.f32.mrf.mxu0
        %1466 = vdwg.mxu0
        %v1467 = vmul.f32 %v1462, 0.17677669
        %v1468 = vadd.f32 %v1467, %v928
        %v1469 = vsel %vm1240, %v1468, -inf
        %1470 = vmax.xlane.f32.xlu0 %v1469
        %v1471 = vpop.xlane.xlu0 %1470
        %v1472 = vsub.f32 %v1468, %v1471
        %v1473 = vmul.f32 %v1472, 1.442695
        %v1474 = vpow.pop %v1473
        %v1475 = vsel %vm1240, %v1474, 0.0
        %1476 = vadd.xlane.f32.xlu0 %v1475
        %v1477 = vpop.xlane.xlu0 %1476
        %v1478 = vrcp.pop %v1477
        %v1479 = vmul.f32 %v1474, %v1478
        %v1480 = vpack.c.bf16 %v1479, %v1479
        %1481 = vrot.lane.b32.xlu0 %v1190, 64
        %v1482 = vpop.permute.xlu0 %1481
        %v1484 = vsel %vm1240, %v1480, 0
        %v1487 = vsel %vm1256, %v1482, 0
        %1489 = vmatprep.subr.bf16.mxu0 0
        %1490 = vmatpush1.bf16.msra.mxu0 0
        %1491 = vmatprep.subr.bf16.mxu0 0
        %1492 = vmatpush1.bf16.msra.mxu0 0
        %1493 = vmatprep.subr.bf16.mxu0 0
        %1494 = vmatpush1.bf16.msra.mxu0 0
        %1495 = vmatprep.subr.bf16.mxu0 0
        %1496 = vmatpush1.bf16.msra.mxu0 0
        %1497 = vmatprep.subr.bf16.mxu0 0
        %1498 = vmatpush1.bf16.msra.mxu0 0
        %1499 = vmatprep.subr.bf16.mxu0 0
        %1500 = vmatpush1.bf16.msra.mxu0 0
        %1501 = vmatprep.subr.bf16.mxu0 0
        %1502 = vmatpush1.bf16.msra.mxu0 0
        %1503 = vmatprep.subr.bf16.mxu0 0
        %1504 = vmatpush1.bf16.msra.mxu0 %v1487
        %1505 = vmatprep.subr.bf16.mxu0 0
        %1506 = vmatpush2.bf16.msra.mxu0 0
        %1507 = vmatprep.subr.bf16.mxu0 0
        %1508 = vmatpush2.bf16.msra.mxu0 0
        %1509 = vmatprep.subr.bf16.mxu0 0
        %1510 = vmatpush2.bf16.msra.mxu0 0
        %1511 = vmatprep.subr.bf16.mxu0 0
        %1512 = vmatpush2.bf16.msra.mxu0 0
        %1513 = vmatprep.subr.bf16.mxu0 0
        %1514 = vmatpush2.bf16.msra.mxu0 0
        %1515 = vmatprep.subr.bf16.mxu0 0
        %1516 = vmatpush2.bf16.msra.mxu0 0
        %1517 = vmatprep.subr.bf16.mxu0 0
        %1518 = vmatpush2.bf16.msra.mxu0 0
        %1519 = vmatprep.subr.bf16.mxu0 0
        %1520 = vmatpush2.bf16.msra.mxu0 0
        %1521 = vmatprep.mubr.bf16.mxu0 0
        %1522 = vmatmul.mubr.bf16.gmra.mxu0 %v1484
        %v1523 = vpop.f32.mrf.mxu0
        %v1524 = vadd.f32 0.0, %v1523
        %v1525 = vpop.f32.mrf.mxu0
        %v1526 = vpop.f32.mrf.mxu0
        %v1527 = vpop.f32.mrf.mxu0
        %1528 = vdwg.mxu0
        %v1529 = vpack.c.bf16 %v1524, %v1524
        %1530 = vrot.lane.b32.xlu0 %v1188, 32
        %v1531 = vpop.permute.xlu0 %1530
        %1532 = vrot.lane.b32.xlu0 %v1189, 32
        %v1533 = vpop.permute.xlu0 %1532
        %v1535 = vsel %vm1191, %v1531, 0
        %v1538 = vsel %vm1191, %v1533, 0
        %1540 = vmatprep.subr.bf16.mxu0 0
        %1541 = vmatpush1.bf16.xpose.msra.mxu0 0
        %1542 = vmatprep.subr.bf16.mxu0 0
        %1543 = vmatpush1.bf16.xpose.msra.mxu0 0
        %1544 = vmatprep.subr.bf16.mxu0 0
        %1545 = vmatpush1.bf16.xpose.msra.mxu0 0
        %1546 = vmatprep.subr.bf16.mxu0 0
        %1547 = vmatpush1.bf16.xpose.msra.mxu0 0
        %1548 = vmatprep.subr.bf16.mxu0 0
        %1549 = vmatpush1.bf16.xpose.msra.mxu0 0
        %1550 = vmatprep.subr.bf16.mxu0 0
        %1551 = vmatpush1.bf16.xpose.msra.mxu0 0
        %1552 = vmatprep.subr.bf16.mxu0 0
        %1553 = vmatpush1.bf16.xpose.msra.mxu0 0
        %1554 = vmatprep.subr.bf16.mxu0 0
        %1555 = vmatpush1.bf16.xpose.msra.mxu0 %v1538
        %1556 = vmatprep.subr.bf16.mxu0 0
        %1557 = vmatpush2.bf16.xpose.msra.mxu0 0
        %1558 = vmatprep.subr.bf16.mxu0 0
        %1559 = vmatpush2.bf16.xpose.msra.mxu0 0
        %1560 = vmatprep.subr.bf16.mxu0 0
        %1561 = vmatpush2.bf16.xpose.msra.mxu0 0
        %1562 = vmatprep.subr.bf16.mxu0 0
        %1563 = vmatpush2.bf16.xpose.msra.mxu0 0
        %1564 = vmatprep.subr.bf16.mxu0 0
        %1565 = vmatpush2.bf16.xpose.msra.mxu0 0
        %1566 = vmatprep.subr.bf16.mxu0 0
        %1567 = vmatpush2.bf16.xpose.msra.mxu0 0
        %1568 = vmatprep.subr.bf16.mxu0 0
        %1569 = vmatpush2.bf16.xpose.msra.mxu0 0
        %1570 = vmatprep.subr.bf16.mxu0 0
        %1571 = vmatpush2.bf16.xpose.msra.mxu0 0
        %1572 = vmatprep.mubr.bf16.mxu0 0
        %1573 = vmatmul.mubr.bf16.gmra.mxu0 %v1535
        %v1574 = vpop.f32.mrf.mxu0
        %v1575 = vadd.f32 0.0, %v1574
        %v1576 = vpop.f32.mrf.mxu0
        %v1577 = vpop.f32.mrf.mxu0
        %v1578 = vpop.f32.mrf.mxu0
        %1579 = vdwg.mxu0
        %v1580 = vmul.f32 %v1575, 0.17677669
        %v1581 = vadd.f32 %v1580, %v928
        %v1582 = vsel %vm1240, %v1581, -inf
        %1583 = vmax.xlane.f32.xlu0 %v1582
        %v1584 = vpop.xlane.xlu0 %1583
        %v1585 = vsub.f32 %v1581, %v1584
        %v1586 = vmul.f32 %v1585, 1.442695
        %v1587 = vpow.pop %v1586
        %v1588 = vsel %vm1240, %v1587, 0.0
        %1589 = vadd.xlane.f32.xlu0 %v1588
        %v1590 = vpop.xlane.xlu0 %1589
        %v1591 = vrcp.pop %v1590
        %v1592 = vmul.f32 %v1587, %v1591
        %v1593 = vpack.c.bf16 %v1592, %v1592
        %1594 = vrot.lane.b32.xlu0 %v1190, 32
        %v1595 = vpop.permute.xlu0 %1594
        %v1597 = vsel %vm1240, %v1593, 0
        %v1600 = vsel %vm1256, %v1595, 0
        %1602 = vmatprep.subr.bf16.mxu0 0
        %1603 = vmatpush1.bf16.msra.mxu0 0
        %1604 = vmatprep.subr.bf16.mxu0 0
        %1605 = vmatpush1.bf16.msra.mxu0 0
        %1606 = vmatprep.subr.bf16.mxu0 0
        %1607 = vmatpush1.bf16.msra.mxu0 0
        %1608 = vmatprep.subr.bf16.mxu0 0
        %1609 = vmatpush1.bf16.msra.mxu0 0
        %1610 = vmatprep.subr.bf16.mxu0 0
        %1611 = vmatpush1.bf16.msra.mxu0 0
        %1612 = vmatprep.subr.bf16.mxu0 0
        %1613 = vmatpush1.bf16.msra.mxu0 0
        %1614 = vmatprep.subr.bf16.mxu0 0
        %1615 = vmatpush1.bf16.msra.mxu0 0
        %1616 = vmatprep.subr.bf16.mxu0 0
        %1617 = vmatpush1.bf16.msra.mxu0 %v1600
        %1618 = vmatprep.subr.bf16.mxu0 0
        %1619 = vmatpush2.bf16.msra.mxu0 0
        %1620 = vmatprep.subr.bf16.mxu0 0
        %1621 = vmatpush2.bf16.msra.mxu0 0
        %1622 = vmatprep.subr.bf16.mxu0 0
        %1623 = vmatpush2.bf16.msra.mxu0 0
        %1624 = vmatprep.subr.bf16.mxu0 0
        %1625 = vmatpush2.bf16.msra.mxu0 0
        %1626 = vmatprep.subr.bf16.mxu0 0
        %1627 = vmatpush2.bf16.msra.mxu0 0
        %1628 = vmatprep.subr.bf16.mxu0 0
        %1629 = vmatpush2.bf16.msra.mxu0 0
        %1630 = vmatprep.subr.bf16.mxu0 0
        %1631 = vmatpush2.bf16.msra.mxu0 0
        %1632 = vmatprep.subr.bf16.mxu0 0
        %1633 = vmatpush2.bf16.msra.mxu0 0
        %1634 = vmatprep.mubr.bf16.mxu0 0
        %1635 = vmatmul.mubr.bf16.gmra.mxu0 %v1597
        %v1636 = vpop.f32.mrf.mxu0
        %v1637 = vadd.f32 0.0, %v1636
        %v1638 = vpop.f32.mrf.mxu0
        %v1639 = vpop.f32.mrf.mxu0
        %v1640 = vpop.f32.mrf.mxu0
        %1641 = vdwg.mxu0
        %v1642 = vpack.c.bf16 %v1637, %v1637
        %1644 = vrot.lane.b32.xlu0 %v1416, 32
        %v1645 = vpop.permute.xlu0 %1644
        %1647 = vrot.lane.b32.xlu0 %v1529, 64
        %v1648 = vpop.permute.xlu0 %1647
        %1650 = vrot.lane.b32.xlu0 %v1642, 96
        %v1651 = vpop.permute.xlu0 %1650
        %v1654 = vsel %vm1191, %v1300, %v1645
        %vm1655 = vcmask 523264
        %v1657 = vsel %vm1655, %v1654, %v1648
        %vm1658 = vcmask 785408
        %v1660 = vsel %vm1658, %v1657, %v1651
        %v1662 = vld [vmem:[#allocation10] sm:$0xf]
        %v1663 = vld [vmem:[#allocation10 + $0x4] sm:$0xf]
        %v1664 = vld [vmem:[#allocation10 + $0x8] sm:$0xf]
        %v1665 = vld [vmem:[#allocation10 + $0xc] sm:$0xf]
        %v1666 = vld [vmem:[#allocation10 + $0x10] sm:$0xf]
        %v1667 = vld [vmem:[#allocation10 + $0x14] sm:$0xf]
        %v1668 = vld [vmem:[#allocation10 + $0x18] sm:$0xf]
        %v1669 = vld [vmem:[#allocation10 + $0x1c] sm:$0xf]
        %v1670 = vld [vmem:[#allocation10 + $0x20] sm:$0xf]
        %v1671 = vld [vmem:[#allocation10 + $0x24] sm:$0xf]
        %v1672 = vld [vmem:[#allocation10 + $0x28] sm:$0xf]
        %v1673 = vld [vmem:[#allocation10 + $0x2c] sm:$0xf]
        %v1674 = vld [vmem:[#allocation10 + $0x30] sm:$0xf]
        %v1675 = vld [vmem:[#allocation10 + $0x34] sm:$0xf]
        %v1676 = vld [vmem:[#allocation10 + $0x38] sm:$0xf]
        %v1677 = vld [vmem:[#allocation10 + $0x3c] sm:$0xf]
        %v1678 = vld [vmem:[%s7] sm:$0x1]
        %v1680 = vlaneseq
        %v1681 = vshrl.u32 %v1680, 7
        %v1682 = vsub.s32 0, %v1681
        %v1683 = vrot.slane %v1678, %v1682
        %v1701 = vunpack.c.l.b16 %v1662
        %v1702 = vunpack.c.l.b16 %v1663
        %v1703 = vunpack.c.l.b16 %v1664
        %v1704 = vunpack.c.l.b16 %v1665
        %v1705 = vunpack.c.l.b16 %v1666
        %v1706 = vunpack.c.l.b16 %v1667
        %v1707 = vunpack.c.l.b16 %v1668
        %v1708 = vunpack.c.l.b16 %v1669
        %v1709 = vunpack.c.l.b16 %v1670
        %v1710 = vunpack.c.l.b16 %v1671
        %v1711 = vunpack.c.l.b16 %v1672
        %v1712 = vunpack.c.l.b16 %v1673
        %v1713 = vunpack.c.l.b16 %v1674
        %v1714 = vunpack.c.l.b16 %v1675
        %v1715 = vunpack.c.l.b16 %v1676
        %v1716 = vunpack.c.l.b16 %v1677
        %v1717 = vpack.c.b16 %v1702, %v1701
        %v1718 = vpack.c.b16 %v1704, %v1703
        %v1719 = vpack.c.b16 %v1706, %v1705
        %v1720 = vpack.c.b16 %v1708, %v1707
        %v1721 = vpack.c.b16 %v1710, %v1709
        %v1722 = vpack.c.b16 %v1712, %v1711
        %v1723 = vpack.c.b16 %v1714, %v1713
        %v1724 = vpack.c.b16 %v1716, %v1715
        %1733 = vmatprep.subr.bf16.mxu0 0
        %1734 = vmatpush1.bf16.msra.mxu0 %v1724
        %1735 = vmatprep.subr.bf16.mxu0 0
        %1736 = vmatpush1.bf16.msra.mxu0 %v1723
        %1737 = vmatprep.subr.bf16.mxu0 0
        %1738 = vmatpush1.bf16.msra.mxu0 %v1722
        %1739 = vmatprep.subr.bf16.mxu0 0
        %1740 = vmatpush1.bf16.msra.mxu0 %v1721
        %1741 = vmatprep.subr.bf16.mxu0 0
        %1742 = vmatpush1.bf16.msra.mxu0 %v1720
        %1743 = vmatprep.subr.bf16.mxu0 0
        %1744 = vmatpush1.bf16.msra.mxu0 %v1719
        %1745 = vmatprep.subr.bf16.mxu0 0
        %1746 = vmatpush1.bf16.msra.mxu0 %v1718
        %1747 = vmatprep.subr.bf16.mxu0 0
        %1748 = vmatpush1.bf16.msra.mxu0 %v1717
        %1749 = vmatprep.subr.bf16.mxu0 0
        %1750 = vmatpush2.bf16.msra.mxu0 0
        %1751 = vmatprep.subr.bf16.mxu0 0
        %1752 = vmatpush2.bf16.msra.mxu0 0
        %1753 = vmatprep.subr.bf16.mxu0 0
        %1754 = vmatpush2.bf16.msra.mxu0 0
        %1755 = vmatprep.subr.bf16.mxu0 0
        %1756 = vmatpush2.bf16.msra.mxu0 0
        %1757 = vmatprep.subr.bf16.mxu0 0
        %1758 = vmatpush2.bf16.msra.mxu0 0
        %1759 = vmatprep.subr.bf16.mxu0 0
        %1760 = vmatpush2.bf16.msra.mxu0 0
        %1761 = vmatprep.subr.bf16.mxu0 0
        %1762 = vmatpush2.bf16.msra.mxu0 0
        %1763 = vmatprep.subr.bf16.mxu0 0
        %1764 = vmatpush2.bf16.msra.mxu0 0
        %1765 = vmatprep.mubr.bf16.mxu0 0
        %1766 = vmatmul.mubr.bf16.gmra.mxu0 %v1660
        %v1767 = vpop.f32.mrf.mxu0
        %v1768 = vadd.f32 %v1683, %v1767
        %v1769 = vpop.f32.mrf.mxu0
        %v1770 = vpop.f32.mrf.mxu0
        %v1771 = vpop.f32.mrf.mxu0
        %1772 = vdwg.mxu0
        %v1773 = vadd.f32 %v919, %v1768
        %v1774 = vld [vmem:[%s14] sm:$0x1]
        %v1775 = vld [vmem:[%s15] sm:$0x1]
        %1776 = vadd.xlane.f32.xlu0 %v1773
        %v1777 = vpop.xlane.xlu0 %1776
        %v1778 = vrcp.pop 128.0
        %v1779 = vmul.f32 %v1777, %v1778
        %v1780 = vsub.f32 %v1773, %v1779
        %v1781 = vmul.f32 %v1780, %v1780
        %1782 = vadd.xlane.f32.xlu0 %v1781
        %v1783 = vpop.xlane.xlu0 %1782
        %v1784 = vmul.f32 %v1783, %v1778
        %v1785 = vadd.f32 %v1784, 1e-05
        %v1786 = vrsqrt.pop %v1785
        %v1787 = vmul.f32 %v1780, %v1786
        %v1789 = vlaneseq
        %v1790 = vshrl.u32 %v1789, 7
        %v1791 = vsub.s32 0, %v1790
        %v1792 = vrot.slane %v1774, %v1791
        %v1794 = vmul.f32 %v1787, %v1792
        %v1796 = vlaneseq
        %v1797 = vshrl.u32 %v1796, 7
        %v1798 = vsub.s32 0, %v1797
        %v1799 = vrot.slane %v1775, %v1798
        %v1801 = vadd.f32 %v1794, %v1799
        %v1802 = vpack.c.bf16 %v1801, %v1801
        %v1803 = vld [vmem:[#allocation11] sm:$0xf]
        %v1804 = vld [vmem:[#allocation11 + $0x4] sm:$0xf]
        %v1805 = vld [vmem:[#allocation11 + $0x8] sm:$0xf]
        %v1806 = vld [vmem:[#allocation11 + $0xc] sm:$0xf]
        %v1807 = vld [vmem:[#allocation11 + $0x10] sm:$0xf]
        %v1808 = vld [vmem:[#allocation11 + $0x14] sm:$0xf]
        %v1809 = vld [vmem:[#allocation11 + $0x18] sm:$0xf]
        %v1810 = vld [vmem:[#allocation11 + $0x1c] sm:$0xf]
        %v1811 = vld [vmem:[#allocation11 + $0x20] sm:$0xf]
        %v1812 = vld [vmem:[#allocation11 + $0x24] sm:$0xf]
        %v1813 = vld [vmem:[#allocation11 + $0x28] sm:$0xf]
        %v1814 = vld [vmem:[#allocation11 + $0x2c] sm:$0xf]
        %v1815 = vld [vmem:[#allocation11 + $0x30] sm:$0xf]
        %v1816 = vld [vmem:[#allocation11 + $0x34] sm:$0xf]
        %v1817 = vld [vmem:[#allocation11 + $0x38] sm:$0xf]
        %v1818 = vld [vmem:[#allocation11 + $0x3c] sm:$0xf]
        %v1819 = vld [vmem:[%s9] sm:$0x1]
        %v1821 = vlaneseq
        %v1822 = vshrl.u32 %v1821, 7
        %v1823 = vsub.s32 0, %v1822
        %v1824 = vrot.slane %v1819, %v1823
        %v1842 = vunpack.c.l.b16 %v1803
        %v1843 = vunpack.c.l.b16 %v1804
        %v1844 = vunpack.c.l.b16 %v1805
        %v1845 = vunpack.c.l.b16 %v1806
        %v1846 = vunpack.c.l.b16 %v1807
        %v1847 = vunpack.c.l.b16 %v1808
        %v1848 = vunpack.c.l.b16 %v1809
        %v1849 = vunpack.c.l.b16 %v1810
        %v1850 = vunpack.c.l.b16 %v1811
        %v1851 = vunpack.c.l.b16 %v1812
        %v1852 = vunpack.c.l.b16 %v1813
        %v1853 = vunpack.c.l.b16 %v1814
        %v1854 = vunpack.c.l.b16 %v1815
        %v1855 = vunpack.c.l.b16 %v1816
        %v1856 = vunpack.c.l.b16 %v1817
        %v1857 = vunpack.c.l.b16 %v1818
        %v1858 = vpack.c.b16 %v1843, %v1842
        %v1859 = vpack.c.b16 %v1845, %v1844
        %v1860 = vpack.c.b16 %v1847, %v1846
        %v1861 = vpack.c.b16 %v1849, %v1848
        %v1862 = vpack.c.b16 %v1851, %v1850
        %v1863 = vpack.c.b16 %v1853, %v1852
        %v1864 = vpack.c.b16 %v1855, %v1854
        %v1865 = vpack.c.b16 %v1857, %v1856
        %1874 = vmatprep.subr.bf16.mxu0 0
        %1875 = vmatpush1.bf16.msra.mxu0 %v1865
        %1876 = vmatprep.subr.bf16.mxu0 0
        %1877 = vmatpush1.bf16.msra.mxu0 %v1864
        %1878 = vmatprep.subr.bf16.mxu0 0
        %1879 = vmatpush1.bf16.msra.mxu0 %v1863
        %1880 = vmatprep.subr.bf16.mxu0 0
        %1881 = vmatpush1.bf16.msra.mxu0 %v1862
        %1882 = vmatprep.subr.bf16.mxu0 0
        %1883 = vmatpush1.bf16.msra.mxu0 %v1861
        %1884 = vmatprep.subr.bf16.mxu0 0
        %1885 = vmatpush1.bf16.msra.mxu0 %v1860
        %1886 = vmatprep.subr.bf16.mxu0 0
        %1887 = vmatpush1.bf16.msra.mxu0 %v1859
        %1888 = vmatprep.subr.bf16.mxu0 0
        %1889 = vmatpush1.bf16.msra.mxu0 %v1858
        %1890 = vmatprep.subr.bf16.mxu0 0
        %1891 = vmatpush2.bf16.msra.mxu0 0
        %1892 = vmatprep.subr.bf16.mxu0 0
        %1893 = vmatpush2.bf16.msra.mxu0 0
        %1894 = vmatprep.subr.bf16.mxu0 0
        %1895 = vmatpush2.bf16.msra.mxu0 0
        %1896 = vmatprep.subr.bf16.mxu0 0
        %1897 = vmatpush2.bf16.msra.mxu0 0
        %1898 = vmatprep.subr.bf16.mxu0 0
        %1899 = vmatpush2.bf16.msra.mxu0 0
        %1900 = vmatprep.subr.bf16.mxu0 0
        %1901 = vmatpush2.bf16.msra.mxu0 0
        %1902 = vmatprep.subr.bf16.mxu0 0
        %1903 = vmatpush2.bf16.msra.mxu0 0
        %1904 = vmatprep.subr.bf16.mxu0 0
        %1905 = vmatpush2.bf16.msra.mxu0 0
        %1906 = vmatprep.mubr.bf16.mxu0 0
        %1907 = vmatmul.mubr.bf16.gmra.mxu0 %v1802
        %v1908 = vpop.f32.mrf.mxu0
        %v1909 = vadd.f32 %v1824, %v1908
        %v1910 = vpop.f32.mrf.mxu0
        %v1911 = vpop.f32.mrf.mxu0
        %v1912 = vpop.f32.mrf.mxu0
        %1913 = vdwg.mxu0
        %v1914 = vld [vmem:[%s810] sm:$0xff]
        %v1915 = vpack.c.bf16 %v1914, %v1914
        %v1916 = vld [vmem:[#allocation13] sm:$0xff]
        %v1917 = vld [vmem:[#allocation13 + $0x8] sm:$0xff]
        %v1918 = vld [vmem:[#allocation13 + $0x10] sm:$0xff]
        %v1919 = vld [vmem:[#allocation13 + $0x18] sm:$0xff]
        %v1920 = vld [vmem:[#allocation13 + $0x20] sm:$0xff]
        %v1921 = vld [vmem:[#allocation13 + $0x28] sm:$0xff]
        %v1922 = vld [vmem:[#allocation13 + $0x30] sm:$0xff]
        %v1923 = vld [vmem:[#allocation13 + $0x38] sm:$0xff]
        %v1924 = vld [vmem:[#allocation13 + $0x40] sm:$0xff]
        %v1925 = vld [vmem:[#allocation13 + $0x48] sm:$0xff]
        %v1926 = vld [vmem:[#allocation13 + $0x50] sm:$0xff]
        %v1927 = vld [vmem:[#allocation13 + $0x58] sm:$0xff]
        %v1928 = vld [vmem:[#allocation13 + $0x60] sm:$0xff]
        %v1929 = vld [vmem:[#allocation13 + $0x68] sm:$0xff]
        %v1930 = vld [vmem:[#allocation13 + $0x70] sm:$0xff]
        %v1931 = vld [vmem:[#allocation13 + $0x78] sm:$0xff]
        %v1932 = vld [vmem:[%s11] sm:$0x3]
        %v1934 = vlaneseq
        %v1935 = vshrl.u32 %v1934, 7
        %v1936 = vsub.s32 0, %v1935
        %v1937 = vrot.slane %v1932, %v1936
        %v1938 = vlaneseq
        %v1939 = vshrl.u32 %v1938, 7
        %v1940 = vsub.s32 1, %v1939
        %v1941 = vrot.slane %v1932, %v1940
        %v1960 = vunpack.c.l.b16 %v1916
        %v1961 = vunpack.c.h.b16 %v1916
        %v1962 = vunpack.c.l.b16 %v1917
        %v1963 = vunpack.c.h.b16 %v1917
        %v1964 = vunpack.c.l.b16 %v1918
        %v1965 = vunpack.c.h.b16 %v1918
        %v1966 = vunpack.c.l.b16 %v1919
        %v1967 = vunpack.c.h.b16 %v1919
        %v1968 = vunpack.c.l.b16 %v1920
        %v1969 = vunpack.c.h.b16 %v1920
        %v1970 = vunpack.c.l.b16 %v1921
        %v1971 = vunpack.c.h.b16 %v1921
        %v1972 = vunpack.c.l.b16 %v1922
        %v1973 = vunpack.c.h.b16 %v1922
        %v1974 = vunpack.c.l.b16 %v1923
        %v1975 = vunpack.c.h.b16 %v1923
        %v1976 = vunpack.c.l.b16 %v1924
        %v1977 = vunpack.c.h.b16 %v1924
        %v1978 = vunpack.c.l.b16 %v1925
        %v1979 = vunpack.c.h.b16 %v1925
        %v1980 = vunpack.c.l.b16 %v1926
        %v1981 = vunpack.c.h.b16 %v1926
        %v1982 = vunpack.c.l.b16 %v1927
        %v1983 = vunpack.c.h.b16 %v1927
        %v1984 = vunpack.c.l.b16 %v1928
        %v1985 = vunpack.c.h.b16 %v1928
        %v1986 = vunpack.c.l.b16 %v1929
        %v1987 = vunpack.c.h.b16 %v1929
        %v1988 = vunpack.c.l.b16 %v1930
        %v1989 = vunpack.c.h.b16 %v1930
        %v1990 = vunpack.c.l.b16 %v1931
        %v1991 = vunpack.c.h.b16 %v1931
        %v1992 = vpack.c.b16 %v1962, %v1960
        %v1993 = vpack.c.b16 %v1963, %v1961
        %v1994 = vpack.c.b16 %v1966, %v1964
        %v1995 = vpack.c.b16 %v1967, %v1965
        %v1996 = vpack.c.b16 %v1970, %v1968
        %v1997 = vpack.c.b16 %v1971, %v1969
        %v1998 = vpack.c.b16 %v1974, %v1972
        %v1999 = vpack.c.b16 %v1975, %v1973
        %v2000 = vpack.c.b16 %v1978, %v1976
        %v2001 = vpack.c.b16 %v1979, %v1977
        %v2002 = vpack.c.b16 %v1982, %v1980
        %v2003 = vpack.c.b16 %v1983, %v1981
        %v2004 = vpack.c.b16 %v1986, %v1984
        %v2005 = vpack.c.b16 %v1987, %v1985
        %v2006 = vpack.c.b16 %v1990, %v1988
        %v2007 = vpack.c.b16 %v1991, %v1989
        %2024 = vmatprep.subr.bf16.mxu0 %v2007
        %2025 = vmatpush1.bf16.msra.mxu0 %v2006
        %2026 = vmatprep.subr.bf16.mxu0 %v2005
        %2027 = vmatpush1.bf16.msra.mxu0 %v2004
        %2028 = vmatprep.subr.bf16.mxu0 %v2003
        %2029 = vmatpush1.bf16.msra.mxu0 %v2002
        %2030 = vmatprep.subr.bf16.mxu0 %v2001
        %2031 = vmatpush1.bf16.msra.mxu0 %v2000
        %2032 = vmatprep.subr.bf16.mxu0 %v1999
        %2033 = vmatpush1.bf16.msra.mxu0 %v1998
        %2034 = vmatprep.subr.bf16.mxu0 %v1997
        %2035 = vmatpush1.bf16.msra.mxu0 %v1996
        %2036 = vmatprep.subr.bf16.mxu0 %v1995
        %2037 = vmatpush1.bf16.msra.mxu0 %v1994
        %2038 = vmatprep.subr.bf16.mxu0 %v1993
        %2039 = vmatpush1.bf16.msra.mxu0 %v1992
        %2040 = vmatprep.subr.bf16.mxu0 0
        %2041 = vmatpush2.bf16.msra.mxu0 0
        %2042 = vmatprep.subr.bf16.mxu0 0
        %2043 = vmatpush2.bf16.msra.mxu0 0
        %2044 = vmatprep.subr.bf16.mxu0 0
        %2045 = vmatpush2.bf16.msra.mxu0 0
        %2046 = vmatprep.subr.bf16.mxu0 0
        %2047 = vmatpush2.bf16.msra.mxu0 0
        %2048 = vmatprep.subr.bf16.mxu0 0
        %2049 = vmatpush2.bf16.msra.mxu0 0
        %2050 = vmatprep.subr.bf16.mxu0 0
        %2051 = vmatpush2.bf16.msra.mxu0 0
        %2052 = vmatprep.subr.bf16.mxu0 0
        %2053 = vmatpush2.bf16.msra.mxu0 0
        %2054 = vmatprep.subr.bf16.mxu0 0
        %2055 = vmatpush2.bf16.msra.mxu0 0
        %2056 = vmatprep.mubr.bf16.mxu0 0
        %2057 = vmatmul.mubr.bf16.gmra.mxu0 %v1915
        %v2058 = vpop.f32.mrf.mxu0
        %v2059 = vadd.f32 %v1937, %v2058
        %v2060 = vpop.f32.mrf.mxu0
        %v2061 = vadd.f32 %v1941, %v2060
        %v2062 = vpop.f32.mrf.mxu0
        %v2063 = vpop.f32.mrf.mxu0
        %2064 = vdwg.mxu0
        %v2065 = vpack.c.bf16 %v1909, %v1909
        %v2066 = vpack.c.bf16 %v2059, %v2059
        %v2067 = vpack.c.bf16 %v2061, %v2061
        %v2069 = vsel %vm1191, %v2065, 0
        %v2072 = vsel %vm1191, %v2066, 0
        %2074 = vmatprep.subr.bf16.mxu0 0
        %2075 = vmatpush1.bf16.xpose.msra.mxu0 0
        %2076 = vmatprep.subr.bf16.mxu0 0
        %2077 = vmatpush1.bf16.xpose.msra.mxu0 0
        %2078 = vmatprep.subr.bf16.mxu0 0
        %2079 = vmatpush1.bf16.xpose.msra.mxu0 0
        %2080 = vmatprep.subr.bf16.mxu0 0
        %2081 = vmatpush1.bf16.xpose.msra.mxu0 0
        %2082 = vmatprep.subr.bf16.mxu0 0
        %2083 = vmatpush1.bf16.xpose.msra.mxu0 0
        %2084 = vmatprep.subr.bf16.mxu0 0
        %2085 = vmatpush1.bf16.xpose.msra.mxu0 0
        %2086 = vmatprep.subr.bf16.mxu0 0
        %2087 = vmatpush1.bf16.xpose.msra.mxu0 0
        %2088 = vmatprep.subr.bf16.mxu0 0
        %2089 = vmatpush1.bf16.xpose.msra.mxu0 %v2072
        %2090 = vmatprep.subr.bf16.mxu0 0
        %2091 = vmatpush2.bf16.xpose.msra.mxu0 0
        %2092 = vmatprep.subr.bf16.mxu0 0
        %2093 = vmatpush2.bf16.xpose.msra.mxu0 0
        %2094 = vmatprep.subr.bf16.mxu0 0
        %2095 = vmatpush2.bf16.xpose.msra.mxu0 0
        %2096 = vmatprep.subr.bf16.mxu0 0
        %2097 = vmatpush2.bf16.xpose.msra.mxu0 0
        %2098 = vmatprep.subr.bf16.mxu0 0
        %2099 = vmatpush2.bf16.xpose.msra.mxu0 0
        %2100 = vmatprep.subr.bf16.mxu0 0
        %2101 = vmatpush2.bf16.xpose.msra.mxu0 0
        %2102 = vmatprep.subr.bf16.mxu0 0
        %2103 = vmatpush2.bf16.xpose.msra.mxu0 0
        %2104 = vmatprep.subr.bf16.mxu0 0
        %2105 = vmatpush2.bf16.xpose.msra.mxu0 0
        %2106 = vmatprep.mubr.bf16.mxu0 0
        %2107 = vmatmul.mubr.bf16.gmra.mxu0 %v2069
        %v2108 = vpop.f32.mrf.mxu0
        %v2109 = vadd.f32 0.0, %v2108
        %v2110 = vpop.f32.mrf.mxu0
        %v2111 = vpop.f32.mrf.mxu0
        %v2112 = vpop.f32.mrf.mxu0
        %2113 = vdwg.mxu0
        %v2114 = vmul.f32 %v2109, 0.17677669
        %v2115 = vadd.f32 %v2114, %v928
        %v2116 = vsel %vm1240, %v2115, -inf
        %2117 = vmax.xlane.f32.xlu0 %v2116
        %v2118 = vpop.xlane.xlu0 %2117
        %v2119 = vsub.f32 %v2115, %v2118
        %v2120 = vmul.f32 %v2119, 1.442695
        %v2121 = vpow.pop %v2120
        %v2122 = vsel %vm1240, %v2121, 0.0
        %2123 = vadd.xlane.f32.xlu0 %v2122
        %v2124 = vpop.xlane.xlu0 %2123
        %v2125 = vrcp.pop %v2124
        %v2126 = vmul.f32 %v2121, %v2125
        %v2127 = vpack.c.bf16 %v2126, %v2126
        %v2129 = vsel %vm1240, %v2127, 0
        %v2132 = vsel %vm1256, %v2067, 0
        %2134 = vmatprep.subr.bf16.mxu0 0
        %2135 = vmatpush1.bf16.msra.mxu0 0
        %2136 = vmatprep.subr.bf16.mxu0 0
        %2137 = vmatpush1.bf16.msra.mxu0 0
        %2138 = vmatprep.subr.bf16.mxu0 0
        %2139 = vmatpush1.bf16.msra.mxu0 0
        %2140 = vmatprep.subr.bf16.mxu0 0
        %2141 = vmatpush1.bf16.msra.mxu0 0
        %2142 = vmatprep.subr.bf16.mxu0 0
        %2143 = vmatpush1.bf16.msra.mxu0 0
        %2144 = vmatprep.subr.bf16.mxu0 0
        %2145 = vmatpush1.bf16.msra.mxu0 0
        %2146 = vmatprep.subr.bf16.mxu0 0
        %2147 = vmatpush1.bf16.msra.mxu0 0
        %2148 = vmatprep.subr.bf16.mxu0 0
        %2149 = vmatpush1.bf16.msra.mxu0 %v2132
        %2150 = vmatprep.subr.bf16.mxu0 0
        %2151 = vmatpush2.bf16.msra.mxu0 0
        %2152 = vmatprep.subr.bf16.mxu0 0
        %2153 = vmatpush2.bf16.msra.mxu0 0
        %2154 = vmatprep.subr.bf16.mxu0 0
        %2155 = vmatpush2.bf16.msra.mxu0 0
        %2156 = vmatprep.subr.bf16.mxu0 0
        %2157 = vmatpush2.bf16.msra.mxu0 0
        %2158 = vmatprep.subr.bf16.mxu0 0
        %2159 = vmatpush2.bf16.msra.mxu0 0
        %2160 = vmatprep.subr.bf16.mxu0 0
        %2161 = vmatpush2.bf16.msra.mxu0 0
        %2162 = vmatprep.subr.bf16.mxu0 0
        %2163 = vmatpush2.bf16.msra.mxu0 0
        %2164 = vmatprep.subr.bf16.mxu0 0
        %2165 = vmatpush2.bf16.msra.mxu0 0
        %2166 = vmatprep.mubr.bf16.mxu0 0
        %2167 = vmatmul.mubr.bf16.gmra.mxu0 %v2129
        %v2168 = vpop.f32.mrf.mxu0
        %v2169 = vadd.f32 0.0, %v2168
        %v2170 = vpop.f32.mrf.mxu0
        %v2171 = vpop.f32.mrf.mxu0
        %v2172 = vpop.f32.mrf.mxu0
        %2173 = vdwg.mxu0
        %v2174 = vpack.c.bf16 %v2169, %v2169
        %2176 = vrot.lane.b32.xlu0 %v2065, 96
        %v2177 = vpop.permute.xlu0 %2176
        %2179 = vrot.lane.b32.xlu0 %v2066, 96
        %v2180 = vpop.permute.xlu0 %2179
        %v2182 = vsel %vm1191, %v2177, 0
        %v2185 = vsel %vm1191, %v2180, 0
        %2187 = vmatprep.subr.bf16.mxu0 0
        %2188 = vmatpush1.bf16.xpose.msra.mxu0 0
        %2189 = vmatprep.subr.bf16.mxu0 0
        %2190 = vmatpush1.bf16.xpose.msra.mxu0 0
        %2191 = vmatprep.subr.bf16.mxu0 0
        %2192 = vmatpush1.bf16.xpose.msra.mxu0 0
        %2193 = vmatprep.subr.bf16.mxu0 0
        %2194 = vmatpush1.bf16.xpose.msra.mxu0 0
        %2195 = vmatprep.subr.bf16.mxu0 0
        %2196 = vmatpush1.bf16.xpose.msra.mxu0 0
        %2197 = vmatprep.subr.bf16.mxu0 0
        %2198 = vmatpush1.bf16.xpose.msra.mxu0 0
        %2199 = vmatprep.subr.bf16.mxu0 0
        %2200 = vmatpush1.bf16.xpose.msra.mxu0 0
        %2201 = vmatprep.subr.bf16.mxu0 0
        %2202 = vmatpush1.bf16.xpose.msra.mxu0 %v2185
        %2203 = vmatprep.subr.bf16.mxu0 0
        %2204 = vmatpush2.bf16.xpose.msra.mxu0 0
        %2205 = vmatprep.subr.bf16.mxu0 0
        %2206 = vmatpush2.bf16.xpose.msra.mxu0 0
        %2207 = vmatprep.subr.bf16.mxu0 0
        %2208 = vmatpush2.bf16.xpose.msra.mxu0 0
        %2209 = vmatprep.subr.bf16.mxu0 0
        %2210 = vmatpush2.bf16.xpose.msra.mxu0 0
        %2211 = vmatprep.subr.bf16.mxu0 0
        %2212 = vmatpush2.bf16.xpose.msra.mxu0 0
        %2213 = vmatprep.subr.bf16.mxu0 0
        %2214 = vmatpush2.bf16.xpose.msra.mxu0 0
        %2215 = vmatprep.subr.bf16.mxu0 0
        %2216 = vmatpush2.bf16.xpose.msra.mxu0 0
        %2217 = vmatprep.subr.bf16.mxu0 0
        %2218 = vmatpush2.bf16.xpose.msra.mxu0 0
        %2219 = vmatprep.mubr.bf16.mxu0 0
        %2220 = vmatmul.mubr.bf16.gmra.mxu0 %v2182
        %v2221 = vpop.f32.mrf.mxu0
        %v2222 = vadd.f32 0.0, %v2221
        %v2223 = vpop.f32.mrf.mxu0
        %v2224 = vpop.f32.mrf.mxu0
        %v2225 = vpop.f32.mrf.mxu0
        %2226 = vdwg.mxu0
        %v2227 = vmul.f32 %v2222, 0.17677669
        %v2228 = vadd.f32 %v2227, %v928
        %v2229 = vsel %vm1240, %v2228, -inf
        %2230 = vmax.xlane.f32.xlu0 %v2229
        %v2231 = vpop.xlane.xlu0 %2230
        %v2232 = vsub.f32 %v2228, %v2231
        %v2233 = vmul.f32 %v2232, 1.442695
        %v2234 = vpow.pop %v2233
        %v2235 = vsel %vm1240, %v2234, 0.0
        %2236 = vadd.xlane.f32.xlu0 %v2235
        %v2237 = vpop.xlane.xlu0 %2236
        %v2238 = vrcp.pop %v2237
        %v2239 = vmul.f32 %v2234, %v2238
        %v2240 = vpack.c.bf16 %v2239, %v2239
        %2242 = vrot.lane.b32.xlu0 %v2067, 96
        %v2243 = vpop.permute.xlu0 %2242
        %v2245 = vsel %vm1240, %v2240, 0
        %v2248 = vsel %vm1256, %v2243, 0
        %2250 = vmatprep.subr.bf16.mxu0 0
        %2251 = vmatpush1.bf16.msra.mxu0 0
        %2252 = vmatprep.subr.bf16.mxu0 0
        %2253 = vmatpush1.bf16.msra.mxu0 0
        %2254 = vmatprep.subr.bf16.mxu0 0
        %2255 = vmatpush1.bf16.msra.mxu0 0
        %2256 = vmatprep.subr.bf16.mxu0 0
        %2257 = vmatpush1.bf16.msra.mxu0 0
        %2258 = vmatprep.subr.bf16.mxu0 0
        %2259 = vmatpush1.bf16.msra.mxu0 0
        %2260 = vmatprep.subr.bf16.mxu0 0
        %2261 = vmatpush1.bf16.msra.mxu0 0
        %2262 = vmatprep.subr.bf16.mxu0 0
        %2263 = vmatpush1.bf16.msra.mxu0 0
        %2264 = vmatprep.subr.bf16.mxu0 0
        %2265 = vmatpush1.bf16.msra.mxu0 %v2248
        %2266 = vmatprep.subr.bf16.mxu0 0
        %2267 = vmatpush2.bf16.msra.mxu0 0
        %2268 = vmatprep.subr.bf16.mxu0 0
        %2269 = vmatpush2.bf16.msra.mxu0 0
        %2270 = vmatprep.subr.bf16.mxu0 0
        %2271 = vmatpush2.bf16.msra.mxu0 0
        %2272 = vmatprep.subr.bf16.mxu0 0
        %2273 = vmatpush2.bf16.msra.mxu0 0
        %2274 = vmatprep.subr.bf16.mxu0 0
        %2275 = vmatpush2.bf16.msra.mxu0 0
        %2276 = vmatprep.subr.bf16.mxu0 0
        %2277 = vmatpush2.bf16.msra.mxu0 0
        %2278 = vmatprep.subr.bf16.mxu0 0
        %2279 = vmatpush2.bf16.msra.mxu0 0
        %2280 = vmatprep.subr.bf16.mxu0 0
        %2281 = vmatpush2.bf16.msra.mxu0 0
        %2282 = vmatprep.mubr.bf16.mxu0 0
        %2283 = vmatmul.mubr.bf16.gmra.mxu0 %v2245
        %v2284 = vpop.f32.mrf.mxu0
        %v2285 = vadd.f32 0.0, %v2284
        %v2286 = vpop.f32.mrf.mxu0
        %v2287 = vpop.f32.mrf.mxu0
        %v2288 = vpop.f32.mrf.mxu0
        %2289 = vdwg.mxu0
        %v2290 = vpack.c.bf16 %v2285, %v2285
        %2291 = vrot.lane.b32.xlu0 %v2065, 64
        %v2292 = vpop.permute.xlu0 %2291
        %2293 = vrot.lane.b32.xlu0 %v2066, 64
        %v2294 = vpop.permute.xlu0 %2293
        %v2296 = vsel %vm1191, %v2292, 0
        %v2299 = vsel %vm1191, %v2294, 0
        %2301 = vmatprep.subr.bf16.mxu0 0
        %2302 = vmatpush1.bf16.xpose.msra.mxu0 0
        %2303 = vmatprep.subr.bf16.mxu0 0
        %2304 = vmatpush1.bf16.xpose.msra.mxu0 0
        %2305 = vmatprep.subr.bf16.mxu0 0
        %2306 = vmatpush1.bf16.xpose.msra.mxu0 0
        %2307 = vmatprep.subr.bf16.mxu0 0
        %2308 = vmatpush1.bf16.xpose.msra.mxu0 0
        %2309 = vmatprep.subr.bf16.mxu0 0
        %2310 = vmatpush1.bf16.xpose.msra.mxu0 0
        %2311 = vmatprep.subr.bf16.mxu0 0
        %2312 = vmatpush1.bf16.xpose.msra.mxu0 0
        %2313 = vmatprep.subr.bf16.mxu0 0
        %2314 = vmatpush1.bf16.xpose.msra.mxu0 0
        %2315 = vmatprep.subr.bf16.mxu0 0
        %2316 = vmatpush1.bf16.xpose.msra.mxu0 %v2299
        %2317 = vmatprep.subr.bf16.mxu0 0
        %2318 = vmatpush2.bf16.xpose.msra.mxu0 0
        %2319 = vmatprep.subr.bf16.mxu0 0
        %2320 = vmatpush2.bf16.xpose.msra.mxu0 0
        %2321 = vmatprep.subr.bf16.mxu0 0
        %2322 = vmatpush2.bf16.xpose.msra.mxu0 0
        %2323 = vmatprep.subr.bf16.mxu0 0
        %2324 = vmatpush2.bf16.xpose.msra.mxu0 0
        %2325 = vmatprep.subr.bf16.mxu0 0
        %2326 = vmatpush2.bf16.xpose.msra.mxu0 0
        %2327 = vmatprep.subr.bf16.mxu0 0
        %2328 = vmatpush2.bf16.xpose.msra.mxu0 0
        %2329 = vmatprep.subr.bf16.mxu0 0
        %2330 = vmatpush2.bf16.xpose.msra.mxu0 0
        %2331 = vmatprep.subr.bf16.mxu0 0
        %2332 = vmatpush2.bf16.xpose.msra.mxu0 0
        %2333 = vmatprep.mubr.bf16.mxu0 0
        %2334 = vmatmul.mubr.bf16.gmra.mxu0 %v2296
        %v2335 = vpop.f32.mrf.mxu0
        %v2336 = vadd.f32 0.0, %v2335
        %v2337 = vpop.f32.mrf.mxu0
        %v2338 = vpop.f32.mrf.mxu0
        %v2339 = vpop.f32.mrf.mxu0
        %2340 = vdwg.mxu0
        %v2341 = vmul.f32 %v2336, 0.17677669
        %v2342 = vadd.f32 %v2341, %v928
        %v2343 = vsel %vm1240, %v2342, -inf
        %2344 = vmax.xlane.f32.xlu0 %v2343
        %v2345 = vpop.xlane.xlu0 %2344
        %v2346 = vsub.f32 %v2342, %v2345
        %v2347 = vmul.f32 %v2346, 1.442695
        %v2348 = vpow.pop %v2347
        %v2349 = vsel %vm1240, %v2348, 0.0
        %2350 = vadd.xlane.f32.xlu0 %v2349
        %v2351 = vpop.xlane.xlu0 %2350
        %v2352 = vrcp.pop %v2351
        %v2353 = vmul.f32 %v2348, %v2352
        %v2354 = vpack.c.bf16 %v2353, %v2353
        %2355 = vrot.lane.b32.xlu0 %v2067, 64
        %v2356 = vpop.permute.xlu0 %2355
        %v2358 = vsel %vm1240, %v2354, 0
        %v2361 = vsel %vm1256, %v2356, 0
        %2363 = vmatprep.subr.bf16.mxu0 0
        %2364 = vmatpush1.bf16.msra.mxu0 0
        %2365 = vmatprep.subr.bf16.mxu0 0
        %2366 = vmatpush1.bf16.msra.mxu0 0
        %2367 = vmatprep.subr.bf16.mxu0 0
        %2368 = vmatpush1.bf16.msra.mxu0 0
        %2369 = vmatprep.subr.bf16.mxu0 0
        %2370 = vmatpush1.bf16.msra.mxu0 0
        %2371 = vmatprep.subr.bf16.mxu0 0
        %2372 = vmatpush1.bf16.msra.mxu0 0
        %2373 = vmatprep.subr.bf16.mxu0 0
        %2374 = vmatpush1.bf16.msra.mxu0 0
        %2375 = vmatprep.subr.bf16.mxu0 0
        %2376 = vmatpush1.bf16.msra.mxu0 0
        %2377 = vmatprep.subr.bf16.mxu0 0
        %2378 = vmatpush1.bf16.msra.mxu0 %v2361
        %2379 = vmatprep.subr.bf16.mxu0 0
        %2380 = vmatpush2.bf16.msra.mxu0 0
        %2381 = vmatprep.subr.bf16.mxu0 0
        %2382 = vmatpush2.bf16.msra.mxu0 0
        %2383 = vmatprep.subr.bf16.mxu0 0
        %2384 = vmatpush2.bf16.msra.mxu0 0
        %2385 = vmatprep.subr.bf16.mxu0 0
        %2386 = vmatpush2.bf16.msra.mxu0 0
        %2387 = vmatprep.subr.bf16.mxu0 0
        %2388 = vmatpush2.bf16.msra.mxu0 0
        %2389 = vmatprep.subr.bf16.mxu0 0
        %2390 = vmatpush2.bf16.msra.mxu0 0
        %2391 = vmatprep.subr.bf16.mxu0 0
        %2392 = vmatpush2.bf16.msra.mxu0 0
        %2393 = vmatprep.subr.bf16.mxu0 0
        %2394 = vmatpush2.bf16.msra.mxu0 0
        %2395 = vmatprep.mubr.bf16.mxu0 0
        %2396 = vmatmul.mubr.bf16.gmra.mxu0 %v2358
        %v2397 = vpop.f32.mrf.mxu0
        %v2398 = vadd.f32 0.0, %v2397
        %v2399 = vpop.f32.mrf.mxu0
        %v2400 = vpop.f32.mrf.mxu0
        %v2401 = vpop.f32.mrf.mxu0
        %2402 = vdwg.mxu0
        %v2403 = vpack.c.bf16 %v2398, %v2398
        %2404 = vrot.lane.b32.xlu0 %v2065, 32
        %v2405 = vpop.permute.xlu0 %2404
        %2406 = vrot.lane.b32.xlu0 %v2066, 32
        %v2407 = vpop.permute.xlu0 %2406
        %v2409 = vsel %vm1191, %v2405, 0
        %v2412 = vsel %vm1191, %v2407, 0
        %2414 = vmatprep.subr.bf16.mxu0 0
        %2415 = vmatpush1.bf16.xpose.msra.mxu0 0
        %2416 = vmatprep.subr.bf16.mxu0 0
        %2417 = vmatpush1.bf16.xpose.msra.mxu0 0
        %2418 = vmatprep.subr.bf16.mxu0 0
        %2419 = vmatpush1.bf16.xpose.msra.mxu0 0
        %2420 = vmatprep.subr.bf16.mxu0 0
        %2421 = vmatpush1.bf16.xpose.msra.mxu0 0
        %2422 = vmatprep.subr.bf16.mxu0 0
        %2423 = vmatpush1.bf16.xpose.msra.mxu0 0
        %2424 = vmatprep.subr.bf16.mxu0 0
        %2425 = vmatpush1.bf16.xpose.msra.mxu0 0
        %2426 = vmatprep.subr.bf16.mxu0 0
        %2427 = vmatpush1.bf16.xpose.msra.mxu0 0
        %2428 = vmatprep.subr.bf16.mxu0 0
        %2429 = vmatpush1.bf16.xpose.msra.mxu0 %v2412
        %2430 = vmatprep.subr.bf16.mxu0 0
        %2431 = vmatpush2.bf16.xpose.msra.mxu0 0
        %2432 = vmatprep.subr.bf16.mxu0 0
        %2433 = vmatpush2.bf16.xpose.msra.mxu0 0
        %2434 = vmatprep.subr.bf16.mxu0 0
        %2435 = vmatpush2.bf16.xpose.msra.mxu0 0
        %2436 = vmatprep.subr.bf16.mxu0 0
        %2437 = vmatpush2.bf16.xpose.msra.mxu0 0
        %2438 = vmatprep.subr.bf16.mxu0 0
        %2439 = vmatpush2.bf16.xpose.msra.mxu0 0
        %2440 = vmatprep.subr.bf16.mxu0 0
        %2441 = vmatpush2.bf16.xpose.msra.mxu0 0
        %2442 = vmatprep.subr.bf16.mxu0 0
        %2443 = vmatpush2.bf16.xpose.msra.mxu0 0
        %2444 = vmatprep.subr.bf16.mxu0 0
        %2445 = vmatpush2.bf16.xpose.msra.mxu0 0
        %2446 = vmatprep.mubr.bf16.mxu0 0
        %2447 = vmatmul.mubr.bf16.gmra.mxu0 %v2409
        %v2448 = vpop.f32.mrf.mxu0
        %v2449 = vadd.f32 0.0, %v2448
        %v2450 = vpop.f32.mrf.mxu0
        %v2451 = vpop.f32.mrf.mxu0
        %v2452 = vpop.f32.mrf.mxu0
        %2453 = vdwg.mxu0
        %v2454 = vmul.f32 %v2449, 0.17677669
        %v2455 = vadd.f32 %v2454, %v928
        %v2456 = vsel %vm1240, %v2455, -inf
        %2457 = vmax.xlane.f32.xlu0 %v2456
        %v2458 = vpop.xlane.xlu0 %2457
        %v2459 = vsub.f32 %v2455, %v2458
        %v2460 = vmul.f32 %v2459, 1.442695
        %v2461 = vpow.pop %v2460
        %v2462 = vsel %vm1240, %v2461, 0.0
        %2463 = vadd.xlane.f32.xlu0 %v2462
        %v2464 = vpop.xlane.xlu0 %2463
        %v2465 = vrcp.pop %v2464
        %v2466 = vmul.f32 %v2461, %v2465
        %v2467 = vpack.c.bf16 %v2466, %v2466
        %2468 = vrot.lane.b32.xlu0 %v2067, 32
        %v2469 = vpop.permute.xlu0 %2468
        %v2471 = vsel %vm1240, %v2467, 0
        %v2474 = vsel %vm1256, %v2469, 0
        %2476 = vmatprep.subr.bf16.mxu0 0
        %2477 = vmatpush1.bf16.msra.mxu0 0
        %2478 = vmatprep.subr.bf16.mxu0 0
        %2479 = vmatpush1.bf16.msra.mxu0 0
        %2480 = vmatprep.subr.bf16.mxu0 0
        %2481 = vmatpush1.bf16.msra.mxu0 0
        %2482 = vmatprep.subr.bf16.mxu0 0
        %2483 = vmatpush1.bf16.msra.mxu0 0
        %2484 = vmatprep.subr.bf16.mxu0 0
        %2485 = vmatpush1.bf16.msra.mxu0 0
        %2486 = vmatprep.subr.bf16.mxu0 0
        %2487 = vmatpush1.bf16.msra.mxu0 0
        %2488 = vmatprep.subr.bf16.mxu0 0
        %2489 = vmatpush1.bf16.msra.mxu0 0
        %2490 = vmatprep.subr.bf16.mxu0 0
        %2491 = vmatpush1.bf16.msra.mxu0 %v2474
        %2492 = vmatprep.subr.bf16.mxu0 0
        %2493 = vmatpush2.bf16.msra.mxu0 0
        %2494 = vmatprep.subr.bf16.mxu0 0
        %2495 = vmatpush2.bf16.msra.mxu0 0
        %2496 = vmatprep.subr.bf16.mxu0 0
        %2497 = vmatpush2.bf16.msra.mxu0 0
        %2498 = vmatprep.subr.bf16.mxu0 0
        %2499 = vmatpush2.bf16.msra.mxu0 0
        %2500 = vmatprep.subr.bf16.mxu0 0
        %2501 = vmatpush2.bf16.msra.mxu0 0
        %2502 = vmatprep.subr.bf16.mxu0 0
        %2503 = vmatpush2.bf16.msra.mxu0 0
        %2504 = vmatprep.subr.bf16.mxu0 0
        %2505 = vmatpush2.bf16.msra.mxu0 0
        %2506 = vmatprep.subr.bf16.mxu0 0
        %2507 = vmatpush2.bf16.msra.mxu0 0
        %2508 = vmatprep.mubr.bf16.mxu0 0
        %2509 = vmatmul.mubr.bf16.gmra.mxu0 %v2471
        %v2510 = vpop.f32.mrf.mxu0
        %v2511 = vadd.f32 0.0, %v2510
        %v2512 = vpop.f32.mrf.mxu0
        %v2513 = vpop.f32.mrf.mxu0
        %v2514 = vpop.f32.mrf.mxu0
        %2515 = vdwg.mxu0
        %v2516 = vpack.c.bf16 %v2511, %v2511
        %2518 = vrot.lane.b32.xlu0 %v2290, 32
        %v2519 = vpop.permute.xlu0 %2518
        %2521 = vrot.lane.b32.xlu0 %v2403, 64
        %v2522 = vpop.permute.xlu0 %2521
        %2524 = vrot.lane.b32.xlu0 %v2516, 96
        %v2525 = vpop.permute.xlu0 %2524
        %v2528 = vsel %vm1191, %v2174, %v2519
        %v2530 = vsel %vm1655, %v2528, %v2522
        %v2532 = vsel %vm1658, %v2530, %v2525
        %v2534 = vld [vmem:[#allocation14] sm:$0xf]
        %v2535 = vld [vmem:[#allocation14 + $0x4] sm:$0xf]
        %v2536 = vld [vmem:[#allocation14 + $0x8] sm:$0xf]
        %v2537 = vld [vmem:[#allocation14 + $0xc] sm:$0xf]
        %v2538 = vld [vmem:[#allocation14 + $0x10] sm:$0xf]
        %v2539 = vld [vmem:[#allocation14 + $0x14] sm:$0xf]
        %v2540 = vld [vmem:[#allocation14 + $0x18] sm:$0xf]
        %v2541 = vld [vmem:[#allocation14 + $0x1c] sm:$0xf]
        %v2542 = vld [vmem:[#allocation14 + $0x20] sm:$0xf]
        %v2543 = vld [vmem:[#allocation14 + $0x24] sm:$0xf]
        %v2544 = vld [vmem:[#allocation14 + $0x28] sm:$0xf]
        %v2545 = vld [vmem:[#allocation14 + $0x2c] sm:$0xf]
        %v2546 = vld [vmem:[#allocation14 + $0x30] sm:$0xf]
        %v2547 = vld [vmem:[#allocation14 + $0x34] sm:$0xf]
        %v2548 = vld [vmem:[#allocation14 + $0x38] sm:$0xf]
        %v2549 = vld [vmem:[#allocation14 + $0x3c] sm:$0xf]
        %v2550 = vld [vmem:[%s13] sm:$0x1]
        %v2552 = vlaneseq
        %v2553 = vshrl.u32 %v2552, 7
        %v2554 = vsub.s32 0, %v2553
        %v2555 = vrot.slane %v2550, %v2554
        %v2573 = vunpack.c.l.b16 %v2534
        %v2574 = vunpack.c.l.b16 %v2535
        %v2575 = vunpack.c.l.b16 %v2536
        %v2576 = vunpack.c.l.b16 %v2537
        %v2577 = vunpack.c.l.b16 %v2538
        %v2578 = vunpack.c.l.b16 %v2539
        %v2579 = vunpack.c.l.b16 %v2540
        %v2580 = vunpack.c.l.b16 %v2541
        %v2581 = vunpack.c.l.b16 %v2542
        %v2582 = vunpack.c.l.b16 %v2543
        %v2583 = vunpack.c.l.b16 %v2544
        %v2584 = vunpack.c.l.b16 %v2545
        %v2585 = vunpack.c.l.b16 %v2546
        %v2586 = vunpack.c.l.b16 %v2547
        %v2587 = vunpack.c.l.b16 %v2548
        %v2588 = vunpack.c.l.b16 %v2549
        %v2589 = vpack.c.b16 %v2574, %v2573
        %v2590 = vpack.c.b16 %v2576, %v2575
        %v2591 = vpack.c.b16 %v2578, %v2577
        %v2592 = vpack.c.b16 %v2580, %v2579
        %v2593 = vpack.c.b16 %v2582, %v2581
        %v2594 = vpack.c.b16 %v2584, %v2583
        %v2595 = vpack.c.b16 %v2586, %v2585
        %v2596 = vpack.c.b16 %v2588, %v2587
        %2605 = vmatprep.subr.bf16.mxu0 0
        %2606 = vmatpush1.bf16.msra.mxu0 %v2596
        %2607 = vmatprep.subr.bf16.mxu0 0
        %2608 = vmatpush1.bf16.msra.mxu0 %v2595
        %2609 = vmatprep.subr.bf16.mxu0 0
        %2610 = vmatpush1.bf16.msra.mxu0 %v2594
        %2611 = vmatprep.subr.bf16.mxu0 0
        %2612 = vmatpush1.bf16.msra.mxu0 %v2593
        %2613 = vmatprep.subr.bf16.mxu0 0
        %2614 = vmatpush1.bf16.msra.mxu0 %v2592
        %2615 = vmatprep.subr.bf16.mxu0 0
        %2616 = vmatpush1.bf16.msra.mxu0 %v2591
        %2617 = vmatprep.subr.bf16.mxu0 0
        %2618 = vmatpush1.bf16.msra.mxu0 %v2590
        %2619 = vmatprep.subr.bf16.mxu0 0
        %2620 = vmatpush1.bf16.msra.mxu0 %v2589
        %2621 = vmatprep.subr.bf16.mxu0 0
        %2622 = vmatpush2.bf16.msra.mxu0 0
        %2623 = vmatprep.subr.bf16.mxu0 0
        %2624 = vmatpush2.bf16.msra.mxu0 0
        %2625 = vmatprep.subr.bf16.mxu0 0
        %2626 = vmatpush2.bf16.msra.mxu0 0
        %2627 = vmatprep.subr.bf16.mxu0 0
        %2628 = vmatpush2.bf16.msra.mxu0 0
        %2629 = vmatprep.subr.bf16.mxu0 0
        %2630 = vmatpush2.bf16.msra.mxu0 0
        %2631 = vmatprep.subr.bf16.mxu0 0
        %2632 = vmatpush2.bf16.msra.mxu0 0
        %2633 = vmatprep.subr.bf16.mxu0 0
        %2634 = vmatpush2.bf16.msra.mxu0 0
        %2635 = vmatprep.subr.bf16.mxu0 0
        %2636 = vmatpush2.bf16.msra.mxu0 0
        %2637 = vmatprep.mubr.bf16.mxu0 0
        %2638 = vmatmul.mubr.bf16.gmra.mxu0 %v2532
        %v2639 = vpop.f32.mrf.mxu0
        %v2640 = vadd.f32 %v2555, %v2639
        %v2641 = vpop.f32.mrf.mxu0
        %v2642 = vpop.f32.mrf.mxu0
        %v2643 = vpop.f32.mrf.mxu0
        %2644 = vdwg.mxu0
        %v2645 = vadd.f32 %v1801, %v2640
        %v2646 = vld [vmem:[%s16] sm:$0x1]
        %v2647 = vld [vmem:[%s17] sm:$0x1]
        %2648 = vadd.xlane.f32.xlu0 %v2645
        %v2649 = vpop.xlane.xlu0 %2648
        %v2650 = vmul.f32 %v2649, %v1778
        %v2651 = vsub.f32 %v2645, %v2650
        %v2652 = vmul.f32 %v2651, %v2651
        %2653 = vadd.xlane.f32.xlu0 %v2652
        %v2654 = vpop.xlane.xlu0 %2653
        %v2655 = vmul.f32 %v2654, %v1778
        %v2656 = vadd.f32 %v2655, 1e-05
        %v2657 = vrsqrt.pop %v2656
        %v2658 = vmul.f32 %v2651, %v2657
        %v2660 = vlaneseq
        %v2661 = vshrl.u32 %v2660, 7
        %v2662 = vsub.s32 0, %v2661
        %v2663 = vrot.slane %v2646, %v2662
        %v2665 = vmul.f32 %v2658, %v2663
        %v2667 = vlaneseq
        %v2668 = vshrl.u32 %v2667, 7
        %v2669 = vsub.s32 0, %v2668
        %v2670 = vrot.slane %v2647, %v2669
        %v2672 = vadd.f32 %v2665, %v2670
        %v2673 = vpack.c.bf16 %v2672, %v2672
        %v2674 = vld [vmem:[#allocation16] sm:$0xff]
        %v2675 = vld [vmem:[#allocation16 + $0x8] sm:$0xff]
        %v2676 = vld [vmem:[#allocation16 + $0x10] sm:$0xff]
        %v2677 = vld [vmem:[#allocation16 + $0x18] sm:$0xff]
        %v2678 = vld [vmem:[#allocation16 + $0x20] sm:$0xff]
        %v2679 = vld [vmem:[#allocation16 + $0x28] sm:$0xff]
        %v2680 = vld [vmem:[#allocation16 + $0x30] sm:$0xff]
        %v2681 = vld [vmem:[#allocation16 + $0x38] sm:$0xff]
        %v2682 = vld [vmem:[#allocation16 + $0x40] sm:$0xff]
        %v2683 = vld [vmem:[#allocation16 + $0x48] sm:$0xff]
        %v2684 = vld [vmem:[#allocation16 + $0x50] sm:$0xff]
        %v2685 = vld [vmem:[#allocation16 + $0x58] sm:$0xff]
        %v2686 = vld [vmem:[#allocation16 + $0x60] sm:$0xff]
        %v2687 = vld [vmem:[#allocation16 + $0x68] sm:$0xff]
        %v2688 = vld [vmem:[#allocation16 + $0x70] sm:$0xff]
        %v2689 = vld [vmem:[#allocation16 + $0x78] sm:$0xff]
        %v2690 = vld [vmem:[%s21] sm:$0x3]
        %v2692 = vlaneseq
        %v2693 = vshrl.u32 %v2692, 7
        %v2694 = vsub.s32 0, %v2693
        %v2695 = vrot.slane %v2690, %v2694
        %v2696 = vlaneseq
        %v2697 = vshrl.u32 %v2696, 7
        %v2698 = vsub.s32 1, %v2697
        %v2699 = vrot.slane %v2690, %v2698
        %v2718 = vunpack.c.l.b16 %v2674
        %v2719 = vunpack.c.h.b16 %v2674
        %v2720 = vunpack.c.l.b16 %v2675
        %v2721 = vunpack.c.h.b16 %v2675
        %v2722 = vunpack.c.l.b16 %v2676
        %v2723 = vunpack.c.h.b16 %v2676
        %v2724 = vunpack.c.l.b16 %v2677
        %v2725 = vunpack.c.h.b16 %v2677
        %v2726 = vunpack.c.l.b16 %v2678
        %v2727 = vunpack.c.h.b16 %v2678
        %v2728 = vunpack.c.l.b16 %v2679
        %v2729 = vunpack.c.h.b16 %v2679
        %v2730 = vunpack.c.l.b16 %v2680
        %v2731 = vunpack.c.h.b16 %v2680
        %v2732 = vunpack.c.l.b16 %v2681
        %v2733 = vunpack.c.h.b16 %v2681
        %v2734 = vunpack.c.l.b16 %v2682
        %v2735 = vunpack.c.h.b16 %v2682
        %v2736 = vunpack.c.l.b16 %v2683
        %v2737 = vunpack.c.h.b16 %v2683
        %v2738 = vunpack.c.l.b16 %v2684
        %v2739 = vunpack.c.h.b16 %v2684
        %v2740 = vunpack.c.l.b16 %v2685
        %v2741 = vunpack.c.h.b16 %v2685
        %v2742 = vunpack.c.l.b16 %v2686
        %v2743 = vunpack.c.h.b16 %v2686
        %v2744 = vunpack.c.l.b16 %v2687
        %v2745 = vunpack.c.h.b16 %v2687
        %v2746 = vunpack.c.l.b16 %v2688
        %v2747 = vunpack.c.h.b16 %v2688
        %v2748 = vunpack.c.l.b16 %v2689
        %v2749 = vunpack.c.h.b16 %v2689
        %v2750 = vpack.c.b16 %v2720, %v2718
        %v2751 = vpack.c.b16 %v2721, %v2719
        %v2752 = vpack.c.b16 %v2724, %v2722
        %v2753 = vpack.c.b16 %v2725, %v2723
        %v2754 = vpack.c.b16 %v2728, %v2726
        %v2755 = vpack.c.b16 %v2729, %v2727
        %v2756 = vpack.c.b16 %v2732, %v2730
        %v2757 = vpack.c.b16 %v2733, %v2731
        %v2758 = vpack.c.b16 %v2736, %v2734
        %v2759 = vpack.c.b16 %v2737, %v2735
        %v2760 = vpack.c.b16 %v2740, %v2738
        %v2761 = vpack.c.b16 %v2741, %v2739
        %v2762 = vpack.c.b16 %v2744, %v2742
        %v2763 = vpack.c.b16 %v2745, %v2743
        %v2764 = vpack.c.b16 %v2748, %v2746
        %v2765 = vpack.c.b16 %v2749, %v2747
        %2782 = vmatprep.subr.bf16.mxu0 %v2765
        %2783 = vmatpush1.bf16.msra.mxu0 %v2764
        %2784 = vmatprep.subr.bf16.mxu0 %v2763
        %2785 = vmatpush1.bf16.msra.mxu0 %v2762
        %2786 = vmatprep.subr.bf16.mxu0 %v2761
        %2787 = vmatpush1.bf16.msra.mxu0 %v2760
        %2788 = vmatprep.subr.bf16.mxu0 %v2759
        %2789 = vmatpush1.bf16.msra.mxu0 %v2758
        %2790 = vmatprep.subr.bf16.mxu0 %v2757
        %2791 = vmatpush1.bf16.msra.mxu0 %v2756
        %2792 = vmatprep.subr.bf16.mxu0 %v2755
        %2793 = vmatpush1.bf16.msra.mxu0 %v2754
        %2794 = vmatprep.subr.bf16.mxu0 %v2753
        %2795 = vmatpush1.bf16.msra.mxu0 %v2752
        %2796 = vmatprep.subr.bf16.mxu0 %v2751
        %2797 = vmatpush1.bf16.msra.mxu0 %v2750
        %2798 = vmatprep.subr.bf16.mxu0 0
        %2799 = vmatpush2.bf16.msra.mxu0 0
        %2800 = vmatprep.subr.bf16.mxu0 0
        %2801 = vmatpush2.bf16.msra.mxu0 0
        %2802 = vmatprep.subr.bf16.mxu0 0
        %2803 = vmatpush2.bf16.msra.mxu0 0
        %2804 = vmatprep.subr.bf16.mxu0 0
        %2805 = vmatpush2.bf16.msra.mxu0 0
        %2806 = vmatprep.subr.bf16.mxu0 0
        %2807 = vmatpush2.bf16.msra.mxu0 0
        %2808 = vmatprep.subr.bf16.mxu0 0
        %2809 = vmatpush2.bf16.msra.mxu0 0
        %2810 = vmatprep.subr.bf16.mxu0 0
        %2811 = vmatpush2.bf16.msra.mxu0 0
        %2812 = vmatprep.subr.bf16.mxu0 0
        %2813 = vmatpush2.bf16.msra.mxu0 0
        %2814 = vmatprep.mubr.bf16.mxu0 0
        %2815 = vmatmul.mubr.bf16.gmra.mxu0 %v2673
        %v2816 = vpop.f32.mrf.mxu0
        %v2817 = vadd.f32 %v2695, %v2816
        %v2818 = vpop.f32.mrf.mxu0
        %v2819 = vadd.f32 %v2699, %v2818
        %v2820 = vpop.f32.mrf.mxu0
        %v2821 = vpop.f32.mrf.mxu0
        %2822 = vdwg.mxu0
        %v2823 = vmax.f32 %v2817, 0.0
        %v2824 = vmax.f32 %v2819, 0.0
        %v2825 = vpack.c.bf16 %v2823, %v2823
        %v2826 = vpack.c.bf16 %v2824, %v2824
        %v2827 = vld [vmem:[#allocation17] sm:$0xf]
        %v2828 = vld [vmem:[#allocation17 + $0x4] sm:$0xf]
        %v2829 = vld [vmem:[#allocation17 + $0x8] sm:$0xf]
        %v2830 = vld [vmem:[#allocation17 + $0xc] sm:$0xf]
        %v2831 = vld [vmem:[#allocation17 + $0x10] sm:$0xf]
        %v2832 = vld [vmem:[#allocation17 + $0x14] sm:$0xf]
        %v2833 = vld [vmem:[#allocation17 + $0x18] sm:$0xf]
        %v2834 = vld [vmem:[#allocation17 + $0x1c] sm:$0xf]
        %v2835 = vld [vmem:[#allocation17 + $0x20] sm:$0xf]
        %v2836 = vld [vmem:[#allocation17 + $0x24] sm:$0xf]
        %v2837 = vld [vmem:[#allocation17 + $0x28] sm:$0xf]
        %v2838 = vld [vmem:[#allocation17 + $0x2c] sm:$0xf]
        %v2839 = vld [vmem:[#allocation17 + $0x30] sm:$0xf]
        %v2840 = vld [vmem:[#allocation17 + $0x34] sm:$0xf]
        %v2841 = vld [vmem:[#allocation17 + $0x38] sm:$0xf]
        %v2842 = vld [vmem:[#allocation17 + $0x3c] sm:$0xf]
        %v2843 = vld [vmem:[#allocation17 + $0x40] sm:$0xf]
        %v2844 = vld [vmem:[#allocation17 + $0x44] sm:$0xf]
        %v2845 = vld [vmem:[#allocation17 + $0x48] sm:$0xf]
        %v2846 = vld [vmem:[#allocation17 + $0x4c] sm:$0xf]
        %v2847 = vld [vmem:[#allocation17 + $0x50] sm:$0xf]
        %v2848 = vld [vmem:[#allocation17 + $0x54] sm:$0xf]
        %v2849 = vld [vmem:[#allocation17 + $0x58] sm:$0xf]
        %v2850 = vld [vmem:[#allocation17 + $0x5c] sm:$0xf]
        %v2851 = vld [vmem:[#allocation17 + $0x60] sm:$0xf]
        %v2852 = vld [vmem:[#allocation17 + $0x64] sm:$0xf]
        %v2853 = vld [vmem:[#allocation17 + $0x68] sm:$0xf]
        %v2854 = vld [vmem:[#allocation17 + $0x6c] sm:$0xf]
        %v2855 = vld [vmem:[#allocation17 + $0x70] sm:$0xf]
        %v2856 = vld [vmem:[#allocation17 + $0x74] sm:$0xf]
        %v2857 = vld [vmem:[#allocation17 + $0x78] sm:$0xf]
        %v2858 = vld [vmem:[#allocation17 + $0x7c] sm:$0xf]
        %v2859 = vld [vmem:[%s23] sm:$0x1]
        %v2861 = vlaneseq
        %v2862 = vshrl.u32 %v2861, 7
        %v2863 = vsub.s32 0, %v2862
        %v2864 = vrot.slane %v2859, %v2863
        %v2898 = vunpack.c.l.b16 %v2827
        %v2899 = vunpack.c.l.b16 %v2828
        %v2900 = vunpack.c.l.b16 %v2829
        %v2901 = vunpack.c.l.b16 %v2830
        %v2902 = vunpack.c.l.b16 %v2831
        %v2903 = vunpack.c.l.b16 %v2832
        %v2904 = vunpack.c.l.b16 %v2833
        %v2905 = vunpack.c.l.b16 %v2834
        %v2906 = vunpack.c.l.b16 %v2835
        %v2907 = vunpack.c.l.b16 %v2836
        %v2908 = vunpack.c.l.b16 %v2837
        %v2909 = vunpack.c.l.b16 %v2838
        %v2910 = vunpack.c.l.b16 %v2839
        %v2911 = vunpack.c.l.b16 %v2840
        %v2912 = vunpack.c.l.b16 %v2841
        %v2913 = vunpack.c.l.b16 %v2842
        %v2914 = vunpack.c.l.b16 %v2843
        %v2915 = vunpack.c.l.b16 %v2844
        %v2916 = vunpack.c.l.b16 %v2845
        %v2917 = vunpack.c.l.b16 %v2846
        %v2918 = vunpack.c.l.b16 %v2847
        %v2919 = vunpack.c.l.b16 %v2848
        %v2920 = vunpack.c.l.b16 %v2849
        %v2921 = vunpack.c.l.b16 %v2850
        %v2922 = vunpack.c.l.b16 %v2851
        %v2923 = vunpack.c.l.b16 %v2852
        %v2924 = vunpack.c.l.b16 %v2853
        %v2925 = vunpack.c.l.b16 %v2854
        %v2926 = vunpack.c.l.b16 %v2855
        %v2927 = vunpack.c.l.b16 %v2856
        %v2928 = vunpack.c.l.b16 %v2857
        %v2929 = vunpack.c.l.b16 %v2858
        %v2930 = vpack.c.b16 %v2899, %v2898
        %v2931 = vpack.c.b16 %v2901, %v2900
        %v2932 = vpack.c.b16 %v2903, %v2902
        %v2933 = vpack.c.b16 %v2905, %v2904
        %v2934 = vpack.c.b16 %v2907, %v2906
        %v2935 = vpack.c.b16 %v2909, %v2908
        %v2936 = vpack.c.b16 %v2911, %v2910
        %v2937 = vpack.c.b16 %v2913, %v2912
        %v2938 = vpack.c.b16 %v2915, %v2914
        %v2939 = vpack.c.b16 %v2917, %v2916
        %v2940 = vpack.c.b16 %v2919, %v2918
        %v2941 = vpack.c.b16 %v2921, %v2920
        %v2942 = vpack.c.b16 %v2923, %v2922
        %v2943 = vpack.c.b16 %v2925, %v2924
        %v2944 = vpack.c.b16 %v2927, %v2926
        %v2945 = vpack.c.b16 %v2929, %v2928
        %2962 = vmatprep.subr.bf16.mxu0 0
        %2963 = vmatpush1.bf16.msra.mxu0 %v2937
        %2964 = vmatprep.subr.bf16.mxu0 0
        %2965 = vmatpush1.bf16.msra.mxu0 %v2936
        %2966 = vmatprep.subr.bf16.mxu0 0
        %2967 = vmatpush1.bf16.msra.mxu0 %v2935
        %2968 = vmatprep.subr.bf16.mxu0 0
        %2969 = vmatpush1.bf16.msra.mxu0 %v2934
        %2970 = vmatprep.subr.bf16.mxu0 0
        %2971 = vmatpush1.bf16.msra.mxu0 %v2933
        %2972 = vmatprep.subr.bf16.mxu0 0
        %2973 = vmatpush1.bf16.msra.mxu0 %v2932
        %2974 = vmatprep.subr.bf16.mxu0 0
        %2975 = vmatpush1.bf16.msra.mxu0 %v2931
        %2976 = vmatprep.subr.bf16.mxu0 0
        %2977 = vmatpush1.bf16.msra.mxu0 %v2930
        %2978 = vmatprep.subr.bf16.mxu0 0
        %2979 = vmatpush2.bf16.msra.mxu0 %v2945
        %2980 = vmatprep.subr.bf16.mxu0 0
        %2981 = vmatpush2.bf16.msra.mxu0 %v2944
        %2982 = vmatprep.subr.bf16.mxu0 0
        %2983 = vmatpush2.bf16.msra.mxu0 %v2943
        %2984 = vmatprep.subr.bf16.mxu0 0
        %2985 = vmatpush2.bf16.msra.mxu0 %v2942
        %2986 = vmatprep.subr.bf16.mxu0 0
        %2987 = vmatpush2.bf16.msra.mxu0 %v2941
        %2988 = vmatprep.subr.bf16.mxu0 0
        %2989 = vmatpush2.bf16.msra.mxu0 %v2940
        %2990 = vmatprep.subr.bf16.mxu0 0
        %2991 = vmatpush2.bf16.msra.mxu0 %v2939
        %2992 = vmatprep.subr.bf16.mxu0 0
        %2993 = vmatpush2.bf16.msra.mxu0 %v2938
        %2994 = vmatprep.mubr.bf16.mxu0 %v2826
        %2995 = vmatmul.mubr.bf16.gmra.mxu0 %v2825
        %v2996 = vpop.f32.mrf.mxu0
        %v2997 = vadd.f32 %v2864, %v2996
        %v2998 = vpop.f32.mrf.mxu0
        %v2999 = vpop.f32.mrf.mxu0
        %v3000 = vpop.f32.mrf.mxu0
        %3001 = vdwg.mxu0
        %v3002 = vadd.f32 %v2672, %v2997
        %v3003 = vld [vmem:[%s18] sm:$0x1]
        %v3004 = vld [vmem:[%s19] sm:$0x1]
        %3005 = vadd.xlane.f32.xlu0 %v3002
        %v3006 = vpop.xlane.xlu0 %3005
        %v3007 = vmul.f32 %v3006, %v1778
        %v3008 = vsub.f32 %v3002, %v3007
        %v3009 = vmul.f32 %v3008, %v3008
        %3010 = vadd.xlane.f32.xlu0 %v3009
        %v3011 = vpop.xlane.xlu0 %3010
        %v3012 = vmul.f32 %v3011, %v1778
        %v3013 = vadd.f32 %v3012, 1e-05
        %v3014 = vrsqrt.pop %v3013
        %v3015 = vmul.f32 %v3008, %v3014
        %v3017 = vlaneseq
        %v3018 = vshrl.u32 %v3017, 7
        %v3019 = vsub.s32 0, %v3018
        %v3020 = vrot.slane %v3003, %v3019
        %v3022 = vmul.f32 %v3015, %v3020
        %v3024 = vlaneseq
        %v3025 = vshrl.u32 %v3024, 7
        %v3026 = vsub.s32 0, %v3025
        %v3027 = vrot.slane %v3004, %v3026
        %v3029 = vadd.f32 %v3022, %v3027
        %3030 = vst [vmem:[%s914] sm:$0xff] %v3029
        %s3031 = sand.u32 %s575, 1
        %s3032 = scalar_lea.sflag [#allocation4], %s3031
        %s3033 = sand.u32 %s575, 1
        %s3034 = smul.addr %s3033, 8
        %s3035 = scalar_lea.vmem [#allocation19], %s3034
        // Predicated region
        $region157: #{tpu_custom_call.1} parent=115 // pred_check
          %p3036 = pneg %p585
        $region158: #{tpu_custom_call.1} parent=115 // pred_check_branch
          %3038 = sbr.rel (%p3036) target = $region160
        $region159: #{tpu_custom_call.1} parent=115 // pred_region
          %s3040 = ssub.s32 128, 128
          %3041 = vsyncadd %s3032, %s3040
          %s3042 = smul.addr %s48, 128
          %s3043 = scalar_lea.hbm %s24, %s3042
          %s3045 = sshll.u32 %s3035, 4
          %s3046 = int_to_ptr.vmem [resolvable:$true] %s3045
          %3048 = dma.vmem_to_hbm [thread:$0]  %s3046, 128, %s3043, %s3032
        $region160: #{tpu_custom_call.1} parent=115 // pred_fallthru
          _
      $region116: #{tpu_custom_call.1} parent=5 // pred_fallthru
        _
      %p3049 = scmp.le.s32.totalorder 2, %s43
      // Predicated region
      $region161: #{tpu_custom_call.1} parent=5 // pred_check
        %p3050 = pneg %p3049
      $region162: #{tpu_custom_call.1} parent=5 // pred_check_branch
        %3052 = sbr.rel (%p3050) target = $region164
      $region163: #{tpu_custom_call.1} parent=5 // pred_region
        %s3053 = ssub.s32 %s43, 2
        // Predicated region
        $region165: #{tpu_custom_call.1} parent=163 // pred_check
          %p3054 = pneg %p591
        $region166: #{tpu_custom_call.1} parent=163 // pred_check_branch
          %3056 = sbr.rel (%p3054) target = $region168
        $region167: #{tpu_custom_call.1} parent=163 // pred_region
          %s3057 = sand.u32 %s576, 1
          %s3058 = scalar_lea.sflag [#allocation4], %s3057
          %s3059 = sand.u32 %s576, 1
          %s3060 = smul.addr %s3059, 8
          %s3061 = scalar_lea.vmem [#allocation19], %s3060
          %3062 = dma.done %s3058, 128
        $region168: #{tpu_custom_call.1} parent=163 // pred_fallthru
          _
      $region164: #{tpu_custom_call.1} parent=5 // pred_fallthru
        _
    $region6: #{tpu_custom_call.1} parent=1 // loop_footer
      %s47 = sadd.s32 1, %s43
    $region7: #{tpu_custom_call.1} parent=1 // loop_footer_branch
      %42 = sbr.rel target = $region3
    $region8: #{tpu_custom_call.1} parent=1 // loop_exit
      _
    %3063 = vsyncpa [#allocation3], 1
    %s3064 = scalar_lea.sflag [#allocation3], 1
    %3065 = vsyncpa %s3064, 1
    %3066 = vsyncpa [#allocation6], 1
    %s3067 = scalar_lea.sflag [#allocation6], 1
    %3068 = vsyncpa %s3067, 1
    %3069 = vsyncpa [#allocation9], 1
    %3070 = vsyncpa [#allocation12], 1
    %3071 = vsyncpa [#allocation15], 1
    %3072 = vsyncpa [#allocation18], 1
    %3073 = vsyncpa [#allocation4], 1
    %s3074 = scalar_lea.sflag [#allocation4], 1
    %3075 = vsyncpa %s3074, 1

</llo_original>
